<compile_context>
chip_gen: v6e
topology: v6e:2x2x1
jax: 0.10.0
libtpu: 0.0.40
codegen_flags: <defaults>
</compile_context>

<pallas_src>
import functools
import numpy as np
import jax
import jax.numpy as jnp
from jax import lax
from jax.experimental import pallas as pl
from jax.experimental.pallas import tpu as pltpu

# ----------------------------- model configuration -----------------------------
ATOM_TYPES    = [3, 14]          # config['atomType']
NTYPES        = len(ATOM_TYPES)
MAXNEIGH      = 8                # config['maxNeighborNum']
M2            = 4                # config['M2']
EMB_H1        = 8                # embedding_net network_size = [8, 16]
EMB_DIM       = 16
FIT_H         = 16               # fitting_net hidden size
N_PROP        = 5                # len(type_embedding_net['physical_property'])
ENERGY_SHIFT  = [-3.2, -5.1]
DTYPE         = jnp.float32      # training_type == 'float32'

TYPE_VEC = {
    3:  jnp.array([0.10, 0.25, 0.40, 0.55, 0.70], DTYPE),
    14: jnp.array([0.60, 0.45, 0.30, 0.85, 0.95], DTYPE),
}


# ----------------------------- Pallas kernel -----------------------------------
def _typedp_kernel(st_ref, ri_ref, v_ref, e0_ref, w1p_ref, fit_ref, ei_ref, *,
                   n_prop, emb_h1, emb_dim, m2, bn, k):
    """One atom type per grid step; whole batch in one block.

    st_ref : [1, 1, N]           S_Rij, lane-dense (N = B*na*K on lanes)
    ri_ref : [1, BN, K, 4]       per-type Ri block (single copy)
    v_ref  : [P, N]              property rows, 1/(maxNeigh*type_nums) folded in
    e0_ref : [P*H1, 2]           col0 = stacked embedding W0, col1 = stacked b0
    w1p_ref: [P*E, P*H1+1]       block-diagonal W1^T (P nets fused), last col = b1
    fit_ref: [1, E*M2+FH+4, FH]  per-type fitting slab (fw0 | fb0 | fw1 | fb1 | fw2^T | fb2)
    ei_ref : [1, 1, BN]          lane-dense per-atom energies
    """
    n = bn * k

    # ---- fused, lane-dense embedding: 5 nets -> one block-diag matmul ----------
    x   = st_ref[0]                                                  # [1, N]
    h_t = jnp.tanh(e0_ref[:, 0:1] * x + e0_ref[:, 1:2])              # [P*H1, N]
    c0  = n_prop * emb_h1
    g_t = jnp.tanh(jnp.dot(w1p_ref[:, 0:c0], h_t,
                           preferred_element_type=jnp.float32)
                   + w1p_ref[:, c0:c0 + 1])                          # [P*E, N]
    g3  = g_t.reshape(n_prop, emb_dim, n)                            # [P, E, N]
    gt  = jnp.sum(g3 * v_ref[...][:, None, :], axis=0)               # [E, N]  == G^T (normalized)

    # ---- xyz_scater_a: VPU multiply + sublane reduce over K (no micro-matmuls) --
    g_a = gt.T.reshape(bn, k, emb_dim)                               # [BN, K, E]
    ri  = ri_ref[0]                                                  # [BN, K, 4]
    xyz = [jnp.sum(g_a * ri[:, :, c:c + 1], axis=1) for c in range(4)]   # 4 x [BN, E]

    # ---- DR assembled lane-dense [BN, M2*E], one fused fitting matmul ----------
    cols = []
    for m in range(m2):
        dr_m = xyz[0] * xyz[0][:, m:m + 1]
        for c in range(1, 4):
            dr_m = dr_m + xyz[c] * xyz[c][:, m:m + 1]
        cols.append(dr_m)                                            # [BN, E]
    d = jnp.concatenate(cols, axis=1)                                # [BN, M2*E]

    fh = fit_ref.shape[2]
    r0 = emb_dim * m2
    fp = fit_ref[0]                                                  # [r0+fh+4, FH]
    h = jnp.tanh(jnp.dot(d, fp[0:r0, :], preferred_element_type=jnp.float32)
                 + fp[r0:r0 + 1, :])
    h = jnp.tanh(jnp.dot(h, fp[r0 + 1:r0 + 1 + fh, :],
                         preferred_element_type=jnp.float32)
                 + fp[r0 + 1 + fh:r0 + 2 + fh, :])
    ei = lax.dot_general(fp[r0 + 2 + fh:r0 + 3 + fh, :], h,
                         (((1,), (1,)), ((), ())),
                         preferred_element_type=jnp.float32)          # [1, BN]
    ei_ref[0] = ei + fp[r0 + 3 + fh:r0 + 4 + fh, 0:1]                 # + energy_shift bias


def typedp_pallas(ri_stack, vmat, emb_params, fit_list):
    """ri_stack: [T, B*na, K, 4]; vmat: [P, B*na*K] (norm folded) -> Ei [T, 1, B*na]."""
    T, BN, K, _ = ri_stack.shape
    N = BN * K
    P = N_PROP
    ew0, eb0, ew1, eb1 = emb_params

    ri_stack = ri_stack.astype(jnp.float32)
    st_stack = ri_stack[..., 0].reshape(T, 1, N)                     # lane-dense S rows

    # ---- pack the 13 tiny weight/bias tensors into 3 slabs ----------------------
    e0pack = jnp.stack([ew0.reshape(P * EMB_H1), eb0.reshape(P * EMB_H1)], axis=1)  # [P*H1, 2]
    w1bd = jnp.zeros((P * EMB_DIM, P * EMB_H1), jnp.float32)
    for p in range(P):
        w1bd = w1bd.at[p * EMB_DIM:(p + 1) * EMB_DIM,
                       p * EMB_H1:(p + 1) * EMB_H1].set(ew1[p].T)
    w1pack = jnp.concatenate([w1bd, eb1.reshape(P * EMB_DIM, 1)], axis=1)           # [P*E, P*H1+1]

    fit_rows = EMB_DIM * M2 + FIT_H + 4
    slabs = []
    for (fw0_flat, fb0, fw1, fb1, fw2, fb2) in fit_list:
        # kernel's d columns are (m, e)-ordered -> permute fw0 rows accordingly
        fw0_perm = fw0_flat.reshape(EMB_DIM, M2, FIT_H).transpose(1, 0, 2) \
                           .reshape(M2 * EMB_DIM, FIT_H)
        fw2_row = fw2.reshape(1, FIT_H)
        fb2_row = jnp.concatenate([fb2.reshape(1, 1),
                                   jnp.zeros((1, FIT_H - 1), jnp.float32)], axis=1)
        slabs.append(jnp.concatenate([fw0_perm, fb0, fw1, fb1, fw2_row, fb2_row], axis=0))
    fit_pack = jnp.stack(slabs, axis=0)                              # [T, fit_rows, FH]

    kernel = functools.partial(_typedp_kernel, n_prop=P, emb_h1=EMB_H1,
                               emb_dim=EMB_DIM, m2=M2, bn=BN, k=K)

    return pl.pallas_call(
        kernel,
        out_shape=jax.ShapeDtypeStruct((T, 1, BN), jnp.float32),
        grid_spec=pltpu.PrefetchScalarGridSpec(
            num_scalar_prefetch=0,
            grid=(T,),
            in_specs=[
                pl.BlockSpec((1, 1, N), lambda t: (t, 0, 0)),
                pl.BlockSpec((1, BN, K, 4), lambda t: (t, 0, 0, 0)),
                pl.BlockSpec(vmat.shape, lambda t: (0, 0)),
                pl.BlockSpec(e0pack.shape, lambda t: (0, 0)),
                pl.BlockSpec(w1pack.shape, lambda t: (0, 0)),
                pl.BlockSpec((1, fit_rows, FIT_H), lambda t: (t, 0, 0)),
            ],
            out_specs=pl.BlockSpec((1, 1, BN), lambda t: (t, 0, 0)),
        ),
        compiler_params=pltpu.CompilerParams(dimension_semantics=("parallel",)),
    )(st_stack, ri_stack, vmat, e0pack, w1pack, fit_pack)


# ----------------------------- glue (mirrors the nn.Module) ---------------------
def get_train_2body_type(atom_type_data):
    type_2body_list, type_2body_index = [], []
    for a in atom_type_data:
        if a != 0:
            type_2body_index.append(ATOM_TYPES.index(a))
    for atom in type_2body_index:
        type_2body_list.append([[atom, atom2] for atom2 in type_2body_index])
    return type_2body_list, len(type_2body_index)


def typedp_forward(Ri, dfeat, list_neigh, natoms_img, atom_type, ImageDR, params,
                   Egroup_weight=None, divider=None, is_calc_f=False):
    natoms = np.asarray(natoms_img)[0, 1:]
    atom_type_cpu = list(np.asarray(atom_type)[0])
    emb_list, type_nums = get_train_2body_type(atom_type_cpu)
    B = Ri.shape[0]
    K = type_nums * MAXNEIGH

    # Build per-type blocks (skip empty types) and stack so the whole forward is
    # ONE pallas_call with a type grid axis.
    blocks, type_ids, na_list = [], [], []
    atom_sum = 0
    for type_emb in emb_list:
        ntype = type_emb[0][0]
        na = int(natoms[ntype])
        if na == 0:
            continue                                        # guard zero-atom types
        sub = [Ri[:, atom_sum:atom_sum + na, nt1 * MAXNEIGH:(nt1 + 1) * MAXNEIGH, :]
               for (_, nt1) in type_emb]
        blocks.append(jnp.concatenate(sub, axis=2).reshape(B * na, K, 4))
        type_ids.append(ntype)
        na_list.append(na)
        atom_sum += na
    # TODO(synk): merged kernel assumes equal atom counts per present type (true for this
    #             driver); unequal counts would need padding or a per-type BoundedSlice grid.
    assert len(set(na_list)) == 1
    na = na_list[0]
    T = len(type_ids)

    ri_stack = jnp.stack(blocks, axis=0)                    # [T, B*na, K, 4]

    vj_rows = [jnp.tile(TYPE_VEC[ATOM_TYPES[nt1]][None, :], (MAXNEIGH, 1))
               for (_, nt1) in emb_list[0]]
    v_base = jnp.concatenate(vj_rows, axis=0).T             # [P, K]
    norm = 1.0 / float(MAXNEIGH * type_nums)
    vmat = jnp.tile(v_base * norm, (1, B * na)).astype(jnp.float32)   # [P, B*na*K]

    fit_list = [params['fit'][t] for t in type_ids]
    ei_raw = typedp_pallas(ri_stack, vmat, params['emb'], fit_list)    # [T, 1, B*na]

    Ei = jnp.transpose(ei_raw.reshape(T, B, na), (1, 0, 2)).reshape(B, T * na, 1)
    Etot = jnp.sum(Ei, axis=1)                              # [B, 1]
    Egroup = None
    if Egroup_weight is not None:
        Egroup = jnp.squeeze(jnp.matmul(Egroup_weight, Ei), -1) / divider
    Ei_out = jnp.squeeze(Ei, 2)                             # [B, natoms_sum]
    # TODO(synk): Force/Virial (is_calc_f path) not translated.
    return Etot, Ei_out, None, Egroup, None


# ----------------------------- pure-JAX reference --------------------------------
def reference_forward(Ri, natoms_img, atom_type, params):
    natoms = np.asarray(natoms_img)[0, 1:]
    atom_type_cpu = list(np.asarray(atom_type)[0])
    emb_list, type_nums = get_train_2body_type(atom_type_cpu)
    ew0, eb0, ew1, eb1 = params['emb']

    Ei = None
    atom_sum = 0
    for type_emb in emb_list:
        ntype = type_emb[0][0]
        na = int(natoms[ntype])
        if na == 0:
            continue
        blocks, vjs = [], []
        for (nt, nt1) in type_emb:
            blocks.append(Ri[:, atom_sum:atom_sum + na,
                             nt1 * MAXNEIGH:(nt1 + 1) * MAXNEIGH, :])
            vjs.append(jnp.tile(TYPE_VEC[ATOM_TYPES[nt1]][None, :], (MAXNEIGH, 1)))
        ri_block = jnp.concatenate(blocks, axis=2)
        vj = jnp.concatenate(vjs, axis=0)
        S = ri_block[..., 0:1]                                        # [B, na, K, 1]
        G = 0.0
        for p in range(N_PROP):
            h  = jnp.tanh(S @ ew0[p] + eb0[p])
            gp = jnp.tanh(h @ ew1[p] + eb1[p])
            G  = G + gp * vj[None, None, :, p:p + 1]
        tmp_a = jnp.swapaxes(ri_block, -1, -2)                        # [B, na, 4, K]
        xyz = tmp_a @ G / (MAXNEIGH * type_nums)                      # [B, na, 4, E]
        DR = jnp.swapaxes(xyz, -1, -2) @ xyz[..., :M2]                # [B, na, E, M2]
        d = DR.reshape(DR.shape[0], na, EMB_DIM * M2)
        fw0_flat, fb0, fw1, fb1, fw2, fb2 = params['fit'][ntype]
        h = jnp.tanh(d @ fw0_flat + fb0)
        h = jnp.tanh(h @ fw1 + fb1)
        Ei_t = h @ fw2 + fb2
        Ei = Ei_t if Ei is None else jnp.concatenate([Ei, Ei_t], axis=1)
        atom_sum += na
    return jnp.sum(Ei, axis=1), jnp.squeeze(Ei, 2)


# ----------------------------- deterministic params ------------------------------
def init_params():
    key = jax.random.PRNGKey(0)
    ks = jax.random.split(key, 4 + 6 * NTYPES)
    sc = 0.2
    ew0 = sc * jax.random.normal(ks[0], (N_PROP, 1, EMB_H1), DTYPE)
    eb0 = sc * jax.random.normal(ks[1], (N_PROP, 1, EMB_H1), DTYPE)
    ew1 = sc * jax.random.normal(ks[2], (N_PROP, EMB_H1, EMB_DIM), DTYPE)
    eb1 = sc * jax.random.normal(ks[3], (N_PROP, 1, EMB_DIM), DTYPE)
    fits = []
    for t in range(NTYPES):
        kt = ks[4 + 6 * t: 4 + 6 * (t + 1)]
        fw0 = sc * jax.random.normal(kt[0], (EMB_DIM * M2, FIT_H), DTYPE)
        fb0 = sc * jax.random.normal(kt[1], (1, FIT_H), DTYPE)
        fw1 = sc * jax.random.normal(kt[2], (FIT_H, FIT_H), DTYPE)
        fb1 = sc * jax.random.normal(kt[3], (1, FIT_H), DTYPE)
        fw2 = sc * jax.random.normal(kt[4], (FIT_H, 1), DTYPE)
        fb2 = jnp.full((1, 1), ENERGY_SHIFT[t], DTYPE)                # bias init = energy_shift
        fits.append((fw0, fb0, fw1, fb1, fw2, fb2))
    return {'emb': (ew0, eb0, ew1, eb1), 'fit': fits}


# ----------------------------- main -----------------------------------------------
if __name__ == "__main__":
    B = 2
    natoms_per_type = [8, 8]
    natoms_sum = sum(natoms_per_type)

    key = jax.random.PRNGKey(0)
    kRi, _ = jax.random.split(key)
    Ri = jax.random.normal(kRi, (B, natoms_sum, NTYPES * MAXNEIGH, 4), DTYPE)
    dfeat = jnp.zeros((B, natoms_sum, NTYPES * MAXNEIGH * 4, 3), DTYPE)   # unused (no force path)
    list_neigh = jnp.zeros((B, natoms_sum, NTYPES * MAXNEIGH), jnp.int32)
    ImageDR = jnp.zeros((B, natoms_sum, NTYPES * MAXNEIGH, 3), DTYPE)
    natoms_img = np.array([[natoms_sum] + natoms_per_type] * B, np.int32)
    atom_type = np.array([ATOM_TYPES], np.int32)

    params = init_params()

    Etot, Ei, F, Egroup, Virial = typedp_forward(
        Ri, dfeat, list_neigh, natoms_img, atom_type, ImageDR, params, is_calc_f=False)
    jax.block_until_ready((Etot, Ei))

    Etot_ref, Ei_ref = reference_forward(Ri, natoms_img, atom_type, params)
    np.testing.assert_allclose(np.asarray(Ei), np.asarray(Ei_ref), rtol=1e-3, atol=1e-3)
    np.testing.assert_allclose(np.asarray(Etot), np.asarray(Etot_ref), rtol=1e-3, atol=1e-3)

    assert Etot.shape == (B, 1) and Ei.shape == (B, natoms_sum)
    print("KERNEL_OK")
</pallas_src>

<mosaic_0001>
module attributes {stable_mosaic.version = 11 : i64} {
  func.func @_typedp_kernel(%arg0: i32, %arg1: memref<1x1x256xf32, #tpu.memory_space<vmem>>, %arg2: memref<1x16x16x4xf32, #tpu.memory_space<vmem>>, %arg3: memref<5x256xf32, #tpu.memory_space<vmem>>, %arg4: memref<40x2xf32, #tpu.memory_space<vmem>>, %arg5: memref<80x41xf32, #tpu.memory_space<vmem>>, %arg6: memref<1x84x16xf32, #tpu.memory_space<vmem>>, %arg7: memref<1x1x16xf32, #tpu.memory_space<vmem>>) attributes {dimension_semantics = [#tpu.dimension_semantics<parallel>], iteration_bounds = array<i64: 2>, scalar_prefetch = 0 : i64, scratch_operands = 0 : i64, tpu.core_type = #tpu.core_type<tc>, window_params = [{transform_indices = @transform_0, window_bounds = array<i64: 1, 1, 256>}, {transform_indices = @transform_1, window_bounds = array<i64: 1, 16, 16, 4>}, {pipeline_mode = #tpu.pipeline_mode<synchronous>, transform_indices = @transform_2, window_bounds = array<i64: 5, 256>}, {pipeline_mode = #tpu.pipeline_mode<synchronous>, transform_indices = @transform_3, window_bounds = array<i64: 40, 2>}, {pipeline_mode = #tpu.pipeline_mode<synchronous>, transform_indices = @transform_4, window_bounds = array<i64: 80, 41>}, {transform_indices = @transform_5, window_bounds = array<i64: 1, 84, 16>}, {transform_indices = @transform_6, window_bounds = array<i64: 1, 1, 16>}]} {
    %c0 = arith.constant 0 : index
    %c0_0 = arith.constant 0 : index
    %c0_1 = arith.constant 0 : index
    %0 = vector.load %arg1[%c0, %c0_0, %c0_1] : memref<1x1x256xf32, #tpu.memory_space<vmem>>, vector<1x1x256xf32>
    %1 = vector.shape_cast %0 : vector<1x1x256xf32> to vector<1x256xf32>
    %c0_2 = arith.constant 0 : index
    %c0_3 = arith.constant 0 : index
    %2 = vector.load %arg4[%c0_2, %c0_3] : memref<40x2xf32, #tpu.memory_space<vmem>>, vector<40x1xf32>
    %3 = vector.broadcast %2 : vector<40x1xf32> to vector<40x256xf32>
    %4 = vector.broadcast %1 : vector<1x256xf32> to vector<40x256xf32>
    %5 = arith.mulf %3, %4 : vector<40x256xf32>
    %c0_4 = arith.constant 0 : index
    %c1 = arith.constant 1 : index
    %6 = vector.load %arg4[%c0_4, %c1] : memref<40x2xf32, #tpu.memory_space<vmem>>, vector<40x1xf32>
    %7 = vector.broadcast %6 : vector<40x1xf32> to vector<40x256xf32>
    %8 = arith.addf %5, %7 : vector<40x256xf32>
    %9 = math.tanh %8 : vector<40x256xf32>
    %c0_5 = arith.constant 0 : index
    %c0_6 = arith.constant 0 : index
    %10 = vector.load %arg5[%c0_5, %c0_6] : memref<80x41xf32, #tpu.memory_space<vmem>>, vector<80x40xf32>
    %cst = arith.constant dense<0.000000e+00> : vector<80x256xf32>
    %11 = tpu.matmul %10, %9, %cst {dimension_numbers = #tpu.dot_dimension_numbers<[1], [0], [0], [1], [0, 0, 1, 1], [], []>} : vector<80x40xf32>, vector<40x256xf32>, vector<80x256xf32> -> vector<80x256xf32>
    %c0_7 = arith.constant 0 : index
    %c40 = arith.constant 40 : index
    %12 = vector.load %arg5[%c0_7, %c40] : memref<80x41xf32, #tpu.memory_space<vmem>>, vector<80x1xf32>
    %13 = vector.broadcast %12 : vector<80x1xf32> to vector<80x256xf32>
    %14 = arith.addf %11, %13 : vector<80x256xf32>
    %15 = math.tanh %14 : vector<80x256xf32>
    %16 = vector.shape_cast %15 : vector<80x256xf32> to vector<5x16x256xf32>
    %c0_8 = arith.constant 0 : index
    %c0_9 = arith.constant 0 : index
    %17 = vector.load %arg3[%c0_8, %c0_9] : memref<5x256xf32, #tpu.memory_space<vmem>>, vector<5x256xf32>
    %18 = vector.shape_cast %17 : vector<5x256xf32> to vector<5x1x256xf32>
    %19 = vector.broadcast %18 : vector<5x1x256xf32> to vector<5x16x256xf32>
    %20 = arith.mulf %16, %19 : vector<5x16x256xf32>
    %cst_10 = arith.constant dense<0.000000e+00> : vector<16x256xf32>
    %21 = vector.multi_reduction <add>, %20, %cst_10 [0] : vector<5x16x256xf32> to vector<16x256xf32>
    %22 = tpu.transpose %21, [1, 0] : vector<16x256xf32> -> vector<256x16xf32>
    %23 = vector.shape_cast %22 : vector<256x16xf32> to vector<16x16x16xf32>
    %c0_11 = arith.constant 0 : index
    %c0_12 = arith.constant 0 : index
    %c0_13 = arith.constant 0 : index
    %c0_14 = arith.constant 0 : index
    %24 = vector.load %arg2[%c0_11, %c0_12, %c0_13, %c0_14] : memref<1x16x16x4xf32, #tpu.memory_space<vmem>>, vector<1x16x16x4xf32>
    %25 = vector.shape_cast %24 : vector<1x16x16x4xf32> to vector<16x16x4xf32>
    %26 = vector.extract_strided_slice %25 {offsets = [0, 0, 0], sizes = [16, 16, 1], strides = [1, 1, 1]} : vector<16x16x4xf32> to vector<16x16x1xf32>
    %27 = vector.broadcast %26 : vector<16x16x1xf32> to vector<16x16x16xf32>
    %28 = arith.mulf %23, %27 : vector<16x16x16xf32>
    %cst_15 = arith.constant dense<0.000000e+00> : vector<16x16xf32>
    %29 = vector.multi_reduction <add>, %28, %cst_15 [1] : vector<16x16x16xf32> to vector<16x16xf32>
    %30 = vector.extract_strided_slice %25 {offsets = [0, 0, 1], sizes = [16, 16, 1], strides = [1, 1, 1]} : vector<16x16x4xf32> to vector<16x16x1xf32>
    %31 = vector.broadcast %30 : vector<16x16x1xf32> to vector<16x16x16xf32>
    %32 = arith.mulf %23, %31 : vector<16x16x16xf32>
    %cst_16 = arith.constant dense<0.000000e+00> : vector<16x16xf32>
    %33 = vector.multi_reduction <add>, %32, %cst_16 [1] : vector<16x16x16xf32> to vector<16x16xf32>
    %34 = vector.extract_strided_slice %25 {offsets = [0, 0, 2], sizes = [16, 16, 1], strides = [1, 1, 1]} : vector<16x16x4xf32> to vector<16x16x1xf32>
    %35 = vector.broadcast %34 : vector<16x16x1xf32> to vector<16x16x16xf32>
    %36 = arith.mulf %23, %35 : vector<16x16x16xf32>
    %cst_17 = arith.constant dense<0.000000e+00> : vector<16x16xf32>
    %37 = vector.multi_reduction <add>, %36, %cst_17 [1] : vector<16x16x16xf32> to vector<16x16xf32>
    %38 = vector.extract_strided_slice %25 {offsets = [0, 0, 3], sizes = [16, 16, 1], strides = [1, 1, 1]} : vector<16x16x4xf32> to vector<16x16x1xf32>
    %39 = vector.broadcast %38 : vector<16x16x1xf32> to vector<16x16x16xf32>
    %40 = arith.mulf %23, %39 : vector<16x16x16xf32>
    %cst_18 = arith.constant dense<0.000000e+00> : vector<16x16xf32>
    %41 = vector.multi_reduction <add>, %40, %cst_18 [1] : vector<16x16x16xf32> to vector<16x16xf32>
    %42 = vector.extract_strided_slice %29 {offsets = [0, 0], sizes = [16, 1], strides = [1, 1]} : vector<16x16xf32> to vector<16x1xf32>
    %43 = vector.broadcast %42 : vector<16x1xf32> to vector<16x16xf32>
    %44 = arith.mulf %29, %43 : vector<16x16xf32>
    %45 = vector.extract_strided_slice %33 {offsets = [0, 0], sizes = [16, 1], strides = [1, 1]} : vector<16x16xf32> to vector<16x1xf32>
    %46 = vector.broadcast %45 : vector<16x1xf32> to vector<16x16xf32>
    %47 = arith.mulf %33, %46 : vector<16x16xf32>
    %48 = arith.addf %44, %47 : vector<16x16xf32>
    %49 = vector.extract_strided_slice %37 {offsets = [0, 0], sizes = [16, 1], strides = [1, 1]} : vector<16x16xf32> to vector<16x1xf32>
    %50 = vector.broadcast %49 : vector<16x1xf32> to vector<16x16xf32>
    %51 = arith.mulf %37, %50 : vector<16x16xf32>
    %52 = arith.addf %48, %51 : vector<16x16xf32>
    %53 = vector.extract_strided_slice %41 {offsets = [0, 0], sizes = [16, 1], strides = [1, 1]} : vector<16x16xf32> to vector<16x1xf32>
    %54 = vector.broadcast %53 : vector<16x1xf32> to vector<16x16xf32>
    %55 = arith.mulf %41, %54 : vector<16x16xf32>
    %56 = arith.addf %52, %55 : vector<16x16xf32>
    %57 = vector.extract_strided_slice %29 {offsets = [0, 1], sizes = [16, 1], strides = [1, 1]} : vector<16x16xf32> to vector<16x1xf32>
    %58 = vector.broadcast %57 : vector<16x1xf32> to vector<16x16xf32>
    %59 = arith.mulf %29, %58 : vector<16x16xf32>
    %60 = vector.extract_strided_slice %33 {offsets = [0, 1], sizes = [16, 1], strides = [1, 1]} : vector<16x16xf32> to vector<16x1xf32>
    %61 = vector.broadcast %60 : vector<16x1xf32> to vector<16x16xf32>
    %62 = arith.mulf %33, %61 : vector<16x16xf32>
    %63 = arith.addf %59, %62 : vector<16x16xf32>
    %64 = vector.extract_strided_slice %37 {offsets = [0, 1], sizes = [16, 1], strides = [1, 1]} : vector<16x16xf32> to vector<16x1xf32>
    %65 = vector.broadcast %64 : vector<16x1xf32> to vector<16x16xf32>
    %66 = arith.mulf %37, %65 : vector<16x16xf32>
    %67 = arith.addf %63, %66 : vector<16x16xf32>
    %68 = vector.extract_strided_slice %41 {offsets = [0, 1], sizes = [16, 1], strides = [1, 1]} : vector<16x16xf32> to vector<16x1xf32>
    %69 = vector.broadcast %68 : vector<16x1xf32> to vector<16x16xf32>
    %70 = arith.mulf %41, %69 : vector<16x16xf32>
    %71 = arith.addf %67, %70 : vector<16x16xf32>
    %72 = vector.extract_strided_slice %29 {offsets = [0, 2], sizes = [16, 1], strides = [1, 1]} : vector<16x16xf32> to vector<16x1xf32>
    %73 = vector.broadcast %72 : vector<16x1xf32> to vector<16x16xf32>
    %74 = arith.mulf %29, %73 : vector<16x16xf32>
    %75 = vector.extract_strided_slice %33 {offsets = [0, 2], sizes = [16, 1], strides = [1, 1]} : vector<16x16xf32> to vector<16x1xf32>
    %76 = vector.broadcast %75 : vector<16x1xf32> to vector<16x16xf32>
    %77 = arith.mulf %33, %76 : vector<16x16xf32>
    %78 = arith.addf %74, %77 : vector<16x16xf32>
    %79 = vector.extract_strided_slice %37 {offsets = [0, 2], sizes = [16, 1], strides = [1, 1]} : vector<16x16xf32> to vector<16x1xf32>
    %80 = vector.broadcast %79 : vector<16x1xf32> to vector<16x16xf32>
    %81 = arith.mulf %37, %80 : vector<16x16xf32>
    %82 = arith.addf %78, %81 : vector<16x16xf32>
    %83 = vector.extract_strided_slice %41 {offsets = [0, 2], sizes = [16, 1], strides = [1, 1]} : vector<16x16xf32> to vector<16x1xf32>
    %84 = vector.broadcast %83 : vector<16x1xf32> to vector<16x16xf32>
    %85 = arith.mulf %41, %84 : vector<16x16xf32>
    %86 = arith.addf %82, %85 : vector<16x16xf32>
    %87 = vector.extract_strided_slice %29 {offsets = [0, 3], sizes = [16, 1], strides = [1, 1]} : vector<16x16xf32> to vector<16x1xf32>
    %88 = vector.broadcast %87 : vector<16x1xf32> to vector<16x16xf32>
    %89 = arith.mulf %29, %88 : vector<16x16xf32>
    %90 = vector.extract_strided_slice %33 {offsets = [0, 3], sizes = [16, 1], strides = [1, 1]} : vector<16x16xf32> to vector<16x1xf32>
    %91 = vector.broadcast %90 : vector<16x1xf32> to vector<16x16xf32>
    %92 = arith.mulf %33, %91 : vector<16x16xf32>
    %93 = arith.addf %89, %92 : vector<16x16xf32>
    %94 = vector.extract_strided_slice %37 {offsets = [0, 3], sizes = [16, 1], strides = [1, 1]} : vector<16x16xf32> to vector<16x1xf32>
    %95 = vector.broadcast %94 : vector<16x1xf32> to vector<16x16xf32>
    %96 = arith.mulf %37, %95 : vector<16x16xf32>
    %97 = arith.addf %93, %96 : vector<16x16xf32>
    %98 = vector.extract_strided_slice %41 {offsets = [0, 3], sizes = [16, 1], strides = [1, 1]} : vector<16x16xf32> to vector<16x1xf32>
    %99 = vector.broadcast %98 : vector<16x1xf32> to vector<16x16xf32>
    %100 = arith.mulf %41, %99 : vector<16x16xf32>
    %101 = arith.addf %97, %100 : vector<16x16xf32>
    %102 = tpu.concatenate %56, %71, %86, %101 in 1 : vector<16x16xf32>, vector<16x16xf32>, vector<16x16xf32>, vector<16x16xf32> -> vector<16x64xf32>
    %c0_19 = arith.constant 0 : index
    %c0_20 = arith.constant 0 : index
    %c0_21 = arith.constant 0 : index
    %103 = vector.load %arg6[%c0_19, %c0_20, %c0_21] : memref<1x84x16xf32, #tpu.memory_space<vmem>>, vector<1x84x16xf32>
    %104 = vector.shape_cast %103 : vector<1x84x16xf32> to vector<84x16xf32>
    %105 = vector.extract_strided_slice %104 {offsets = [0, 0], sizes = [64, 16], strides = [1, 1]} : vector<84x16xf32> to vector<64x16xf32>
    %cst_22 = arith.constant dense<0.000000e+00> : vector<16x16xf32>
    %106 = tpu.matmul %102, %105, %cst_22 {dimension_numbers = #tpu.dot_dimension_numbers<[1], [0], [0], [1], [0, 0, 1, 1], [], []>} : vector<16x64xf32>, vector<64x16xf32>, vector<16x16xf32> -> vector<16x16xf32>
    %107 = vector.extract_strided_slice %104 {offsets = [64, 0], sizes = [1, 16], strides = [1, 1]} : vector<84x16xf32> to vector<1x16xf32>
    %108 = vector.broadcast %107 : vector<1x16xf32> to vector<16x16xf32>
    %109 = arith.addf %106, %108 : vector<16x16xf32>
    %110 = math.tanh %109 : vector<16x16xf32>
    %111 = vector.extract_strided_slice %104 {offsets = [65, 0], sizes = [16, 16], strides = [1, 1]} : vector<84x16xf32> to vector<16x16xf32>
    %cst_23 = arith.constant dense<0.000000e+00> : vector<16x16xf32>
    %112 = tpu.matmul %110, %111, %cst_23 {dimension_numbers = #tpu.dot_dimension_numbers<[1], [0], [0], [1], [0, 0, 1, 1], [], []>} : vector<16x16xf32>, vector<16x16xf32>, vector<16x16xf32> -> vector<16x16xf32>
    %113 = vector.extract_strided_slice %104 {offsets = [81, 0], sizes = [1, 16], strides = [1, 1]} : vector<84x16xf32> to vector<1x16xf32>
    %114 = vector.broadcast %113 : vector<1x16xf32> to vector<16x16xf32>
    %115 = arith.addf %112, %114 : vector<16x16xf32>
    %116 = math.tanh %115 : vector<16x16xf32>
    %117 = vector.extract_strided_slice %104 {offsets = [82, 0], sizes = [1, 16], strides = [1, 1]} : vector<84x16xf32> to vector<1x16xf32>
    %cst_24 = arith.constant dense<0.000000e+00> : vector<1x16xf32>
    %118 = tpu.matmul %117, %116, %cst_24 {dimension_numbers = #tpu.dot_dimension_numbers<[1], [1], [0], [0], [0, 0, 1, 0], [], []>} : vector<1x16xf32>, vector<16x16xf32>, vector<1x16xf32> -> vector<1x16xf32>
    %119 = vector.extract_strided_slice %104 {offsets = [83, 0], sizes = [1, 1], strides = [1, 1]} : vector<84x16xf32> to vector<1x1xf32>
    %120 = vector.broadcast %119 : vector<1x1xf32> to vector<1x16xf32>
    %121 = arith.addf %118, %120 : vector<1x16xf32>
    %c0_25 = arith.constant 0 : index
    %c0_26 = arith.constant 0 : index
    %c0_27 = arith.constant 0 : index
    %122 = vector.load %arg7[%c0_25, %c0_26, %c0_27] : memref<1x1x16xf32, #tpu.memory_space<vmem>>, vector<1x1x16xf32>
    %123 = vector.shape_cast %122 : vector<1x1x16xf32> to vector<1x16xf32>
    %124 = vector.shape_cast %121 : vector<1x16xf32> to vector<1x1x16xf32>
    tpu.vector_store %arg7[%c0_25, %c0_26, %c0_27], %124 {strides = array<i32>} : memref<1x1x16xf32, #tpu.memory_space<vmem>>, vector<1x1x16xf32>,
    return
  }
  func.func @transform_0(%arg0: i32) -> (i32, i32, i32) {
    %c0_i32 = arith.constant 0 : i32
    %c0_i32_0 = arith.constant 0 : i32
    %c0_i32_1 = arith.constant 0 : i32
    return %arg0, %c0_i32, %c0_i32_0 : i32, i32, i32
  }
  func.func @transform_1(%arg0: i32) -> (i32, i32, i32, i32) {
    %c0_i32 = arith.constant 0 : i32
    %c0_i32_0 = arith.constant 0 : i32
    %c0_i32_1 = arith.constant 0 : i32
    %c0_i32_2 = arith.constant 0 : i32
    return %arg0, %c0_i32, %c0_i32_0, %c0_i32_1 : i32, i32, i32, i32
  }
  func.func @transform_2(%arg0: i32) -> (i32, i32) {
    %c0_i32 = arith.constant 0 : i32
    %c0_i32_0 = arith.constant 0 : i32
    %c0_i32_1 = arith.constant 0 : i32
    return %c0_i32, %c0_i32_0 : i32, i32
  }
  func.func @transform_3(%arg0: i32) -> (i32, i32) {
    %c0_i32 = arith.constant 0 : i32
    %c0_i32_0 = arith.constant 0 : i32
    %c0_i32_1 = arith.constant 0 : i32
    return %c0_i32, %c0_i32_0 : i32, i32
  }
  func.func @transform_4(%arg0: i32) -> (i32, i32) {
    %c0_i32 = arith.constant 0 : i32
    %c0_i32_0 = arith.constant 0 : i32
    %c0_i32_1 = arith.constant 0 : i32
    return %c0_i32, %c0_i32_0 : i32, i32
  }
  func.func @transform_5(%arg0: i32) -> (i32, i32, i32) {
    %c0_i32 = arith.constant 0 : i32
    %c0_i32_0 = arith.constant 0 : i32
    %c0_i32_1 = arith.constant 0 : i32
    return %arg0, %c0_i32, %c0_i32_0 : i32, i32, i32
  }
  func.func @transform_6(%arg0: i32) -> (i32, i32, i32) {
    %c0_i32 = arith.constant 0 : i32
    %c0_i32_0 = arith.constant 0 : i32
    %c0_i32_1 = arith.constant 0 : i32
    return %arg0, %c0_i32, %c0_i32_0 : i32, i32, i32
  }
}

</mosaic_0001>

<llo_original>
// kernel: tpu_custom_call.1
$region0: #{tpu_custom_call.1}
  #allocation0 [shape = 'u32[]', space=smem, size = 0x4, offset = 0x4, fixed_abs, tag = 'smem constant byte address 0x4 - core index']
  #allocation1 [shape = 'u32[144,128]{1,0:T(1,128)}', space=vmem, size = 0x12000, scoped, tag = 'internal scratch']
  %s0 = inlined_call_operand.vmem [shape: f32[2,1,256], index: 0, kind: input, shape index: {}]
  %s1 = inlined_call_operand.vmem [shape: f32[2,16,16,4], index: 1, kind: input, shape index: {}]
  %s2 = inlined_call_operand.vmem [shape: f32[5,256], index: 2, kind: input, shape index: {}]
  %s3 = inlined_call_operand.vmem [shape: f32[40,2], index: 3, kind: input, shape index: {}]
  %s4 = inlined_call_operand.vmem [shape: f32[80,41], index: 4, kind: input, shape index: {}]
  %s5 = inlined_call_operand.vmem [shape: f32[2,84,16], index: 5, kind: input, shape index: {}]
  %s6 = inlined_call_operand.hbm [shape: f32[2,1,16], index: 6, kind: output, shape index: {}]
  %s7 = sld [smem:[#allocation0]]
  $region57: #{tpu_custom_call.1} parent=0
    _
  %s9 = ssub.s32 1, %s7
  %s10 = scalar_select 0, %s9, %s7
  $region1: #{tpu_custom_call.1} parent=0
    #allocation2 [shape = 'u8[1024]{0}', space=vmem, size = 0x400, scoped, tag = 'output window, operand 0']
    #allocation3 [shape = 's32[2]{0}', space=sflag, size = 0x8, scoped, tag = 'scoped memory for tpu_custom_call.1']
    %11 = vsyncpa [#allocation3], 0
    %s12 = scalar_lea.sflag [#allocation3], 1
    %13 = vsyncpa %s12, 0
    loop: start=0, step=1, limit=4
    $region2: #{tpu_custom_call.1} parent=1 // loop_pre_header
      _
    $region3: #{tpu_custom_call.1} parent=1 // loop_header
      %s15 = sphi 0, %s19
      %p16 = scmp.ge.s32.totalorder %s15, 4
      %s25 = sphi 0, %s27
      %s28 = sphi 0, %s25
      %s29 = sphi 0, %s28
      %s45 = sphi 0, %s29
      %s51 = sphi 0, %s53
      %s54 = sphi 0, %s51
      %s55 = sphi 0, %s54
      %s71 = sphi 0, %s55
      %s75 = sphi 0, %s75
      %s77 = sphi 0, %s75
      %s78 = sphi 0, %s77
      %s92 = sphi 0, %s78
      %s96 = sphi 0, %s96
      %s98 = sphi 0, %s96
      %s99 = sphi 0, %s98
      %s113 = sphi 0, %s99
      %s117 = sphi 0, %s117
      %s119 = sphi 0, %s117
      %s120 = sphi 0, %s119
      %s134 = sphi 0, %s120
      %s140 = sphi 0, %s142
      %s143 = sphi 0, %s140
      %s144 = sphi 0, %s143
      %s160 = sphi 0, %s144
      %s166 = sphi 0, %s168
      %s169 = sphi 0, %s166
      %s170 = sphi 0, %s169
      %s186 = sphi 0, %s170
    $region4: #{tpu_custom_call.1} parent=1 // loop_header_branch
      %18 = sbr.rel (%p16) target = $region8
    $region5: #{tpu_custom_call.1} parent=1 // loop_body
      %s20 = ssub.s32 %s15, 1
      %s21 = ssub.s32 %s15, 2
      %s22 = sadd.s32 %s15, 1
      %s23 = ssub.s32 %s15, %s22
      %p24 = scmp.eq.s32.totalorder %s23, 0
      %s26 = sadd.s32 %s25, 1
      %s27 = scalar_select %p24, %s25, %s26
      %p30 = pneg %p24
      %p31 = scmp.eq.s32.totalorder %s15, 1
      %p32 = por %p30, %p31
      %p33 = scmp.ne.s32.totalorder %s25, %s28
      %p34 = scmp.eq.s32.totalorder %s15, 0
      %p35 = por %p33, %p34
      %p36 = scmp.ne.s32.totalorder %s25, %s28
      %p37 = scmp.eq.s32.totalorder %s20, 1
      %p38 = por %p36, %p37
      %p39 = scmp.ne.s32.totalorder %s28, %s29
      %p40 = scmp.eq.s32.totalorder %s20, 0
      %p41 = por %p39, %p40
      %p42 = scmp.ne.s32.totalorder %s28, %s29
      %p43 = scmp.eq.s32.totalorder %s21, 1
      %p44 = por %p42, %p43
      %p46 = scmp.ne.s32.totalorder %s29, %s45
      %p47 = scmp.eq.s32.totalorder %s21, 0
      %p48 = por %p46, %p47
      %s49 = ssub.s32 %s15, %s22
      %p50 = scmp.eq.s32.totalorder %s49, 0
      %s52 = sadd.s32 %s51, 1
      %s53 = scalar_select %p50, %s51, %s52
      %p56 = pneg %p50
      %p57 = scmp.eq.s32.totalorder %s15, 1
      %p58 = por %p56, %p57
      %p59 = scmp.ne.s32.totalorder %s51, %s54
      %p60 = scmp.eq.s32.totalorder %s15, 0
      %p61 = por %p59, %p60
      %p62 = scmp.ne.s32.totalorder %s51, %s54
      %p63 = scmp.eq.s32.totalorder %s20, 1
      %p64 = por %p62, %p63
      %p65 = scmp.ne.s32.totalorder %s54, %s55
      %p66 = scmp.eq.s32.totalorder %s20, 0
      %p67 = por %p65, %p66
      %p68 = scmp.ne.s32.totalorder %s54, %s55
      %p69 = scmp.eq.s32.totalorder %s21, 1
      %p70 = por %p68, %p69
      %p72 = scmp.ne.s32.totalorder %s55, %s71
      %p73 = scmp.eq.s32.totalorder %s21, 0
      %p74 = por %p72, %p73
      %s76 = sadd.s32 %s75, 1
      %p79 = scmp.eq.s32.totalorder %s15, 1
      %p80 = scmp.ne.s32.totalorder %s75, %s77
      %p81 = scmp.eq.s32.totalorder %s15, 0
      %p82 = por %p80, %p81
      %p83 = scmp.ne.s32.totalorder %s75, %s77
      %p84 = scmp.eq.s32.totalorder %s20, 1
      %p85 = por %p83, %p84
      %p86 = scmp.ne.s32.totalorder %s77, %s78
      %p87 = scmp.eq.s32.totalorder %s20, 0
      %p88 = por %p86, %p87
      %p89 = scmp.ne.s32.totalorder %s77, %s78
      %p90 = scmp.eq.s32.totalorder %s21, 1
      %p91 = por %p89, %p90
      %p93 = scmp.ne.s32.totalorder %s78, %s92
      %p94 = scmp.eq.s32.totalorder %s21, 0
      %p95 = por %p93, %p94
      %s97 = sadd.s32 %s96, 1
      %p100 = scmp.eq.s32.totalorder %s15, 1
      %p101 = scmp.ne.s32.totalorder %s96, %s98
      %p102 = scmp.eq.s32.totalorder %s15, 0
      %p103 = por %p101, %p102
      %p104 = scmp.ne.s32.totalorder %s96, %s98
      %p105 = scmp.eq.s32.totalorder %s20, 1
      %p106 = por %p104, %p105
      %p107 = scmp.ne.s32.totalorder %s98, %s99
      %p108 = scmp.eq.s32.totalorder %s20, 0
      %p109 = por %p107, %p108
      %p110 = scmp.ne.s32.totalorder %s98, %s99
      %p111 = scmp.eq.s32.totalorder %s21, 1
      %p112 = por %p110, %p111
      %p114 = scmp.ne.s32.totalorder %s99, %s113
      %p115 = scmp.eq.s32.totalorder %s21, 0
      %p116 = por %p114, %p115
      %s118 = sadd.s32 %s117, 1
      %p121 = scmp.eq.s32.totalorder %s15, 1
      %p122 = scmp.ne.s32.totalorder %s117, %s119
      %p123 = scmp.eq.s32.totalorder %s15, 0
      %p124 = por %p122, %p123
      %p125 = scmp.ne.s32.totalorder %s117, %s119
      %p126 = scmp.eq.s32.totalorder %s20, 1
      %p127 = por %p125, %p126
      %p128 = scmp.ne.s32.totalorder %s119, %s120
      %p129 = scmp.eq.s32.totalorder %s20, 0
      %p130 = por %p128, %p129
      %p131 = scmp.ne.s32.totalorder %s119, %s120
      %p132 = scmp.eq.s32.totalorder %s21, 1
      %p133 = por %p131, %p132
      %p135 = scmp.ne.s32.totalorder %s120, %s134
      %p136 = scmp.eq.s32.totalorder %s21, 0
      %p137 = por %p135, %p136
      %s138 = ssub.s32 %s15, %s22
      %p139 = scmp.eq.s32.totalorder %s138, 0
      %s141 = sadd.s32 %s140, 1
      %s142 = scalar_select %p139, %s140, %s141
      %p145 = pneg %p139
      %p146 = scmp.eq.s32.totalorder %s15, 1
      %p147 = por %p145, %p146
      %p148 = scmp.ne.s32.totalorder %s140, %s143
      %p149 = scmp.eq.s32.totalorder %s15, 0
      %p150 = por %p148, %p149
      %p151 = scmp.ne.s32.totalorder %s140, %s143
      %p152 = scmp.eq.s32.totalorder %s20, 1
      %p153 = por %p151, %p152
      %p154 = scmp.ne.s32.totalorder %s143, %s144
      %p155 = scmp.eq.s32.totalorder %s20, 0
      %p156 = por %p154, %p155
      %p157 = scmp.ne.s32.totalorder %s143, %s144
      %p158 = scmp.eq.s32.totalorder %s21, 1
      %p159 = por %p157, %p158
      %p161 = scmp.ne.s32.totalorder %s144, %s160
      %p162 = scmp.eq.s32.totalorder %s21, 0
      %p163 = por %p161, %p162
      %s164 = ssub.s32 %s15, %s22
      %p165 = scmp.eq.s32.totalorder %s164, 0
      %s167 = sadd.s32 %s166, 1
      %s168 = scalar_select %p165, %s166, %s167
      %p171 = pneg %p165
      %p172 = scmp.eq.s32.totalorder %s15, 1
      %p173 = por %p171, %p172
      %p174 = scmp.ne.s32.totalorder %s166, %s169
      %p175 = scmp.eq.s32.totalorder %s15, 0
      %p176 = por %p174, %p175
      %p177 = scmp.ne.s32.totalorder %s166, %s169
      %p178 = scmp.eq.s32.totalorder %s20, 1
      %p179 = por %p177, %p178
      %p180 = scmp.ne.s32.totalorder %s169, %s170
      %p181 = scmp.eq.s32.totalorder %s20, 0
      %p182 = por %p180, %p181
      %p183 = scmp.ne.s32.totalorder %s169, %s170
      %p184 = scmp.eq.s32.totalorder %s21, 1
      %p185 = por %p183, %p184
      %p187 = scmp.ne.s32.totalorder %s170, %s186
      %p188 = scmp.eq.s32.totalorder %s21, 0
      %p189 = por %p187, %p188
      %p190 = scmp.le.s32.totalorder 1, %s15
      %p191 = scmp.lt.s32.totalorder %s15, 3
      %p192 = pnand %p190, %p191
      %p193 = pneg %p192
      // Predicated region
      $region9: #{tpu_custom_call.1} parent=5 // pred_check
        _
      $region10: #{tpu_custom_call.1} parent=5 // pred_check_branch
        %195 = sbr.rel (%p192) target = $region12
      $region11: #{tpu_custom_call.1} parent=5 // pred_region
        %s196 = ssub.s32 %s15, 1
        // Predicated region
        $region13: #{tpu_custom_call.1} parent=11 // pred_check
          %p197 = pneg %p88
        $region14: #{tpu_custom_call.1} parent=11 // pred_check_branch
          %199 = sbr.rel (%p197) target = $region16
        $region15: #{tpu_custom_call.1} parent=11 // pred_region
          _
        $region16: #{tpu_custom_call.1} parent=11 // pred_fallthru
          _
        // Predicated region
        $region17: #{tpu_custom_call.1} parent=11 // pred_check
          %p200 = pneg %p109
        $region18: #{tpu_custom_call.1} parent=11 // pred_check_branch
          %202 = sbr.rel (%p200) target = $region20
        $region19: #{tpu_custom_call.1} parent=11 // pred_region
          _
        $region20: #{tpu_custom_call.1} parent=11 // pred_fallthru
          _
        // Predicated region
        $region21: #{tpu_custom_call.1} parent=11 // pred_check
          %p203 = pneg %p130
        $region22: #{tpu_custom_call.1} parent=11 // pred_check_branch
          %205 = sbr.rel (%p203) target = $region24
        $region23: #{tpu_custom_call.1} parent=11 // pred_region
          _
        $region24: #{tpu_custom_call.1} parent=11 // pred_fallthru
          _
      $region12: #{tpu_custom_call.1} parent=5 // pred_fallthru
        _
      %p206 = scmp.lt.s32.totalorder %s15, 2
      // Predicated region
      $region25: #{tpu_custom_call.1} parent=5 // pred_check
        %p207 = pneg %p206
      $region26: #{tpu_custom_call.1} parent=5 // pred_check_branch
        %209 = sbr.rel (%p207) target = $region28
      $region27: #{tpu_custom_call.1} parent=5 // pred_region
        // Predicated region
        $region29: #{tpu_custom_call.1} parent=27 // pred_check
          %p210 = pneg %p35
        $region30: #{tpu_custom_call.1} parent=27 // pred_check_branch
          %212 = sbr.rel (%p210) target = $region32
        $region31: #{tpu_custom_call.1} parent=27 // pred_region
          %p213 = scmp.lt.s32.totalorder %s15, 1
          %s214 = scalar_select %p213, %s15, 1
          %s215 = smul.addr %s214, 2
          %s216 = scalar_lea.vmem %s0, %s215
        $region32: #{tpu_custom_call.1} parent=27 // pred_fallthru
          _
        // Predicated region
        $region33: #{tpu_custom_call.1} parent=27 // pred_check
          %p217 = pneg %p61
        $region34: #{tpu_custom_call.1} parent=27 // pred_check_branch
          %219 = sbr.rel (%p217) target = $region36
        $region35: #{tpu_custom_call.1} parent=27 // pred_region
          %p220 = scmp.lt.s32.totalorder %s15, 1
          %s221 = scalar_select %p220, %s15, 1
          %s222 = smul.addr %s221, 32
          %s223 = smul.addr %s222, 8
          %s224 = scalar_lea.vmem %s1, %s223
        $region36: #{tpu_custom_call.1} parent=27 // pred_fallthru
          _
        // Predicated region
        $region37: #{tpu_custom_call.1} parent=27 // pred_check
          %p225 = pneg %p150
        $region38: #{tpu_custom_call.1} parent=27 // pred_check_branch
          %227 = sbr.rel (%p225) target = $region40
        $region39: #{tpu_custom_call.1} parent=27 // pred_region
          %p228 = scmp.lt.s32.totalorder %s15, 1
          %s229 = scalar_select %p228, %s15, 1
          %s230 = smul.addr %s229, 11
          %s231 = smul.addr %s230, 8
          %s232 = scalar_lea.vmem %s5, %s231
        $region40: #{tpu_custom_call.1} parent=27 // pred_fallthru
          _
      $region28: #{tpu_custom_call.1} parent=5 // pred_fallthru
        _
      %p233 = scmp.le.s32.totalorder 1, %s15
      %p234 = scmp.lt.s32.totalorder %s15, 3
      %p235 = pnand %p233, %p234
      %p236 = pneg %p235
      // Predicated region
      $region41: #{tpu_custom_call.1} parent=5 // pred_check
        _
      $region42: #{tpu_custom_call.1} parent=5 // pred_check_branch
        %238 = sbr.rel (%p235) target = $region44
      $region43: #{tpu_custom_call.1} parent=5 // pred_region
        %s239 = ssub.s32 %s15, 1
        %p240 = scmp.lt.s32.totalorder %s20, 1
        %s241 = scalar_select %p240, %s20, 1
        %s242 = smul.addr %s241, 2
        %s243 = scalar_lea.vmem %s0, %s242
        %p244 = pneg %p41
        %p245 = pneg %p38
        %p246 = scmp.lt.s32.totalorder %s20, 1
        %s247 = scalar_select %p246, %s20, 1
        %s248 = smul.addr %s247, 32
        %s249 = smul.addr %s248, 8
        %s250 = scalar_lea.vmem %s1, %s249
        %p251 = pneg %p67
        %p252 = pneg %p64
        %p253 = pneg %p88
        %p254 = pneg %p85
        %p255 = pneg %p109
        %p256 = pneg %p106
        %p257 = pneg %p130
        %p258 = pneg %p127
        %p259 = scmp.lt.s32.totalorder %s20, 1
        %s260 = scalar_select %p259, %s20, 1
        %s261 = smul.addr %s260, 11
        %s262 = smul.addr %s261, 8
        %s263 = scalar_lea.vmem %s5, %s262
        %p264 = pneg %p156
        %p265 = pneg %p153
        %p266 = pneg %p182
        %p267 = pneg %p179
        %s268 = sand.u32 %s169, 1
        %s269 = scalar_lea.sflag [#allocation3], %s268
        %s270 = sand.u32 %s169, 1
        %s271 = scalar_lea.vmem [#allocation2], %s270
        %p272 = scmp.lt.s32.totalorder %s20, 1
        %s273 = scalar_select %p272, %s20, 1
        %s274 = smul.addr %s273, 2
        %s275 = scalar_lea.vmem %s0, %s274
        %p276 = scmp.lt.s32.totalorder %s20, 1
        %s277 = scalar_select %p276, %s20, 1
        %s278 = smul.addr %s277, 32
        %s279 = smul.addr %s278, 8
        %s280 = scalar_lea.vmem %s1, %s279
        %p281 = scmp.lt.s32.totalorder %s20, 1
        %s282 = scalar_select %p281, %s20, 1
        %s283 = smul.addr %s282, 11
        %s284 = smul.addr %s283, 8
        %s285 = scalar_lea.vmem %s5, %s284
        %v286 = vld [vmem:[%s275] sm:$0x3]
        %v287 = vld [vmem:[%s3] sm:$0xff]
        %v288 = vld [vmem:[%s3 + $0x8] sm:$0xff]
        %v289 = vld [vmem:[%s3 + $0x10] sm:$0xff]
        %v290 = vld [vmem:[%s3 + $0x18] sm:$0xff]
        %v291 = vld [vmem:[%s3 + $0x20] sm:$0xff]
        %293 = vset.pattern.permute.xlu0 0
        %294 = vperm.xlu0 %293, %v287
        %v295 = vpop.permute.xlu0 %294
        %298 = vset.pattern.permute.xlu0 0
        %299 = vperm.xlu0 %298, %v288
        %v300 = vpop.permute.xlu0 %299
        %303 = vset.pattern.permute.xlu0 0
        %304 = vperm.xlu0 %303, %v289
        %v305 = vpop.permute.xlu0 %304
        %308 = vset.pattern.permute.xlu0 0
        %309 = vperm.xlu0 %308, %v290
        %v310 = vpop.permute.xlu0 %309
        %313 = vset.pattern.permute.xlu0 0
        %314 = vperm.xlu0 %313, %v291
        %v315 = vpop.permute.xlu0 %314
        %v318 = vlaneseq
        %v319 = vshrl.u32 %v318, 7
        %v320 = vsub.s32 0, %v319
        %v321 = vrot.slane %v286, %v320
        %v322 = vlaneseq
        %v323 = vshrl.u32 %v322, 7
        %v324 = vsub.s32 1, %v323
        %v325 = vrot.slane %v286, %v324
        %v328 = vmul.f32 %v295, %v321
        %v329 = vmul.f32 %v295, %v325
        %v330 = vmul.f32 %v300, %v321
        %v331 = vmul.f32 %v300, %v325
        %v332 = vmul.f32 %v305, %v321
        %v333 = vmul.f32 %v305, %v325
        %v334 = vmul.f32 %v310, %v321
        %v335 = vmul.f32 %v310, %v325
        %v336 = vmul.f32 %v315, %v321
        %v337 = vmul.f32 %v315, %v325
        %338 = vset.pattern.permute.xlu0 1
        %339 = vperm.xlu0 %338, %v287
        %v340 = vpop.permute.xlu0 %339
        %342 = vset.pattern.permute.xlu0 1
        %343 = vperm.xlu0 %342, %v288
        %v344 = vpop.permute.xlu0 %343
        %346 = vset.pattern.permute.xlu0 1
        %347 = vperm.xlu0 %346, %v289
        %v348 = vpop.permute.xlu0 %347
        %350 = vset.pattern.permute.xlu0 1
        %351 = vperm.xlu0 %350, %v290
        %v352 = vpop.permute.xlu0 %351
        %354 = vset.pattern.permute.xlu0 1
        %355 = vperm.xlu0 %354, %v291
        %v356 = vpop.permute.xlu0 %355
        %v358 = vadd.f32 %v328, %v340
        %v359 = vadd.f32 %v329, %v340
        %v360 = vadd.f32 %v330, %v344
        %v361 = vadd.f32 %v331, %v344
        %v362 = vadd.f32 %v332, %v348
        %v363 = vadd.f32 %v333, %v348
        %v364 = vadd.f32 %v334, %v352
        %v365 = vadd.f32 %v335, %v352
        %v366 = vadd.f32 %v336, %v356
        %v367 = vadd.f32 %v337, %v356
        %v368 = vtanh.pop %v358
        %v369 = vtanh.pop %v359
        %v370 = vtanh.pop %v360
        %v371 = vtanh.pop %v361
        %v372 = vtanh.pop %v362
        %v373 = vtanh.pop %v363
        %v374 = vtanh.pop %v364
        %v375 = vtanh.pop %v365
        %v376 = vtanh.pop %v366
        %v377 = vtanh.pop %v367
        %v378 = vld [vmem:[%s4] sm:$0xff]
        %v379 = vld [vmem:[%s4 + $0x8] sm:$0xff]
        %v380 = vld [vmem:[%s4 + $0x10] sm:$0xff]
        %v381 = vld [vmem:[%s4 + $0x18] sm:$0xff]
        %v382 = vld [vmem:[%s4 + $0x20] sm:$0xff]
        %v383 = vld [vmem:[%s4 + $0x28] sm:$0xff]
        %v384 = vld [vmem:[%s4 + $0x30] sm:$0xff]
        %v385 = vld [vmem:[%s4 + $0x38] sm:$0xff]
        %v386 = vld [vmem:[%s4 + $0x40] sm:$0xff]
        %v387 = vld [vmem:[%s4 + $0x48] sm:$0xff]
        %389 = vset.pattern.permute.xlu0 40
        %390 = vperm.xlu0 %389, %v378
        %v391 = vpop.permute.xlu0 %390
        %394 = vset.pattern.permute.xlu0 40
        %395 = vperm.xlu0 %394, %v379
        %v396 = vpop.permute.xlu0 %395
        %399 = vset.pattern.permute.xlu0 40
        %400 = vperm.xlu0 %399, %v380
        %v401 = vpop.permute.xlu0 %400
        %404 = vset.pattern.permute.xlu0 40
        %405 = vperm.xlu0 %404, %v381
        %v406 = vpop.permute.xlu0 %405
        %409 = vset.pattern.permute.xlu0 40
        %410 = vperm.xlu0 %409, %v382
        %v411 = vpop.permute.xlu0 %410
        %414 = vset.pattern.permute.xlu0 40
        %415 = vperm.xlu0 %414, %v383
        %v416 = vpop.permute.xlu0 %415
        %419 = vset.pattern.permute.xlu0 40
        %420 = vperm.xlu0 %419, %v384
        %v421 = vpop.permute.xlu0 %420
        %424 = vset.pattern.permute.xlu0 40
        %425 = vperm.xlu0 %424, %v385
        %v426 = vpop.permute.xlu0 %425
        %429 = vset.pattern.permute.xlu0 40
        %430 = vperm.xlu0 %429, %v386
        %v431 = vpop.permute.xlu0 %430
        %434 = vset.pattern.permute.xlu0 40
        %435 = vperm.xlu0 %434, %v387
        %v436 = vpop.permute.xlu0 %435
        %vm438 = vcmask 326656
        %v439 = vsel %vm438, %v378, 0
        %v441 = vsel %vm438, %v379, 0
        %v443 = vsel %vm438, %v380, 0
        %v445 = vsel %vm438, %v381, 0
        %v447 = vsel %vm438, %v382, 0
        %v449 = vsel %vm438, %v383, 0
        %v451 = vsel %vm438, %v384, 0
        %v453 = vsel %vm438, %v385, 0
        %v455 = vsel %vm438, %v386, 0
        %v457 = vsel %vm438, %v387, 0
        %459 = vmatprep.subr.mxu0 0.0
        %460 = vmatpush1.msra.mxu0 0.0
        %461 = vmatprep.subr.mxu0 0.0
        %462 = vmatpush1.msra.mxu0 0.0
        %463 = vmatprep.subr.mxu0 0.0
        %464 = vmatpush1.msra.mxu0 0.0
        %465 = vmatprep.subr.mxu0 0.0
        %466 = vmatpush1.msra.mxu0 0.0
        %467 = vmatprep.subr.mxu0 0.0
        %468 = vmatpush1.msra.mxu0 0.0
        %469 = vmatprep.subr.mxu0 0.0
        %470 = vmatpush1.msra.mxu0 0.0
        %471 = vmatprep.subr.mxu0 0.0
        %472 = vmatpush1.msra.mxu0 0.0
        %473 = vmatprep.subr.mxu0 0.0
        %474 = vmatpush1.msra.mxu0 0.0
        %475 = vmatprep.subr.mxu0 0.0
        %476 = vmatpush1.msra.mxu0 0.0
        %477 = vmatprep.subr.mxu0 0.0
        %478 = vmatpush1.msra.mxu0 0.0
        %479 = vmatprep.subr.mxu0 0.0
        %480 = vmatpush1.msra.mxu0 0.0
        %481 = vmatprep.subr.mxu0 %v377
        %482 = vmatpush1.msra.mxu0 %v376
        %483 = vmatprep.subr.mxu0 %v375
        %484 = vmatpush1.msra.mxu0 %v374
        %485 = vmatprep.subr.mxu0 %v373
        %486 = vmatpush1.msra.mxu0 %v372
        %487 = vmatprep.subr.mxu0 %v371
        %488 = vmatpush1.msra.mxu0 %v370
        %489 = vmatprep.subr.mxu0 %v369
        %490 = vmatpush1.msra.mxu0 %v368
        %491 = vmatprep.subr.mxu0 0.0
        %492 = vmatpush2.msra.mxu0 0.0
        %493 = vmatprep.subr.mxu0 0.0
        %494 = vmatpush2.msra.mxu0 0.0
        %495 = vmatprep.subr.mxu0 0.0
        %496 = vmatpush2.msra.mxu0 0.0
        %497 = vmatprep.subr.mxu0 0.0
        %498 = vmatpush2.msra.mxu0 0.0
        %499 = vmatprep.subr.mxu0 0.0
        %500 = vmatpush2.msra.mxu0 0.0
        %501 = vmatprep.subr.mxu0 0.0
        %502 = vmatpush2.msra.mxu0 0.0
        %503 = vmatprep.subr.mxu0 0.0
        %504 = vmatpush2.msra.mxu0 0.0
        %505 = vmatprep.subr.mxu0 0.0
        %506 = vmatpush2.msra.mxu0 0.0
        %507 = vmatprep.subr.mxu0 0.0
        %508 = vmatpush2.msra.mxu0 0.0
        %509 = vmatprep.subr.mxu0 0.0
        %510 = vmatpush2.msra.mxu0 0.0
        %511 = vmatprep.subr.mxu0 0.0
        %512 = vmatpush2.msra.mxu0 0.0
        %513 = vmatprep.subr.mxu0 0.0
        %514 = vmatpush2.msra.mxu0 0.0
        %515 = vmatprep.subr.mxu0 0.0
        %516 = vmatpush2.msra.mxu0 0.0
        %517 = vmatprep.subr.mxu0 0.0
        %518 = vmatpush2.msra.mxu0 0.0
        %519 = vmatprep.subr.mxu0 0.0
        %520 = vmatpush2.msra.mxu0 0.0
        %521 = vmatprep.subr.mxu0 0.0
        %522 = vmatpush2.msra.mxu0 0.0
        %523 = vmatprep.mubr.f32.mxu0 0.0
        %524 = vmatmul.mubr.f32.gmra.mxu0 %v439
        %v525 = vpop.f32.mrf.mxu0
        %v526 = vadd.f32 %v391, %v525
        %v527 = vpop.f32.mrf.mxu0
        %v528 = vadd.f32 %v391, %v527
        %529 = vmatprep.mubr.f32.mxu0 0.0
        %530 = vmatmul.mubr.f32.gmra.mxu0 %v441
        %v531 = vpop.f32.mrf.mxu0
        %v532 = vadd.f32 %v396, %v531
        %v533 = vpop.f32.mrf.mxu0
        %v534 = vadd.f32 %v396, %v533
        %535 = vmatprep.mubr.f32.mxu0 0.0
        %536 = vmatmul.mubr.f32.gmra.mxu0 %v443
        %v537 = vpop.f32.mrf.mxu0
        %v538 = vadd.f32 %v401, %v537
        %v539 = vpop.f32.mrf.mxu0
        %v540 = vadd.f32 %v401, %v539
        %541 = vmatprep.mubr.f32.mxu0 0.0
        %542 = vmatmul.mubr.f32.gmra.mxu0 %v445
        %v543 = vpop.f32.mrf.mxu0
        %v544 = vadd.f32 %v406, %v543
        %v545 = vpop.f32.mrf.mxu0
        %v546 = vadd.f32 %v406, %v545
        %547 = vmatprep.mubr.f32.mxu0 0.0
        %548 = vmatmul.mubr.f32.gmra.mxu0 %v447
        %v549 = vpop.f32.mrf.mxu0
        %v550 = vadd.f32 %v411, %v549
        %v551 = vpop.f32.mrf.mxu0
        %v552 = vadd.f32 %v411, %v551
        %553 = vmatprep.mubr.f32.mxu0 0.0
        %554 = vmatmul.mubr.f32.gmra.mxu0 %v449
        %v555 = vpop.f32.mrf.mxu0
        %v556 = vadd.f32 %v416, %v555
        %v557 = vpop.f32.mrf.mxu0
        %v558 = vadd.f32 %v416, %v557
        %559 = vmatprep.mubr.f32.mxu0 0.0
        %560 = vmatmul.mubr.f32.gmra.mxu0 %v451
        %v561 = vpop.f32.mrf.mxu0
        %v562 = vadd.f32 %v421, %v561
        %v563 = vpop.f32.mrf.mxu0
        %v564 = vadd.f32 %v421, %v563
        %565 = vmatprep.mubr.f32.mxu0 0.0
        %566 = vmatmul.mubr.f32.gmra.mxu0 %v453
        %v567 = vpop.f32.mrf.mxu0
        %v568 = vadd.f32 %v426, %v567
        %v569 = vpop.f32.mrf.mxu0
        %v570 = vadd.f32 %v426, %v569
        %571 = vmatprep.mubr.f32.mxu0 0.0
        %572 = vmatmul.mubr.f32.gmra.mxu0 %v455
        %v573 = vpop.f32.mrf.mxu0
        %v574 = vadd.f32 %v431, %v573
        %v575 = vpop.f32.mrf.mxu0
        %v576 = vadd.f32 %v431, %v575
        %577 = vmatprep.mubr.f32.mxu0 0.0
        %578 = vmatmul.mubr.f32.gmra.mxu0 %v457
        %v579 = vpop.f32.mrf.mxu0
        %v580 = vadd.f32 %v436, %v579
        %v581 = vpop.f32.mrf.mxu0
        %v582 = vadd.f32 %v436, %v581
        %583 = vdwg.mxu0
        %v584 = vtanh.pop %v526
        %v585 = vtanh.pop %v528
        %v586 = vtanh.pop %v532
        %v587 = vtanh.pop %v534
        %v588 = vtanh.pop %v538
        %v589 = vtanh.pop %v540
        %v590 = vtanh.pop %v544
        %v591 = vtanh.pop %v546
        %v592 = vtanh.pop %v550
        %v593 = vtanh.pop %v552
        %v594 = vtanh.pop %v556
        %v595 = vtanh.pop %v558
        %v596 = vtanh.pop %v562
        %v597 = vtanh.pop %v564
        %v598 = vtanh.pop %v568
        %v599 = vtanh.pop %v570
        %v600 = vtanh.pop %v574
        %v601 = vtanh.pop %v576
        %v602 = vtanh.pop %v580
        %v603 = vtanh.pop %v582
        %v604 = vld [vmem:[%s2] sm:$0x1f]
        %v605 = vld [vmem:[%s2 + $0x8] sm:$0x1f]
        %v608 = vcombine.low %v604, %v605
        %v609 = vcombine.high %v604, %v605
        %v611 = vunpack.c.l.s4 1966171168
        %v612 = vunpack.c.0.s8 %v611
        %v613 = vlaneseq
        %v614 = vshrl.u32 %v613, 7
        %v615 = vsub.s32 %v612, %v614
        %v616 = vrot.slane %v608, %v615
        %v618 = vunpack.c.l.s4 1966171168
        %v619 = vunpack.c.0.s8 %v618
        %v620 = vlaneseq
        %v621 = vshrl.u32 %v620, 7
        %v622 = vsub.s32 %v619, %v621
        %v623 = vrot.slane %v609, %v622
        %v624 = vcombine.high %v616, %v616
        %v626 = vunpack.c.l.s4 1966171168
        %v627 = vunpack.c.0.s8 %v626
        %v628 = vlaneseq
        %v629 = vshrl.u32 %v628, 7
        %v630 = vsub.s32 %v627, %v629
        %v631 = vrot.slane %v616, %v630
        %v633 = vunpack.c.l.s4 1966171168
        %v634 = vunpack.c.0.s8 %v633
        %v635 = vlaneseq
        %v636 = vshrl.u32 %v635, 7
        %v637 = vsub.s32 %v634, %v636
        %v638 = vrot.slane %v623, %v637
        %v640 = vunpack.c.l.s4 1966171168
        %v641 = vunpack.c.0.s8 %v640
        %v642 = vlaneseq
        %v643 = vshrl.u32 %v642, 7
        %v644 = vsub.s32 %v641, %v643
        %v645 = vrot.slane %v624, %v644
        %v646 = vcombine.high %v631, %v631
        %v647 = vcombine.high %v645, %v645
        %v648 = vlaneseq
        %v649 = vshrl.u32 %v648, 7
        %v650 = vsub.s32 0, %v649
        %v651 = vrot.slane %v631, %v650
        %v652 = vlaneseq
        %v653 = vshrl.u32 %v652, 7
        %v654 = vsub.s32 1, %v653
        %v655 = vrot.slane %v631, %v654
        %v656 = vlaneseq
        %v657 = vshrl.u32 %v656, 7
        %v658 = vsub.s32 0, %v657
        %v659 = vrot.slane %v645, %v658
        %v660 = vlaneseq
        %v661 = vshrl.u32 %v660, 7
        %v662 = vsub.s32 1, %v661
        %v663 = vrot.slane %v645, %v662
        %v664 = vlaneseq
        %v665 = vshrl.u32 %v664, 7
        %v666 = vsub.s32 0, %v665
        %v667 = vrot.slane %v646, %v666
        %v668 = vlaneseq
        %v669 = vshrl.u32 %v668, 7
        %v670 = vsub.s32 1, %v669
        %v671 = vrot.slane %v646, %v670
        %v672 = vlaneseq
        %v673 = vshrl.u32 %v672, 7
        %v674 = vsub.s32 0, %v673
        %v675 = vrot.slane %v647, %v674
        %v676 = vlaneseq
        %v677 = vshrl.u32 %v676, 7
        %v678 = vsub.s32 1, %v677
        %v679 = vrot.slane %v647, %v678
        %v680 = vlaneseq
        %v681 = vshrl.u32 %v680, 7
        %v682 = vsub.s32 0, %v681
        %v683 = vrot.slane %v638, %v682
        %v684 = vlaneseq
        %v685 = vshrl.u32 %v684, 7
        %v686 = vsub.s32 1, %v685
        %v687 = vrot.slane %v638, %v686
        %v698 = vmul.f32 %v584, %v651
        %v699 = vmul.f32 %v585, %v655
        %v700 = vmul.f32 %v586, %v651
        %v701 = vmul.f32 %v587, %v655
        %v702 = vmul.f32 %v588, %v659
        %v703 = vmul.f32 %v589, %v663
        %v704 = vmul.f32 %v590, %v659
        %v705 = vmul.f32 %v591, %v663
        %v706 = vmul.f32 %v592, %v667
        %v707 = vmul.f32 %v593, %v671
        %v708 = vmul.f32 %v594, %v667
        %v709 = vmul.f32 %v595, %v671
        %v710 = vmul.f32 %v596, %v675
        %v711 = vmul.f32 %v597, %v679
        %v712 = vmul.f32 %v598, %v675
        %v713 = vmul.f32 %v599, %v679
        %v714 = vmul.f32 %v600, %v683
        %v715 = vmul.f32 %v601, %v687
        %v716 = vmul.f32 %v602, %v683
        %v717 = vmul.f32 %v603, %v687
        %v718 = vadd.f32 %v698, %v702
        %v719 = vadd.f32 %v718, %v706
        %v720 = vadd.f32 %v719, %v710
        %v721 = vadd.f32 %v720, %v714
        %v722 = vadd.f32 %v699, %v703
        %v723 = vadd.f32 %v722, %v707
        %v724 = vadd.f32 %v723, %v711
        %v725 = vadd.f32 %v724, %v715
        %v726 = vadd.f32 %v700, %v704
        %v727 = vadd.f32 %v726, %v708
        %v728 = vadd.f32 %v727, %v712
        %v729 = vadd.f32 %v728, %v716
        %v730 = vadd.f32 %v701, %v705
        %v731 = vadd.f32 %v730, %v709
        %v732 = vadd.f32 %v731, %v713
        %v733 = vadd.f32 %v732, %v717
        %734 = vxpose.xlu0.b32.start [1/16] %v721, 128
        %735 = vxpose.xlu0.b32.cont [2/16] %v729, 128
        %736 = vxpose.xlu0.b32.cont [3/16] 0.0, 128
        %737 = vxpose.xlu0.b32.cont [4/16] 0.0, 128
        %738 = vxpose.xlu0.b32.cont [5/16] 0.0, 128
        %739 = vxpose.xlu0.b32.cont [6/16] 0.0, 128
        %740 = vxpose.xlu0.b32.cont [7/16] 0.0, 128
        %741 = vxpose.xlu0.b32.cont [8/16] 0.0, 128
        %742 = vxpose.xlu0.b32.cont [9/16] 0.0, 128
        %743 = vxpose.xlu0.b32.cont [10/16] 0.0, 128
        %744 = vxpose.xlu0.b32.cont [11/16] 0.0, 128
        %745 = vxpose.xlu0.b32.cont [12/16] 0.0, 128
        %746 = vxpose.xlu0.b32.cont [13/16] 0.0, 128
        %747 = vxpose.xlu0.b32.cont [14/16] 0.0, 128
        %748 = vxpose.xlu0.b32.cont [15/16] 0.0, 128
        %749 = vxpose.xlu0.b32.end [16/16] 0.0, 128
        %v750 = vpop.trf.xlu0
        %v751 = vpop.trf.xlu0
        %v752 = vpop.trf.xlu0
        %v753 = vpop.trf.xlu0
        %v754 = vpop.trf.xlu0
        %v755 = vpop.trf.xlu0
        %v756 = vpop.trf.xlu0
        %v757 = vpop.trf.xlu0
        %v758 = vpop.trf.xlu0
        %v759 = vpop.trf.xlu0
        %v760 = vpop.trf.xlu0
        %v761 = vpop.trf.xlu0
        %v762 = vpop.trf.xlu0
        %v763 = vpop.trf.xlu0
        %v764 = vpop.trf.xlu0
        %v765 = vpop.trf.xlu0
        %766 = vxpose.xlu0.b32.start [1/16] %v725, 128
        %767 = vxpose.xlu0.b32.cont [2/16] %v733, 128
        %768 = vxpose.xlu0.b32.cont [3/16] 0.0, 128
        %769 = vxpose.xlu0.b32.cont [4/16] 0.0, 128
        %770 = vxpose.xlu0.b32.cont [5/16] 0.0, 128
        %771 = vxpose.xlu0.b32.cont [6/16] 0.0, 128
        %772 = vxpose.xlu0.b32.cont [7/16] 0.0, 128
        %773 = vxpose.xlu0.b32.cont [8/16] 0.0, 128
        %774 = vxpose.xlu0.b32.cont [9/16] 0.0, 128
        %775 = vxpose.xlu0.b32.cont [10/16] 0.0, 128
        %776 = vxpose.xlu0.b32.cont [11/16] 0.0, 128
        %777 = vxpose.xlu0.b32.cont [12/16] 0.0, 128
        %778 = vxpose.xlu0.b32.cont [13/16] 0.0, 128
        %779 = vxpose.xlu0.b32.cont [14/16] 0.0, 128
        %780 = vxpose.xlu0.b32.cont [15/16] 0.0, 128
        %781 = vxpose.xlu0.b32.end [16/16] 0.0, 128
        %v782 = vpop.trf.xlu0
        %v783 = vpop.trf.xlu0
        %v784 = vpop.trf.xlu0
        %v785 = vpop.trf.xlu0
        %v786 = vpop.trf.xlu0
        %v787 = vpop.trf.xlu0
        %v788 = vpop.trf.xlu0
        %v789 = vpop.trf.xlu0
        %v790 = vpop.trf.xlu0
        %v791 = vpop.trf.xlu0
        %v792 = vpop.trf.xlu0
        %v793 = vpop.trf.xlu0
        %v794 = vpop.trf.xlu0
        %v795 = vpop.trf.xlu0
        %v796 = vpop.trf.xlu0
        %v797 = vpop.trf.xlu0
        %v798 = vld [vmem:[%s280] sm:$0xff]
        %v799 = vld [vmem:[%s280 + $0x8] sm:$0xff]
        %v800 = vld [vmem:[%s280 + $0x10] sm:$0xff]
        %v801 = vld [vmem:[%s280 + $0x18] sm:$0xff]
        %v802 = vld [vmem:[%s280 + $0x20] sm:$0xff]
        %v803 = vld [vmem:[%s280 + $0x28] sm:$0xff]
        %v804 = vld [vmem:[%s280 + $0x30] sm:$0xff]
        %v805 = vld [vmem:[%s280 + $0x38] sm:$0xff]
        %v806 = vld [vmem:[%s280 + $0x40] sm:$0xff]
        %v807 = vld [vmem:[%s280 + $0x48] sm:$0xff]
        %v808 = vld [vmem:[%s280 + $0x50] sm:$0xff]
        %v809 = vld [vmem:[%s280 + $0x58] sm:$0xff]
        %v810 = vld [vmem:[%s280 + $0x60] sm:$0xff]
        %v811 = vld [vmem:[%s280 + $0x68] sm:$0xff]
        %v812 = vld [vmem:[%s280 + $0x70] sm:$0xff]
        %v813 = vld [vmem:[%s280 + $0x78] sm:$0xff]
        %v814 = vld [vmem:[%s280 + $0x80] sm:$0xff]
        %v815 = vld [vmem:[%s280 + $0x88] sm:$0xff]
        %v816 = vld [vmem:[%s280 + $0x90] sm:$0xff]
        %v817 = vld [vmem:[%s280 + $0x98] sm:$0xff]
        %v818 = vld [vmem:[%s280 + $0xa0] sm:$0xff]
        %v819 = vld [vmem:[%s280 + $0xa8] sm:$0xff]
        %v820 = vld [vmem:[%s280 + $0xb0] sm:$0xff]
        %v821 = vld [vmem:[%s280 + $0xb8] sm:$0xff]
        %v822 = vld [vmem:[%s280 + $0xc0] sm:$0xff]
        %v823 = vld [vmem:[%s280 + $0xc8] sm:$0xff]
        %v824 = vld [vmem:[%s280 + $0xd0] sm:$0xff]
        %v825 = vld [vmem:[%s280 + $0xd8] sm:$0xff]
        %v826 = vld [vmem:[%s280 + $0xe0] sm:$0xff]
        %v827 = vld [vmem:[%s280 + $0xe8] sm:$0xff]
        %v828 = vld [vmem:[%s280 + $0xf0] sm:$0xff]
        %v829 = vld [vmem:[%s280 + $0xf8] sm:$0xff]
        %831 = vset.pattern.permute.xlu0 0
        %832 = vperm.xlu0 %831, %v798
        %v833 = vpop.permute.xlu0 %832
        %836 = vset.pattern.permute.xlu0 0
        %837 = vperm.xlu0 %836, %v799
        %v838 = vpop.permute.xlu0 %837
        %841 = vset.pattern.permute.xlu0 0
        %842 = vperm.xlu0 %841, %v800
        %v843 = vpop.permute.xlu0 %842
        %846 = vset.pattern.permute.xlu0 0
        %847 = vperm.xlu0 %846, %v801
        %v848 = vpop.permute.xlu0 %847
        %851 = vset.pattern.permute.xlu0 0
        %852 = vperm.xlu0 %851, %v802
        %v853 = vpop.permute.xlu0 %852
        %856 = vset.pattern.permute.xlu0 0
        %857 = vperm.xlu0 %856, %v803
        %v858 = vpop.permute.xlu0 %857
        %861 = vset.pattern.permute.xlu0 0
        %862 = vperm.xlu0 %861, %v804
        %v863 = vpop.permute.xlu0 %862
        %866 = vset.pattern.permute.xlu0 0
        %867 = vperm.xlu0 %866, %v805
        %v868 = vpop.permute.xlu0 %867
        %871 = vset.pattern.permute.xlu0 0
        %872 = vperm.xlu0 %871, %v806
        %v873 = vpop.permute.xlu0 %872
        %876 = vset.pattern.permute.xlu0 0
        %877 = vperm.xlu0 %876, %v807
        %v878 = vpop.permute.xlu0 %877
        %881 = vset.pattern.permute.xlu0 0
        %882 = vperm.xlu0 %881, %v808
        %v883 = vpop.permute.xlu0 %882
        %886 = vset.pattern.permute.xlu0 0
        %887 = vperm.xlu0 %886, %v809
        %v888 = vpop.permute.xlu0 %887
        %891 = vset.pattern.permute.xlu0 0
        %892 = vperm.xlu0 %891, %v810
        %v893 = vpop.permute.xlu0 %892
        %896 = vset.pattern.permute.xlu0 0
        %897 = vperm.xlu0 %896, %v811
        %v898 = vpop.permute.xlu0 %897
        %901 = vset.pattern.permute.xlu0 0
        %902 = vperm.xlu0 %901, %v812
        %v903 = vpop.permute.xlu0 %902
        %906 = vset.pattern.permute.xlu0 0
        %907 = vperm.xlu0 %906, %v813
        %v908 = vpop.permute.xlu0 %907
        %911 = vset.pattern.permute.xlu0 0
        %912 = vperm.xlu0 %911, %v814
        %v913 = vpop.permute.xlu0 %912
        %916 = vset.pattern.permute.xlu0 0
        %917 = vperm.xlu0 %916, %v815
        %v918 = vpop.permute.xlu0 %917
        %921 = vset.pattern.permute.xlu0 0
        %922 = vperm.xlu0 %921, %v816
        %v923 = vpop.permute.xlu0 %922
        %926 = vset.pattern.permute.xlu0 0
        %927 = vperm.xlu0 %926, %v817
        %v928 = vpop.permute.xlu0 %927
        %931 = vset.pattern.permute.xlu0 0
        %932 = vperm.xlu0 %931, %v818
        %v933 = vpop.permute.xlu0 %932
        %936 = vset.pattern.permute.xlu0 0
        %937 = vperm.xlu0 %936, %v819
        %v938 = vpop.permute.xlu0 %937
        %941 = vset.pattern.permute.xlu0 0
        %942 = vperm.xlu0 %941, %v820
        %v943 = vpop.permute.xlu0 %942
        %946 = vset.pattern.permute.xlu0 0
        %947 = vperm.xlu0 %946, %v821
        %v948 = vpop.permute.xlu0 %947
        %951 = vset.pattern.permute.xlu0 0
        %952 = vperm.xlu0 %951, %v822
        %v953 = vpop.permute.xlu0 %952
        %956 = vset.pattern.permute.xlu0 0
        %957 = vperm.xlu0 %956, %v823
        %v958 = vpop.permute.xlu0 %957
        %961 = vset.pattern.permute.xlu0 0
        %962 = vperm.xlu0 %961, %v824
        %v963 = vpop.permute.xlu0 %962
        %966 = vset.pattern.permute.xlu0 0
        %967 = vperm.xlu0 %966, %v825
        %v968 = vpop.permute.xlu0 %967
        %971 = vset.pattern.permute.xlu0 0
        %972 = vperm.xlu0 %971, %v826
        %v973 = vpop.permute.xlu0 %972
        %976 = vset.pattern.permute.xlu0 0
        %977 = vperm.xlu0 %976, %v827
        %v978 = vpop.permute.xlu0 %977
        %981 = vset.pattern.permute.xlu0 0
        %982 = vperm.xlu0 %981, %v828
        %v983 = vpop.permute.xlu0 %982
        %986 = vset.pattern.permute.xlu0 0
        %987 = vperm.xlu0 %986, %v829
        %v988 = vpop.permute.xlu0 %987
        %v990 = vmul.f32 %v750, %v833
        %v991 = vmul.f32 %v751, %v838
        %v992 = vmul.f32 %v752, %v843
        %v993 = vmul.f32 %v753, %v848
        %v994 = vmul.f32 %v754, %v853
        %v995 = vmul.f32 %v755, %v858
        %v996 = vmul.f32 %v756, %v863
        %v997 = vmul.f32 %v757, %v868
        %v998 = vmul.f32 %v758, %v873
        %v999 = vmul.f32 %v759, %v878
        %v1000 = vmul.f32 %v760, %v883
        %v1001 = vmul.f32 %v761, %v888
        %v1002 = vmul.f32 %v762, %v893
        %v1003 = vmul.f32 %v763, %v898
        %v1004 = vmul.f32 %v764, %v903
        %v1005 = vmul.f32 %v765, %v908
        %v1006 = vmul.f32 %v782, %v913
        %v1007 = vmul.f32 %v783, %v918
        %v1008 = vmul.f32 %v784, %v923
        %v1009 = vmul.f32 %v785, %v928
        %v1010 = vmul.f32 %v786, %v933
        %v1011 = vmul.f32 %v787, %v938
        %v1012 = vmul.f32 %v788, %v943
        %v1013 = vmul.f32 %v789, %v948
        %v1014 = vmul.f32 %v790, %v953
        %v1015 = vmul.f32 %v791, %v958
        %v1016 = vmul.f32 %v792, %v963
        %v1017 = vmul.f32 %v793, %v968
        %v1018 = vmul.f32 %v794, %v973
        %v1019 = vmul.f32 %v795, %v978
        %v1020 = vmul.f32 %v796, %v983
        %v1021 = vmul.f32 %v797, %v988
        %vm1022 = vcmask 130048
        %v1023 = vsel %vm1022, %v990, 0.0
        %v1024 = vsel %vm1022, %v991, 0.0
        %v1025 = vadd.f32 %v1023, %v1024
        %v1026 = vrot.slane %v1025, 4
        %v1027 = vadd.f32 %v1025, %v1026
        %v1028 = vrot.slane %v1027, 2
        %v1029 = vadd.f32 %v1027, %v1028
        %v1030 = vrot.slane %v1029, 1
        %v1031 = vadd.f32 %v1029, %v1030
        %v1032 = vsel %vm1022, %v992, 0.0
        %v1033 = vsel %vm1022, %v993, 0.0
        %v1034 = vadd.f32 %v1032, %v1033
        %v1035 = vrot.slane %v1034, 4
        %v1036 = vadd.f32 %v1034, %v1035
        %v1037 = vrot.slane %v1036, 2
        %v1038 = vadd.f32 %v1036, %v1037
        %v1039 = vrot.slane %v1038, 1
        %v1040 = vadd.f32 %v1038, %v1039
        %v1041 = vsel %vm1022, %v994, 0.0
        %v1042 = vsel %vm1022, %v995, 0.0
        %v1043 = vadd.f32 %v1041, %v1042
        %v1044 = vrot.slane %v1043, 4
        %v1045 = vadd.f32 %v1043, %v1044
        %v1046 = vrot.slane %v1045, 2
        %v1047 = vadd.f32 %v1045, %v1046
        %v1048 = vrot.slane %v1047, 1
        %v1049 = vadd.f32 %v1047, %v1048
        %v1050 = vsel %vm1022, %v996, 0.0
        %v1051 = vsel %vm1022, %v997, 0.0
        %v1052 = vadd.f32 %v1050, %v1051
        %v1053 = vrot.slane %v1052, 4
        %v1054 = vadd.f32 %v1052, %v1053
        %v1055 = vrot.slane %v1054, 2
        %v1056 = vadd.f32 %v1054, %v1055
        %v1057 = vrot.slane %v1056, 1
        %v1058 = vadd.f32 %v1056, %v1057
        %v1059 = vsel %vm1022, %v998, 0.0
        %v1060 = vsel %vm1022, %v999, 0.0
        %v1061 = vadd.f32 %v1059, %v1060
        %v1062 = vrot.slane %v1061, 4
        %v1063 = vadd.f32 %v1061, %v1062
        %v1064 = vrot.slane %v1063, 2
        %v1065 = vadd.f32 %v1063, %v1064
        %v1066 = vrot.slane %v1065, 1
        %v1067 = vadd.f32 %v1065, %v1066
        %v1068 = vsel %vm1022, %v1000, 0.0
        %v1069 = vsel %vm1022, %v1001, 0.0
        %v1070 = vadd.f32 %v1068, %v1069
        %v1071 = vrot.slane %v1070, 4
        %v1072 = vadd.f32 %v1070, %v1071
        %v1073 = vrot.slane %v1072, 2
        %v1074 = vadd.f32 %v1072, %v1073
        %v1075 = vrot.slane %v1074, 1
        %v1076 = vadd.f32 %v1074, %v1075
        %v1077 = vsel %vm1022, %v1002, 0.0
        %v1078 = vsel %vm1022, %v1003, 0.0
        %v1079 = vadd.f32 %v1077, %v1078
        %v1080 = vrot.slane %v1079, 4
        %v1081 = vadd.f32 %v1079, %v1080
        %v1082 = vrot.slane %v1081, 2
        %v1083 = vadd.f32 %v1081, %v1082
        %v1084 = vrot.slane %v1083, 1
        %v1085 = vadd.f32 %v1083, %v1084
        %v1086 = vsel %vm1022, %v1004, 0.0
        %v1087 = vsel %vm1022, %v1005, 0.0
        %v1088 = vadd.f32 %v1086, %v1087
        %v1089 = vrot.slane %v1088, 4
        %v1090 = vadd.f32 %v1088, %v1089
        %v1091 = vrot.slane %v1090, 2
        %v1092 = vadd.f32 %v1090, %v1091
        %v1093 = vrot.slane %v1092, 1
        %v1094 = vadd.f32 %v1092, %v1093
        %v1095 = vsel %vm1022, %v1006, 0.0
        %v1096 = vsel %vm1022, %v1007, 0.0
        %v1097 = vadd.f32 %v1095, %v1096
        %v1098 = vrot.slane %v1097, 4
        %v1099 = vadd.f32 %v1097, %v1098
        %v1100 = vrot.slane %v1099, 2
        %v1101 = vadd.f32 %v1099, %v1100
        %v1102 = vrot.slane %v1101, 1
        %v1103 = vadd.f32 %v1101, %v1102
        %v1104 = vsel %vm1022, %v1008, 0.0
        %v1105 = vsel %vm1022, %v1009, 0.0
        %v1106 = vadd.f32 %v1104, %v1105
        %v1107 = vrot.slane %v1106, 4
        %v1108 = vadd.f32 %v1106, %v1107
        %v1109 = vrot.slane %v1108, 2
        %v1110 = vadd.f32 %v1108, %v1109
        %v1111 = vrot.slane %v1110, 1
        %v1112 = vadd.f32 %v1110, %v1111
        %v1113 = vsel %vm1022, %v1010, 0.0
        %v1114 = vsel %vm1022, %v1011, 0.0
        %v1115 = vadd.f32 %v1113, %v1114
        %v1116 = vrot.slane %v1115, 4
        %v1117 = vadd.f32 %v1115, %v1116
        %v1118 = vrot.slane %v1117, 2
        %v1119 = vadd.f32 %v1117, %v1118
        %v1120 = vrot.slane %v1119, 1
        %v1121 = vadd.f32 %v1119, %v1120
        %v1122 = vsel %vm1022, %v1012, 0.0
        %v1123 = vsel %vm1022, %v1013, 0.0
        %v1124 = vadd.f32 %v1122, %v1123
        %v1125 = vrot.slane %v1124, 4
        %v1126 = vadd.f32 %v1124, %v1125
        %v1127 = vrot.slane %v1126, 2
        %v1128 = vadd.f32 %v1126, %v1127
        %v1129 = vrot.slane %v1128, 1
        %v1130 = vadd.f32 %v1128, %v1129
        %v1131 = vsel %vm1022, %v1014, 0.0
        %v1132 = vsel %vm1022, %v1015, 0.0
        %v1133 = vadd.f32 %v1131, %v1132
        %v1134 = vrot.slane %v1133, 4
        %v1135 = vadd.f32 %v1133, %v1134
        %v1136 = vrot.slane %v1135, 2
        %v1137 = vadd.f32 %v1135, %v1136
        %v1138 = vrot.slane %v1137, 1
        %v1139 = vadd.f32 %v1137, %v1138
        %v1140 = vsel %vm1022, %v1016, 0.0
        %v1141 = vsel %vm1022, %v1017, 0.0
        %v1142 = vadd.f32 %v1140, %v1141
        %v1143 = vrot.slane %v1142, 4
        %v1144 = vadd.f32 %v1142, %v1143
        %v1145 = vrot.slane %v1144, 2
        %v1146 = vadd.f32 %v1144, %v1145
        %v1147 = vrot.slane %v1146, 1
        %v1148 = vadd.f32 %v1146, %v1147
        %v1149 = vsel %vm1022, %v1018, 0.0
        %v1150 = vsel %vm1022, %v1019, 0.0
        %v1151 = vadd.f32 %v1149, %v1150
        %v1152 = vrot.slane %v1151, 4
        %v1153 = vadd.f32 %v1151, %v1152
        %v1154 = vrot.slane %v1153, 2
        %v1155 = vadd.f32 %v1153, %v1154
        %v1156 = vrot.slane %v1155, 1
        %v1157 = vadd.f32 %v1155, %v1156
        %v1158 = vsel %vm1022, %v1020, 0.0
        %v1159 = vsel %vm1022, %v1021, 0.0
        %v1160 = vadd.f32 %v1158, %v1159
        %v1161 = vrot.slane %v1160, 4
        %v1162 = vadd.f32 %v1160, %v1161
        %v1163 = vrot.slane %v1162, 2
        %v1164 = vadd.f32 %v1162, %v1163
        %v1165 = vrot.slane %v1164, 1
        %v1166 = vadd.f32 %v1164, %v1165
        %1167 = vset.pattern.permute.xlu0 1
        %1168 = vperm.xlu0 %1167, %v798
        %v1169 = vpop.permute.xlu0 %1168
        %1171 = vset.pattern.permute.xlu0 1
        %1172 = vperm.xlu0 %1171, %v799
        %v1173 = vpop.permute.xlu0 %1172
        %1175 = vset.pattern.permute.xlu0 1
        %1176 = vperm.xlu0 %1175, %v800
        %v1177 = vpop.permute.xlu0 %1176
        %1179 = vset.pattern.permute.xlu0 1
        %1180 = vperm.xlu0 %1179, %v801
        %v1181 = vpop.permute.xlu0 %1180
        %1183 = vset.pattern.permute.xlu0 1
        %1184 = vperm.xlu0 %1183, %v802
        %v1185 = vpop.permute.xlu0 %1184
        %1187 = vset.pattern.permute.xlu0 1
        %1188 = vperm.xlu0 %1187, %v803
        %v1189 = vpop.permute.xlu0 %1188
        %1191 = vset.pattern.permute.xlu0 1
        %1192 = vperm.xlu0 %1191, %v804
        %v1193 = vpop.permute.xlu0 %1192
        %1195 = vset.pattern.permute.xlu0 1
        %1196 = vperm.xlu0 %1195, %v805
        %v1197 = vpop.permute.xlu0 %1196
        %1199 = vset.pattern.permute.xlu0 1
        %1200 = vperm.xlu0 %1199, %v806
        %v1201 = vpop.permute.xlu0 %1200
        %1203 = vset.pattern.permute.xlu0 1
        %1204 = vperm.xlu0 %1203, %v807
        %v1205 = vpop.permute.xlu0 %1204
        %1207 = vset.pattern.permute.xlu0 1
        %1208 = vperm.xlu0 %1207, %v808
        %v1209 = vpop.permute.xlu0 %1208
        %1211 = vset.pattern.permute.xlu0 1
        %1212 = vperm.xlu0 %1211, %v809
        %v1213 = vpop.permute.xlu0 %1212
        %1215 = vset.pattern.permute.xlu0 1
        %1216 = vperm.xlu0 %1215, %v810
        %v1217 = vpop.permute.xlu0 %1216
        %1219 = vset.pattern.permute.xlu0 1
        %1220 = vperm.xlu0 %1219, %v811
        %v1221 = vpop.permute.xlu0 %1220
        %1223 = vset.pattern.permute.xlu0 1
        %1224 = vperm.xlu0 %1223, %v812
        %v1225 = vpop.permute.xlu0 %1224
        %1227 = vset.pattern.permute.xlu0 1
        %1228 = vperm.xlu0 %1227, %v813
        %v1229 = vpop.permute.xlu0 %1228
        %1231 = vset.pattern.permute.xlu0 1
        %1232 = vperm.xlu0 %1231, %v814
        %v1233 = vpop.permute.xlu0 %1232
        %1235 = vset.pattern.permute.xlu0 1
        %1236 = vperm.xlu0 %1235, %v815
        %v1237 = vpop.permute.xlu0 %1236
        %1239 = vset.pattern.permute.xlu0 1
        %1240 = vperm.xlu0 %1239, %v816
        %v1241 = vpop.permute.xlu0 %1240
        %1243 = vset.pattern.permute.xlu0 1
        %1244 = vperm.xlu0 %1243, %v817
        %v1245 = vpop.permute.xlu0 %1244
        %1247 = vset.pattern.permute.xlu0 1
        %1248 = vperm.xlu0 %1247, %v818
        %v1249 = vpop.permute.xlu0 %1248
        %1251 = vset.pattern.permute.xlu0 1
        %1252 = vperm.xlu0 %1251, %v819
        %v1253 = vpop.permute.xlu0 %1252
        %1255 = vset.pattern.permute.xlu0 1
        %1256 = vperm.xlu0 %1255, %v820
        %v1257 = vpop.permute.xlu0 %1256
        %1259 = vset.pattern.permute.xlu0 1
        %1260 = vperm.xlu0 %1259, %v821
        %v1261 = vpop.permute.xlu0 %1260
        %1263 = vset.pattern.permute.xlu0 1
        %1264 = vperm.xlu0 %1263, %v822
        %v1265 = vpop.permute.xlu0 %1264
        %1267 = vset.pattern.permute.xlu0 1
        %1268 = vperm.xlu0 %1267, %v823
        %v1269 = vpop.permute.xlu0 %1268
        %1271 = vset.pattern.permute.xlu0 1
        %1272 = vperm.xlu0 %1271, %v824
        %v1273 = vpop.permute.xlu0 %1272
        %1275 = vset.pattern.permute.xlu0 1
        %1276 = vperm.xlu0 %1275, %v825
        %v1277 = vpop.permute.xlu0 %1276
        %1279 = vset.pattern.permute.xlu0 1
        %1280 = vperm.xlu0 %1279, %v826
        %v1281 = vpop.permute.xlu0 %1280
        %1283 = vset.pattern.permute.xlu0 1
        %1284 = vperm.xlu0 %1283, %v827
        %v1285 = vpop.permute.xlu0 %1284
        %1287 = vset.pattern.permute.xlu0 1
        %1288 = vperm.xlu0 %1287, %v828
        %v1289 = vpop.permute.xlu0 %1288
        %1291 = vset.pattern.permute.xlu0 1
        %1292 = vperm.xlu0 %1291, %v829
        %v1293 = vpop.permute.xlu0 %1292
        %v1295 = vmul.f32 %v750, %v1169
        %v1296 = vmul.f32 %v751, %v1173
        %v1297 = vmul.f32 %v752, %v1177
        %v1298 = vmul.f32 %v753, %v1181
        %v1299 = vmul.f32 %v754, %v1185
        %v1300 = vmul.f32 %v755, %v1189
        %v1301 = vmul.f32 %v756, %v1193
        %v1302 = vmul.f32 %v757, %v1197
        %v1303 = vmul.f32 %v758, %v1201
        %v1304 = vmul.f32 %v759, %v1205
        %v1305 = vmul.f32 %v760, %v1209
        %v1306 = vmul.f32 %v761, %v1213
        %v1307 = vmul.f32 %v762, %v1217
        %v1308 = vmul.f32 %v763, %v1221
        %v1309 = vmul.f32 %v764, %v1225
        %v1310 = vmul.f32 %v765, %v1229
        %v1311 = vmul.f32 %v782, %v1233
        %v1312 = vmul.f32 %v783, %v1237
        %v1313 = vmul.f32 %v784, %v1241
        %v1314 = vmul.f32 %v785, %v1245
        %v1315 = vmul.f32 %v786, %v1249
        %v1316 = vmul.f32 %v787, %v1253
        %v1317 = vmul.f32 %v788, %v1257
        %v1318 = vmul.f32 %v789, %v1261
        %v1319 = vmul.f32 %v790, %v1265
        %v1320 = vmul.f32 %v791, %v1269
        %v1321 = vmul.f32 %v792, %v1273
        %v1322 = vmul.f32 %v793, %v1277
        %v1323 = vmul.f32 %v794, %v1281
        %v1324 = vmul.f32 %v795, %v1285
        %v1325 = vmul.f32 %v796, %v1289
        %v1326 = vmul.f32 %v797, %v1293
        %v1327 = vsel %vm1022, %v1295, 0.0
        %v1328 = vsel %vm1022, %v1296, 0.0
        %v1329 = vadd.f32 %v1327, %v1328
        %v1330 = vrot.slane %v1329, 4
        %v1331 = vadd.f32 %v1329, %v1330
        %v1332 = vrot.slane %v1331, 2
        %v1333 = vadd.f32 %v1331, %v1332
        %v1334 = vrot.slane %v1333, 1
        %v1335 = vadd.f32 %v1333, %v1334
        %v1336 = vsel %vm1022, %v1297, 0.0
        %v1337 = vsel %vm1022, %v1298, 0.0
        %v1338 = vadd.f32 %v1336, %v1337
        %v1339 = vrot.slane %v1338, 4
        %v1340 = vadd.f32 %v1338, %v1339
        %v1341 = vrot.slane %v1340, 2
        %v1342 = vadd.f32 %v1340, %v1341
        %v1343 = vrot.slane %v1342, 1
        %v1344 = vadd.f32 %v1342, %v1343
        %v1345 = vsel %vm1022, %v1299, 0.0
        %v1346 = vsel %vm1022, %v1300, 0.0
        %v1347 = vadd.f32 %v1345, %v1346
        %v1348 = vrot.slane %v1347, 4
        %v1349 = vadd.f32 %v1347, %v1348
        %v1350 = vrot.slane %v1349, 2
        %v1351 = vadd.f32 %v1349, %v1350
        %v1352 = vrot.slane %v1351, 1
        %v1353 = vadd.f32 %v1351, %v1352
        %v1354 = vsel %vm1022, %v1301, 0.0
        %v1355 = vsel %vm1022, %v1302, 0.0
        %v1356 = vadd.f32 %v1354, %v1355
        %v1357 = vrot.slane %v1356, 4
        %v1358 = vadd.f32 %v1356, %v1357
        %v1359 = vrot.slane %v1358, 2
        %v1360 = vadd.f32 %v1358, %v1359
        %v1361 = vrot.slane %v1360, 1
        %v1362 = vadd.f32 %v1360, %v1361
        %v1363 = vsel %vm1022, %v1303, 0.0
        %v1364 = vsel %vm1022, %v1304, 0.0
        %v1365 = vadd.f32 %v1363, %v1364
        %v1366 = vrot.slane %v1365, 4
        %v1367 = vadd.f32 %v1365, %v1366
        %v1368 = vrot.slane %v1367, 2
        %v1369 = vadd.f32 %v1367, %v1368
        %v1370 = vrot.slane %v1369, 1
        %v1371 = vadd.f32 %v1369, %v1370
        %v1372 = vsel %vm1022, %v1305, 0.0
        %v1373 = vsel %vm1022, %v1306, 0.0
        %v1374 = vadd.f32 %v1372, %v1373
        %v1375 = vrot.slane %v1374, 4
        %v1376 = vadd.f32 %v1374, %v1375
        %v1377 = vrot.slane %v1376, 2
        %v1378 = vadd.f32 %v1376, %v1377
        %v1379 = vrot.slane %v1378, 1
        %v1380 = vadd.f32 %v1378, %v1379
        %v1381 = vsel %vm1022, %v1307, 0.0
        %v1382 = vsel %vm1022, %v1308, 0.0
        %v1383 = vadd.f32 %v1381, %v1382
        %v1384 = vrot.slane %v1383, 4
        %v1385 = vadd.f32 %v1383, %v1384
        %v1386 = vrot.slane %v1385, 2
        %v1387 = vadd.f32 %v1385, %v1386
        %v1388 = vrot.slane %v1387, 1
        %v1389 = vadd.f32 %v1387, %v1388
        %v1390 = vsel %vm1022, %v1309, 0.0
        %v1391 = vsel %vm1022, %v1310, 0.0
        %v1392 = vadd.f32 %v1390, %v1391
        %v1393 = vrot.slane %v1392, 4
        %v1394 = vadd.f32 %v1392, %v1393
        %v1395 = vrot.slane %v1394, 2
        %v1396 = vadd.f32 %v1394, %v1395
        %v1397 = vrot.slane %v1396, 1
        %v1398 = vadd.f32 %v1396, %v1397
        %v1399 = vsel %vm1022, %v1311, 0.0
        %v1400 = vsel %vm1022, %v1312, 0.0
        %v1401 = vadd.f32 %v1399, %v1400
        %v1402 = vrot.slane %v1401, 4
        %v1403 = vadd.f32 %v1401, %v1402
        %v1404 = vrot.slane %v1403, 2
        %v1405 = vadd.f32 %v1403, %v1404
        %v1406 = vrot.slane %v1405, 1
        %v1407 = vadd.f32 %v1405, %v1406
        %v1408 = vsel %vm1022, %v1313, 0.0
        %v1409 = vsel %vm1022, %v1314, 0.0
        %v1410 = vadd.f32 %v1408, %v1409
        %v1411 = vrot.slane %v1410, 4
        %v1412 = vadd.f32 %v1410, %v1411
        %v1413 = vrot.slane %v1412, 2
        %v1414 = vadd.f32 %v1412, %v1413
        %v1415 = vrot.slane %v1414, 1
        %v1416 = vadd.f32 %v1414, %v1415
        %v1417 = vsel %vm1022, %v1315, 0.0
        %v1418 = vsel %vm1022, %v1316, 0.0
        %v1419 = vadd.f32 %v1417, %v1418
        %v1420 = vrot.slane %v1419, 4
        %v1421 = vadd.f32 %v1419, %v1420
        %v1422 = vrot.slane %v1421, 2
        %v1423 = vadd.f32 %v1421, %v1422
        %v1424 = vrot.slane %v1423, 1
        %v1425 = vadd.f32 %v1423, %v1424
        %v1426 = vsel %vm1022, %v1317, 0.0
        %v1427 = vsel %vm1022, %v1318, 0.0
        %v1428 = vadd.f32 %v1426, %v1427
        %v1429 = vrot.slane %v1428, 4
        %v1430 = vadd.f32 %v1428, %v1429
        %v1431 = vrot.slane %v1430, 2
        %v1432 = vadd.f32 %v1430, %v1431
        %v1433 = vrot.slane %v1432, 1
        %v1434 = vadd.f32 %v1432, %v1433
        %v1435 = vsel %vm1022, %v1319, 0.0
        %v1436 = vsel %vm1022, %v1320, 0.0
        %v1437 = vadd.f32 %v1435, %v1436
        %v1438 = vrot.slane %v1437, 4
        %v1439 = vadd.f32 %v1437, %v1438
        %v1440 = vrot.slane %v1439, 2
        %v1441 = vadd.f32 %v1439, %v1440
        %v1442 = vrot.slane %v1441, 1
        %v1443 = vadd.f32 %v1441, %v1442
        %v1444 = vsel %vm1022, %v1321, 0.0
        %v1445 = vsel %vm1022, %v1322, 0.0
        %v1446 = vadd.f32 %v1444, %v1445
        %v1447 = vrot.slane %v1446, 4
        %v1448 = vadd.f32 %v1446, %v1447
        %v1449 = vrot.slane %v1448, 2
        %v1450 = vadd.f32 %v1448, %v1449
        %v1451 = vrot.slane %v1450, 1
        %v1452 = vadd.f32 %v1450, %v1451
        %v1453 = vsel %vm1022, %v1323, 0.0
        %v1454 = vsel %vm1022, %v1324, 0.0
        %v1455 = vadd.f32 %v1453, %v1454
        %v1456 = vrot.slane %v1455, 4
        %v1457 = vadd.f32 %v1455, %v1456
        %v1458 = vrot.slane %v1457, 2
        %v1459 = vadd.f32 %v1457, %v1458
        %v1460 = vrot.slane %v1459, 1
        %v1461 = vadd.f32 %v1459, %v1460
        %v1462 = vsel %vm1022, %v1325, 0.0
        %v1463 = vsel %vm1022, %v1326, 0.0
        %v1464 = vadd.f32 %v1462, %v1463
        %v1465 = vrot.slane %v1464, 4
        %v1466 = vadd.f32 %v1464, %v1465
        %v1467 = vrot.slane %v1466, 2
        %v1468 = vadd.f32 %v1466, %v1467
        %v1469 = vrot.slane %v1468, 1
        %v1470 = vadd.f32 %v1468, %v1469
        %1471 = vset.pattern.permute.xlu0 2
        %1472 = vperm.xlu0 %1471, %v798
        %v1473 = vpop.permute.xlu0 %1472
        %1475 = vset.pattern.permute.xlu0 2
        %1476 = vperm.xlu0 %1475, %v799
        %v1477 = vpop.permute.xlu0 %1476
        %1479 = vset.pattern.permute.xlu0 2
        %1480 = vperm.xlu0 %1479, %v800
        %v1481 = vpop.permute.xlu0 %1480
        %1483 = vset.pattern.permute.xlu0 2
        %1484 = vperm.xlu0 %1483, %v801
        %v1485 = vpop.permute.xlu0 %1484
        %1487 = vset.pattern.permute.xlu0 2
        %1488 = vperm.xlu0 %1487, %v802
        %v1489 = vpop.permute.xlu0 %1488
        %1491 = vset.pattern.permute.xlu0 2
        %1492 = vperm.xlu0 %1491, %v803
        %v1493 = vpop.permute.xlu0 %1492
        %1495 = vset.pattern.permute.xlu0 2
        %1496 = vperm.xlu0 %1495, %v804
        %v1497 = vpop.permute.xlu0 %1496
        %1499 = vset.pattern.permute.xlu0 2
        %1500 = vperm.xlu0 %1499, %v805
        %v1501 = vpop.permute.xlu0 %1500
        %1503 = vset.pattern.permute.xlu0 2
        %1504 = vperm.xlu0 %1503, %v806
        %v1505 = vpop.permute.xlu0 %1504
        %1507 = vset.pattern.permute.xlu0 2
        %1508 = vperm.xlu0 %1507, %v807
        %v1509 = vpop.permute.xlu0 %1508
        %1511 = vset.pattern.permute.xlu0 2
        %1512 = vperm.xlu0 %1511, %v808
        %v1513 = vpop.permute.xlu0 %1512
        %1515 = vset.pattern.permute.xlu0 2
        %1516 = vperm.xlu0 %1515, %v809
        %v1517 = vpop.permute.xlu0 %1516
        %1519 = vset.pattern.permute.xlu0 2
        %1520 = vperm.xlu0 %1519, %v810
        %v1521 = vpop.permute.xlu0 %1520
        %1523 = vset.pattern.permute.xlu0 2
        %1524 = vperm.xlu0 %1523, %v811
        %v1525 = vpop.permute.xlu0 %1524
        %1527 = vset.pattern.permute.xlu0 2
        %1528 = vperm.xlu0 %1527, %v812
        %v1529 = vpop.permute.xlu0 %1528
        %1531 = vset.pattern.permute.xlu0 2
        %1532 = vperm.xlu0 %1531, %v813
        %v1533 = vpop.permute.xlu0 %1532
        %1535 = vset.pattern.permute.xlu0 2
        %1536 = vperm.xlu0 %1535, %v814
        %v1537 = vpop.permute.xlu0 %1536
        %1539 = vset.pattern.permute.xlu0 2
        %1540 = vperm.xlu0 %1539, %v815
        %v1541 = vpop.permute.xlu0 %1540
        %1543 = vset.pattern.permute.xlu0 2
        %1544 = vperm.xlu0 %1543, %v816
        %v1545 = vpop.permute.xlu0 %1544
        %1547 = vset.pattern.permute.xlu0 2
        %1548 = vperm.xlu0 %1547, %v817
        %v1549 = vpop.permute.xlu0 %1548
        %1551 = vset.pattern.permute.xlu0 2
        %1552 = vperm.xlu0 %1551, %v818
        %v1553 = vpop.permute.xlu0 %1552
        %1555 = vset.pattern.permute.xlu0 2
        %1556 = vperm.xlu0 %1555, %v819
        %v1557 = vpop.permute.xlu0 %1556
        %1559 = vset.pattern.permute.xlu0 2
        %1560 = vperm.xlu0 %1559, %v820
        %v1561 = vpop.permute.xlu0 %1560
        %1563 = vset.pattern.permute.xlu0 2
        %1564 = vperm.xlu0 %1563, %v821
        %v1565 = vpop.permute.xlu0 %1564
        %1567 = vset.pattern.permute.xlu0 2
        %1568 = vperm.xlu0 %1567, %v822
        %v1569 = vpop.permute.xlu0 %1568
        %1571 = vset.pattern.permute.xlu0 2
        %1572 = vperm.xlu0 %1571, %v823
        %v1573 = vpop.permute.xlu0 %1572
        %1575 = vset.pattern.permute.xlu0 2
        %1576 = vperm.xlu0 %1575, %v824
        %v1577 = vpop.permute.xlu0 %1576
        %1579 = vset.pattern.permute.xlu0 2
        %1580 = vperm.xlu0 %1579, %v825
        %v1581 = vpop.permute.xlu0 %1580
        %1583 = vset.pattern.permute.xlu0 2
        %1584 = vperm.xlu0 %1583, %v826
        %v1585 = vpop.permute.xlu0 %1584
        %1587 = vset.pattern.permute.xlu0 2
        %1588 = vperm.xlu0 %1587, %v827
        %v1589 = vpop.permute.xlu0 %1588
        %1591 = vset.pattern.permute.xlu0 2
        %1592 = vperm.xlu0 %1591, %v828
        %v1593 = vpop.permute.xlu0 %1592
        %1595 = vset.pattern.permute.xlu0 2
        %1596 = vperm.xlu0 %1595, %v829
        %v1597 = vpop.permute.xlu0 %1596
        %v1599 = vmul.f32 %v750, %v1473
        %v1600 = vmul.f32 %v751, %v1477
        %v1601 = vmul.f32 %v752, %v1481
        %v1602 = vmul.f32 %v753, %v1485
        %v1603 = vmul.f32 %v754, %v1489
        %v1604 = vmul.f32 %v755, %v1493
        %v1605 = vmul.f32 %v756, %v1497
        %v1606 = vmul.f32 %v757, %v1501
        %v1607 = vmul.f32 %v758, %v1505
        %v1608 = vmul.f32 %v759, %v1509
        %v1609 = vmul.f32 %v760, %v1513
        %v1610 = vmul.f32 %v761, %v1517
        %v1611 = vmul.f32 %v762, %v1521
        %v1612 = vmul.f32 %v763, %v1525
        %v1613 = vmul.f32 %v764, %v1529
        %v1614 = vmul.f32 %v765, %v1533
        %v1615 = vmul.f32 %v782, %v1537
        %v1616 = vmul.f32 %v783, %v1541
        %v1617 = vmul.f32 %v784, %v1545
        %v1618 = vmul.f32 %v785, %v1549
        %v1619 = vmul.f32 %v786, %v1553
        %v1620 = vmul.f32 %v787, %v1557
        %v1621 = vmul.f32 %v788, %v1561
        %v1622 = vmul.f32 %v789, %v1565
        %v1623 = vmul.f32 %v790, %v1569
        %v1624 = vmul.f32 %v791, %v1573
        %v1625 = vmul.f32 %v792, %v1577
        %v1626 = vmul.f32 %v793, %v1581
        %v1627 = vmul.f32 %v794, %v1585
        %v1628 = vmul.f32 %v795, %v1589
        %v1629 = vmul.f32 %v796, %v1593
        %v1630 = vmul.f32 %v797, %v1597
        %v1631 = vsel %vm1022, %v1599, 0.0
        %v1632 = vsel %vm1022, %v1600, 0.0
        %v1633 = vadd.f32 %v1631, %v1632
        %v1634 = vrot.slane %v1633, 4
        %v1635 = vadd.f32 %v1633, %v1634
        %v1636 = vrot.slane %v1635, 2
        %v1637 = vadd.f32 %v1635, %v1636
        %v1638 = vrot.slane %v1637, 1
        %v1639 = vadd.f32 %v1637, %v1638
        %v1640 = vsel %vm1022, %v1601, 0.0
        %v1641 = vsel %vm1022, %v1602, 0.0
        %v1642 = vadd.f32 %v1640, %v1641
        %v1643 = vrot.slane %v1642, 4
        %v1644 = vadd.f32 %v1642, %v1643
        %v1645 = vrot.slane %v1644, 2
        %v1646 = vadd.f32 %v1644, %v1645
        %v1647 = vrot.slane %v1646, 1
        %v1648 = vadd.f32 %v1646, %v1647
        %v1649 = vsel %vm1022, %v1603, 0.0
        %v1650 = vsel %vm1022, %v1604, 0.0
        %v1651 = vadd.f32 %v1649, %v1650
        %v1652 = vrot.slane %v1651, 4
        %v1653 = vadd.f32 %v1651, %v1652
        %v1654 = vrot.slane %v1653, 2
        %v1655 = vadd.f32 %v1653, %v1654
        %v1656 = vrot.slane %v1655, 1
        %v1657 = vadd.f32 %v1655, %v1656
        %v1658 = vsel %vm1022, %v1605, 0.0
        %v1659 = vsel %vm1022, %v1606, 0.0
        %v1660 = vadd.f32 %v1658, %v1659
        %v1661 = vrot.slane %v1660, 4
        %v1662 = vadd.f32 %v1660, %v1661
        %v1663 = vrot.slane %v1662, 2
        %v1664 = vadd.f32 %v1662, %v1663
        %v1665 = vrot.slane %v1664, 1
        %v1666 = vadd.f32 %v1664, %v1665
        %v1667 = vsel %vm1022, %v1607, 0.0
        %v1668 = vsel %vm1022, %v1608, 0.0
        %v1669 = vadd.f32 %v1667, %v1668
        %v1670 = vrot.slane %v1669, 4
        %v1671 = vadd.f32 %v1669, %v1670
        %v1672 = vrot.slane %v1671, 2
        %v1673 = vadd.f32 %v1671, %v1672
        %v1674 = vrot.slane %v1673, 1
        %v1675 = vadd.f32 %v1673, %v1674
        %v1676 = vsel %vm1022, %v1609, 0.0
        %v1677 = vsel %vm1022, %v1610, 0.0
        %v1678 = vadd.f32 %v1676, %v1677
        %v1679 = vrot.slane %v1678, 4
        %v1680 = vadd.f32 %v1678, %v1679
        %v1681 = vrot.slane %v1680, 2
        %v1682 = vadd.f32 %v1680, %v1681
        %v1683 = vrot.slane %v1682, 1
        %v1684 = vadd.f32 %v1682, %v1683
        %v1685 = vsel %vm1022, %v1611, 0.0
        %v1686 = vsel %vm1022, %v1612, 0.0
        %v1687 = vadd.f32 %v1685, %v1686
        %v1688 = vrot.slane %v1687, 4
        %v1689 = vadd.f32 %v1687, %v1688
        %v1690 = vrot.slane %v1689, 2
        %v1691 = vadd.f32 %v1689, %v1690
        %v1692 = vrot.slane %v1691, 1
        %v1693 = vadd.f32 %v1691, %v1692
        %v1694 = vsel %vm1022, %v1613, 0.0
        %v1695 = vsel %vm1022, %v1614, 0.0
        %v1696 = vadd.f32 %v1694, %v1695
        %v1697 = vrot.slane %v1696, 4
        %v1698 = vadd.f32 %v1696, %v1697
        %v1699 = vrot.slane %v1698, 2
        %v1700 = vadd.f32 %v1698, %v1699
        %v1701 = vrot.slane %v1700, 1
        %v1702 = vadd.f32 %v1700, %v1701
        %v1703 = vsel %vm1022, %v1615, 0.0
        %v1704 = vsel %vm1022, %v1616, 0.0
        %v1705 = vadd.f32 %v1703, %v1704
        %v1706 = vrot.slane %v1705, 4
        %v1707 = vadd.f32 %v1705, %v1706
        %v1708 = vrot.slane %v1707, 2
        %v1709 = vadd.f32 %v1707, %v1708
        %v1710 = vrot.slane %v1709, 1
        %v1711 = vadd.f32 %v1709, %v1710
        %v1712 = vsel %vm1022, %v1617, 0.0
        %v1713 = vsel %vm1022, %v1618, 0.0
        %v1714 = vadd.f32 %v1712, %v1713
        %v1715 = vrot.slane %v1714, 4
        %v1716 = vadd.f32 %v1714, %v1715
        %v1717 = vrot.slane %v1716, 2
        %v1718 = vadd.f32 %v1716, %v1717
        %v1719 = vrot.slane %v1718, 1
        %v1720 = vadd.f32 %v1718, %v1719
        %v1721 = vsel %vm1022, %v1619, 0.0
        %v1722 = vsel %vm1022, %v1620, 0.0
        %v1723 = vadd.f32 %v1721, %v1722
        %v1724 = vrot.slane %v1723, 4
        %v1725 = vadd.f32 %v1723, %v1724
        %v1726 = vrot.slane %v1725, 2
        %v1727 = vadd.f32 %v1725, %v1726
        %v1728 = vrot.slane %v1727, 1
        %v1729 = vadd.f32 %v1727, %v1728
        %v1730 = vsel %vm1022, %v1621, 0.0
        %v1731 = vsel %vm1022, %v1622, 0.0
        %v1732 = vadd.f32 %v1730, %v1731
        %v1733 = vrot.slane %v1732, 4
        %v1734 = vadd.f32 %v1732, %v1733
        %v1735 = vrot.slane %v1734, 2
        %v1736 = vadd.f32 %v1734, %v1735
        %v1737 = vrot.slane %v1736, 1
        %v1738 = vadd.f32 %v1736, %v1737
        %v1739 = vsel %vm1022, %v1623, 0.0
        %v1740 = vsel %vm1022, %v1624, 0.0
        %v1741 = vadd.f32 %v1739, %v1740
        %v1742 = vrot.slane %v1741, 4
        %v1743 = vadd.f32 %v1741, %v1742
        %v1744 = vrot.slane %v1743, 2
        %v1745 = vadd.f32 %v1743, %v1744
        %v1746 = vrot.slane %v1745, 1
        %v1747 = vadd.f32 %v1745, %v1746
        %v1748 = vsel %vm1022, %v1625, 0.0
        %v1749 = vsel %vm1022, %v1626, 0.0
        %v1750 = vadd.f32 %v1748, %v1749
        %v1751 = vrot.slane %v1750, 4
        %v1752 = vadd.f32 %v1750, %v1751
        %v1753 = vrot.slane %v1752, 2
        %v1754 = vadd.f32 %v1752, %v1753
        %v1755 = vrot.slane %v1754, 1
        %v1756 = vadd.f32 %v1754, %v1755
        %v1757 = vsel %vm1022, %v1627, 0.0
        %v1758 = vsel %vm1022, %v1628, 0.0
        %v1759 = vadd.f32 %v1757, %v1758
        %v1760 = vrot.slane %v1759, 4
        %v1761 = vadd.f32 %v1759, %v1760
        %v1762 = vrot.slane %v1761, 2
        %v1763 = vadd.f32 %v1761, %v1762
        %v1764 = vrot.slane %v1763, 1
        %v1765 = vadd.f32 %v1763, %v1764
        %v1766 = vsel %vm1022, %v1629, 0.0
        %v1767 = vsel %vm1022, %v1630, 0.0
        %v1768 = vadd.f32 %v1766, %v1767
        %v1769 = vrot.slane %v1768, 4
        %v1770 = vadd.f32 %v1768, %v1769
        %v1771 = vrot.slane %v1770, 2
        %v1772 = vadd.f32 %v1770, %v1771
        %v1773 = vrot.slane %v1772, 1
        %v1774 = vadd.f32 %v1772, %v1773
        %1775 = vset.pattern.permute.xlu0 3
        %1776 = vperm.xlu0 %1775, %v798
        %v1777 = vpop.permute.xlu0 %1776
        %1779 = vset.pattern.permute.xlu0 3
        %1780 = vperm.xlu0 %1779, %v799
        %v1781 = vpop.permute.xlu0 %1780
        %1783 = vset.pattern.permute.xlu0 3
        %1784 = vperm.xlu0 %1783, %v800
        %v1785 = vpop.permute.xlu0 %1784
        %1787 = vset.pattern.permute.xlu0 3
        %1788 = vperm.xlu0 %1787, %v801
        %v1789 = vpop.permute.xlu0 %1788
        %1791 = vset.pattern.permute.xlu0 3
        %1792 = vperm.xlu0 %1791, %v802
        %v1793 = vpop.permute.xlu0 %1792
        %1795 = vset.pattern.permute.xlu0 3
        %1796 = vperm.xlu0 %1795, %v803
        %v1797 = vpop.permute.xlu0 %1796
        %1799 = vset.pattern.permute.xlu0 3
        %1800 = vperm.xlu0 %1799, %v804
        %v1801 = vpop.permute.xlu0 %1800
        %1803 = vset.pattern.permute.xlu0 3
        %1804 = vperm.xlu0 %1803, %v805
        %v1805 = vpop.permute.xlu0 %1804
        %1807 = vset.pattern.permute.xlu0 3
        %1808 = vperm.xlu0 %1807, %v806
        %v1809 = vpop.permute.xlu0 %1808
        %1811 = vset.pattern.permute.xlu0 3
        %1812 = vperm.xlu0 %1811, %v807
        %v1813 = vpop.permute.xlu0 %1812
        %1815 = vset.pattern.permute.xlu0 3
        %1816 = vperm.xlu0 %1815, %v808
        %v1817 = vpop.permute.xlu0 %1816
        %1819 = vset.pattern.permute.xlu0 3
        %1820 = vperm.xlu0 %1819, %v809
        %v1821 = vpop.permute.xlu0 %1820
        %1823 = vset.pattern.permute.xlu0 3
        %1824 = vperm.xlu0 %1823, %v810
        %v1825 = vpop.permute.xlu0 %1824
        %1827 = vset.pattern.permute.xlu0 3
        %1828 = vperm.xlu0 %1827, %v811
        %v1829 = vpop.permute.xlu0 %1828
        %1831 = vset.pattern.permute.xlu0 3
        %1832 = vperm.xlu0 %1831, %v812
        %v1833 = vpop.permute.xlu0 %1832
        %1835 = vset.pattern.permute.xlu0 3
        %1836 = vperm.xlu0 %1835, %v813
        %v1837 = vpop.permute.xlu0 %1836
        %1839 = vset.pattern.permute.xlu0 3
        %1840 = vperm.xlu0 %1839, %v814
        %v1841 = vpop.permute.xlu0 %1840
        %1843 = vset.pattern.permute.xlu0 3
        %1844 = vperm.xlu0 %1843, %v815
        %v1845 = vpop.permute.xlu0 %1844
        %1847 = vset.pattern.permute.xlu0 3
        %1848 = vperm.xlu0 %1847, %v816
        %v1849 = vpop.permute.xlu0 %1848
        %1851 = vset.pattern.permute.xlu0 3
        %1852 = vperm.xlu0 %1851, %v817
        %v1853 = vpop.permute.xlu0 %1852
        %1855 = vset.pattern.permute.xlu0 3
        %1856 = vperm.xlu0 %1855, %v818
        %v1857 = vpop.permute.xlu0 %1856
        %1859 = vset.pattern.permute.xlu0 3
        %1860 = vperm.xlu0 %1859, %v819
        %v1861 = vpop.permute.xlu0 %1860
        %1863 = vset.pattern.permute.xlu0 3
        %1864 = vperm.xlu0 %1863, %v820
        %v1865 = vpop.permute.xlu0 %1864
        %1867 = vset.pattern.permute.xlu0 3
        %1868 = vperm.xlu0 %1867, %v821
        %v1869 = vpop.permute.xlu0 %1868
        %1871 = vset.pattern.permute.xlu0 3
        %1872 = vperm.xlu0 %1871, %v822
        %v1873 = vpop.permute.xlu0 %1872
        %1875 = vset.pattern.permute.xlu0 3
        %1876 = vperm.xlu0 %1875, %v823
        %v1877 = vpop.permute.xlu0 %1876
        %1879 = vset.pattern.permute.xlu0 3
        %1880 = vperm.xlu0 %1879, %v824
        %v1881 = vpop.permute.xlu0 %1880
        %1883 = vset.pattern.permute.xlu0 3
        %1884 = vperm.xlu0 %1883, %v825
        %v1885 = vpop.permute.xlu0 %1884
        %1887 = vset.pattern.permute.xlu0 3
        %1888 = vperm.xlu0 %1887, %v826
        %v1889 = vpop.permute.xlu0 %1888
        %1891 = vset.pattern.permute.xlu0 3
        %1892 = vperm.xlu0 %1891, %v827
        %v1893 = vpop.permute.xlu0 %1892
        %1895 = vset.pattern.permute.xlu0 3
        %1896 = vperm.xlu0 %1895, %v828
        %v1897 = vpop.permute.xlu0 %1896
        %1899 = vset.pattern.permute.xlu0 3
        %1900 = vperm.xlu0 %1899, %v829
        %v1901 = vpop.permute.xlu0 %1900
        %v1903 = vmul.f32 %v750, %v1777
        %v1904 = vmul.f32 %v751, %v1781
        %v1905 = vmul.f32 %v752, %v1785
        %v1906 = vmul.f32 %v753, %v1789
        %v1907 = vmul.f32 %v754, %v1793
        %v1908 = vmul.f32 %v755, %v1797
        %v1909 = vmul.f32 %v756, %v1801
        %v1910 = vmul.f32 %v757, %v1805
        %v1911 = vmul.f32 %v758, %v1809
        %v1912 = vmul.f32 %v759, %v1813
        %v1913 = vmul.f32 %v760, %v1817
        %v1914 = vmul.f32 %v761, %v1821
        %v1915 = vmul.f32 %v762, %v1825
        %v1916 = vmul.f32 %v763, %v1829
        %v1917 = vmul.f32 %v764, %v1833
        %v1918 = vmul.f32 %v765, %v1837
        %v1919 = vmul.f32 %v782, %v1841
        %v1920 = vmul.f32 %v783, %v1845
        %v1921 = vmul.f32 %v784, %v1849
        %v1922 = vmul.f32 %v785, %v1853
        %v1923 = vmul.f32 %v786, %v1857
        %v1924 = vmul.f32 %v787, %v1861
        %v1925 = vmul.f32 %v788, %v1865
        %v1926 = vmul.f32 %v789, %v1869
        %v1927 = vmul.f32 %v790, %v1873
        %v1928 = vmul.f32 %v791, %v1877
        %v1929 = vmul.f32 %v792, %v1881
        %v1930 = vmul.f32 %v793, %v1885
        %v1931 = vmul.f32 %v794, %v1889
        %v1932 = vmul.f32 %v795, %v1893
        %v1933 = vmul.f32 %v796, %v1897
        %v1934 = vmul.f32 %v797, %v1901
        %v1935 = vsel %vm1022, %v1903, 0.0
        %v1936 = vsel %vm1022, %v1904, 0.0
        %v1937 = vadd.f32 %v1935, %v1936
        %v1938 = vrot.slane %v1937, 4
        %v1939 = vadd.f32 %v1937, %v1938
        %v1940 = vrot.slane %v1939, 2
        %v1941 = vadd.f32 %v1939, %v1940
        %v1942 = vrot.slane %v1941, 1
        %v1943 = vadd.f32 %v1941, %v1942
        %v1944 = vsel %vm1022, %v1905, 0.0
        %v1945 = vsel %vm1022, %v1906, 0.0
        %v1946 = vadd.f32 %v1944, %v1945
        %v1947 = vrot.slane %v1946, 4
        %v1948 = vadd.f32 %v1946, %v1947
        %v1949 = vrot.slane %v1948, 2
        %v1950 = vadd.f32 %v1948, %v1949
        %v1951 = vrot.slane %v1950, 1
        %v1952 = vadd.f32 %v1950, %v1951
        %v1953 = vsel %vm1022, %v1907, 0.0
        %v1954 = vsel %vm1022, %v1908, 0.0
        %v1955 = vadd.f32 %v1953, %v1954
        %v1956 = vrot.slane %v1955, 4
        %v1957 = vadd.f32 %v1955, %v1956
        %v1958 = vrot.slane %v1957, 2
        %v1959 = vadd.f32 %v1957, %v1958
        %v1960 = vrot.slane %v1959, 1
        %v1961 = vadd.f32 %v1959, %v1960
        %v1962 = vsel %vm1022, %v1909, 0.0
        %v1963 = vsel %vm1022, %v1910, 0.0
        %v1964 = vadd.f32 %v1962, %v1963
        %v1965 = vrot.slane %v1964, 4
        %v1966 = vadd.f32 %v1964, %v1965
        %v1967 = vrot.slane %v1966, 2
        %v1968 = vadd.f32 %v1966, %v1967
        %v1969 = vrot.slane %v1968, 1
        %v1970 = vadd.f32 %v1968, %v1969
        %v1971 = vsel %vm1022, %v1911, 0.0
        %v1972 = vsel %vm1022, %v1912, 0.0
        %v1973 = vadd.f32 %v1971, %v1972
        %v1974 = vrot.slane %v1973, 4
        %v1975 = vadd.f32 %v1973, %v1974
        %v1976 = vrot.slane %v1975, 2
        %v1977 = vadd.f32 %v1975, %v1976
        %v1978 = vrot.slane %v1977, 1
        %v1979 = vadd.f32 %v1977, %v1978
        %v1980 = vsel %vm1022, %v1913, 0.0
        %v1981 = vsel %vm1022, %v1914, 0.0
        %v1982 = vadd.f32 %v1980, %v1981
        %v1983 = vrot.slane %v1982, 4
        %v1984 = vadd.f32 %v1982, %v1983
        %v1985 = vrot.slane %v1984, 2
        %v1986 = vadd.f32 %v1984, %v1985
        %v1987 = vrot.slane %v1986, 1
        %v1988 = vadd.f32 %v1986, %v1987
        %v1989 = vsel %vm1022, %v1915, 0.0
        %v1990 = vsel %vm1022, %v1916, 0.0
        %v1991 = vadd.f32 %v1989, %v1990
        %v1992 = vrot.slane %v1991, 4
        %v1993 = vadd.f32 %v1991, %v1992
        %v1994 = vrot.slane %v1993, 2
        %v1995 = vadd.f32 %v1993, %v1994
        %v1996 = vrot.slane %v1995, 1
        %v1997 = vadd.f32 %v1995, %v1996
        %v1998 = vsel %vm1022, %v1917, 0.0
        %v1999 = vsel %vm1022, %v1918, 0.0
        %v2000 = vadd.f32 %v1998, %v1999
        %v2001 = vrot.slane %v2000, 4
        %v2002 = vadd.f32 %v2000, %v2001
        %v2003 = vrot.slane %v2002, 2
        %v2004 = vadd.f32 %v2002, %v2003
        %v2005 = vrot.slane %v2004, 1
        %v2006 = vadd.f32 %v2004, %v2005
        %v2007 = vsel %vm1022, %v1919, 0.0
        %v2008 = vsel %vm1022, %v1920, 0.0
        %v2009 = vadd.f32 %v2007, %v2008
        %v2010 = vrot.slane %v2009, 4
        %v2011 = vadd.f32 %v2009, %v2010
        %v2012 = vrot.slane %v2011, 2
        %v2013 = vadd.f32 %v2011, %v2012
        %v2014 = vrot.slane %v2013, 1
        %v2015 = vadd.f32 %v2013, %v2014
        %v2016 = vsel %vm1022, %v1921, 0.0
        %v2017 = vsel %vm1022, %v1922, 0.0
        %v2018 = vadd.f32 %v2016, %v2017
        %v2019 = vrot.slane %v2018, 4
        %v2020 = vadd.f32 %v2018, %v2019
        %v2021 = vrot.slane %v2020, 2
        %v2022 = vadd.f32 %v2020, %v2021
        %v2023 = vrot.slane %v2022, 1
        %v2024 = vadd.f32 %v2022, %v2023
        %v2025 = vsel %vm1022, %v1923, 0.0
        %v2026 = vsel %vm1022, %v1924, 0.0
        %v2027 = vadd.f32 %v2025, %v2026
        %v2028 = vrot.slane %v2027, 4
        %v2029 = vadd.f32 %v2027, %v2028
        %v2030 = vrot.slane %v2029, 2
        %v2031 = vadd.f32 %v2029, %v2030
        %v2032 = vrot.slane %v2031, 1
        %v2033 = vadd.f32 %v2031, %v2032
        %v2034 = vsel %vm1022, %v1925, 0.0
        %v2035 = vsel %vm1022, %v1926, 0.0
        %v2036 = vadd.f32 %v2034, %v2035
        %v2037 = vrot.slane %v2036, 4
        %v2038 = vadd.f32 %v2036, %v2037
        %v2039 = vrot.slane %v2038, 2
        %v2040 = vadd.f32 %v2038, %v2039
        %v2041 = vrot.slane %v2040, 1
        %v2042 = vadd.f32 %v2040, %v2041
        %v2043 = vsel %vm1022, %v1927, 0.0
        %v2044 = vsel %vm1022, %v1928, 0.0
        %v2045 = vadd.f32 %v2043, %v2044
        %v2046 = vrot.slane %v2045, 4
        %v2047 = vadd.f32 %v2045, %v2046
        %v2048 = vrot.slane %v2047, 2
        %v2049 = vadd.f32 %v2047, %v2048
        %v2050 = vrot.slane %v2049, 1
        %v2051 = vadd.f32 %v2049, %v2050
        %v2052 = vsel %vm1022, %v1929, 0.0
        %v2053 = vsel %vm1022, %v1930, 0.0
        %v2054 = vadd.f32 %v2052, %v2053
        %v2055 = vrot.slane %v2054, 4
        %v2056 = vadd.f32 %v2054, %v2055
        %v2057 = vrot.slane %v2056, 2
        %v2058 = vadd.f32 %v2056, %v2057
        %v2059 = vrot.slane %v2058, 1
        %v2060 = vadd.f32 %v2058, %v2059
        %v2061 = vsel %vm1022, %v1931, 0.0
        %v2062 = vsel %vm1022, %v1932, 0.0
        %v2063 = vadd.f32 %v2061, %v2062
        %v2064 = vrot.slane %v2063, 4
        %v2065 = vadd.f32 %v2063, %v2064
        %v2066 = vrot.slane %v2065, 2
        %v2067 = vadd.f32 %v2065, %v2066
        %v2068 = vrot.slane %v2067, 1
        %v2069 = vadd.f32 %v2067, %v2068
        %v2070 = vsel %vm1022, %v1933, 0.0
        %v2071 = vsel %vm1022, %v1934, 0.0
        %v2072 = vadd.f32 %v2070, %v2071
        %v2073 = vrot.slane %v2072, 4
        %v2074 = vadd.f32 %v2072, %v2073
        %v2075 = vrot.slane %v2074, 2
        %v2076 = vadd.f32 %v2074, %v2075
        %v2077 = vrot.slane %v2076, 1
        %v2078 = vadd.f32 %v2076, %v2077
        %2080 = vset.pattern.permute.xlu0 0
        %2081 = vperm.xlu0 %2080, %v1031
        %v2082 = vpop.permute.xlu0 %2081
        %2085 = vset.pattern.permute.xlu0 0
        %2086 = vperm.xlu0 %2085, %v1040
        %v2087 = vpop.permute.xlu0 %2086
        %2090 = vset.pattern.permute.xlu0 0
        %2091 = vperm.xlu0 %2090, %v1049
        %v2092 = vpop.permute.xlu0 %2091
        %2095 = vset.pattern.permute.xlu0 0
        %2096 = vperm.xlu0 %2095, %v1058
        %v2097 = vpop.permute.xlu0 %2096
        %2100 = vset.pattern.permute.xlu0 0
        %2101 = vperm.xlu0 %2100, %v1067
        %v2102 = vpop.permute.xlu0 %2101
        %2105 = vset.pattern.permute.xlu0 0
        %2106 = vperm.xlu0 %2105, %v1076
        %v2107 = vpop.permute.xlu0 %2106
        %2110 = vset.pattern.permute.xlu0 0
        %2111 = vperm.xlu0 %2110, %v1085
        %v2112 = vpop.permute.xlu0 %2111
        %2115 = vset.pattern.permute.xlu0 0
        %2116 = vperm.xlu0 %2115, %v1094
        %v2117 = vpop.permute.xlu0 %2116
        %2120 = vset.pattern.permute.xlu0 0
        %2121 = vperm.xlu0 %2120, %v1103
        %v2122 = vpop.permute.xlu0 %2121
        %2125 = vset.pattern.permute.xlu0 0
        %2126 = vperm.xlu0 %2125, %v1112
        %v2127 = vpop.permute.xlu0 %2126
        %2130 = vset.pattern.permute.xlu0 0
        %2131 = vperm.xlu0 %2130, %v1121
        %v2132 = vpop.permute.xlu0 %2131
        %2135 = vset.pattern.permute.xlu0 0
        %2136 = vperm.xlu0 %2135, %v1130
        %v2137 = vpop.permute.xlu0 %2136
        %2140 = vset.pattern.permute.xlu0 0
        %2141 = vperm.xlu0 %2140, %v1139
        %v2142 = vpop.permute.xlu0 %2141
        %2145 = vset.pattern.permute.xlu0 0
        %2146 = vperm.xlu0 %2145, %v1148
        %v2147 = vpop.permute.xlu0 %2146
        %2150 = vset.pattern.permute.xlu0 0
        %2151 = vperm.xlu0 %2150, %v1157
        %v2152 = vpop.permute.xlu0 %2151
        %2155 = vset.pattern.permute.xlu0 0
        %2156 = vperm.xlu0 %2155, %v1166
        %v2157 = vpop.permute.xlu0 %2156
        %v2159 = vmul.f32 %v1031, %v2082
        %v2160 = vmul.f32 %v1040, %v2087
        %v2161 = vmul.f32 %v1049, %v2092
        %v2162 = vmul.f32 %v1058, %v2097
        %v2163 = vmul.f32 %v1067, %v2102
        %v2164 = vmul.f32 %v1076, %v2107
        %v2165 = vmul.f32 %v1085, %v2112
        %v2166 = vmul.f32 %v1094, %v2117
        %v2167 = vmul.f32 %v1103, %v2122
        %v2168 = vmul.f32 %v1112, %v2127
        %v2169 = vmul.f32 %v1121, %v2132
        %v2170 = vmul.f32 %v1130, %v2137
        %v2171 = vmul.f32 %v1139, %v2142
        %v2172 = vmul.f32 %v1148, %v2147
        %v2173 = vmul.f32 %v1157, %v2152
        %v2174 = vmul.f32 %v1166, %v2157
        %2176 = vset.pattern.permute.xlu0 0
        %2177 = vperm.xlu0 %2176, %v1335
        %v2178 = vpop.permute.xlu0 %2177
        %2181 = vset.pattern.permute.xlu0 0
        %2182 = vperm.xlu0 %2181, %v1344
        %v2183 = vpop.permute.xlu0 %2182
        %2186 = vset.pattern.permute.xlu0 0
        %2187 = vperm.xlu0 %2186, %v1353
        %v2188 = vpop.permute.xlu0 %2187
        %2191 = vset.pattern.permute.xlu0 0
        %2192 = vperm.xlu0 %2191, %v1362
        %v2193 = vpop.permute.xlu0 %2192
        %2196 = vset.pattern.permute.xlu0 0
        %2197 = vperm.xlu0 %2196, %v1371
        %v2198 = vpop.permute.xlu0 %2197
        %2201 = vset.pattern.permute.xlu0 0
        %2202 = vperm.xlu0 %2201, %v1380
        %v2203 = vpop.permute.xlu0 %2202
        %2206 = vset.pattern.permute.xlu0 0
        %2207 = vperm.xlu0 %2206, %v1389
        %v2208 = vpop.permute.xlu0 %2207
        %2211 = vset.pattern.permute.xlu0 0
        %2212 = vperm.xlu0 %2211, %v1398
        %v2213 = vpop.permute.xlu0 %2212
        %2216 = vset.pattern.permute.xlu0 0
        %2217 = vperm.xlu0 %2216, %v1407
        %v2218 = vpop.permute.xlu0 %2217
        %2221 = vset.pattern.permute.xlu0 0
        %2222 = vperm.xlu0 %2221, %v1416
        %v2223 = vpop.permute.xlu0 %2222
        %2226 = vset.pattern.permute.xlu0 0
        %2227 = vperm.xlu0 %2226, %v1425
        %v2228 = vpop.permute.xlu0 %2227
        %2231 = vset.pattern.permute.xlu0 0
        %2232 = vperm.xlu0 %2231, %v1434
        %v2233 = vpop.permute.xlu0 %2232
        %2236 = vset.pattern.permute.xlu0 0
        %2237 = vperm.xlu0 %2236, %v1443
        %v2238 = vpop.permute.xlu0 %2237
        %2241 = vset.pattern.permute.xlu0 0
        %2242 = vperm.xlu0 %2241, %v1452
        %v2243 = vpop.permute.xlu0 %2242
        %2246 = vset.pattern.permute.xlu0 0
        %2247 = vperm.xlu0 %2246, %v1461
        %v2248 = vpop.permute.xlu0 %2247
        %2251 = vset.pattern.permute.xlu0 0
        %2252 = vperm.xlu0 %2251, %v1470
        %v2253 = vpop.permute.xlu0 %2252
        %v2255 = vmul.f32 %v1335, %v2178
        %v2256 = vmul.f32 %v1344, %v2183
        %v2257 = vmul.f32 %v1353, %v2188
        %v2258 = vmul.f32 %v1362, %v2193
        %v2259 = vmul.f32 %v1371, %v2198
        %v2260 = vmul.f32 %v1380, %v2203
        %v2261 = vmul.f32 %v1389, %v2208
        %v2262 = vmul.f32 %v1398, %v2213
        %v2263 = vmul.f32 %v1407, %v2218
        %v2264 = vmul.f32 %v1416, %v2223
        %v2265 = vmul.f32 %v1425, %v2228
        %v2266 = vmul.f32 %v1434, %v2233
        %v2267 = vmul.f32 %v1443, %v2238
        %v2268 = vmul.f32 %v1452, %v2243
        %v2269 = vmul.f32 %v1461, %v2248
        %v2270 = vmul.f32 %v1470, %v2253
        %v2271 = vadd.f32 %v2159, %v2255
        %v2272 = vadd.f32 %v2160, %v2256
        %v2273 = vadd.f32 %v2161, %v2257
        %v2274 = vadd.f32 %v2162, %v2258
        %v2275 = vadd.f32 %v2163, %v2259
        %v2276 = vadd.f32 %v2164, %v2260
        %v2277 = vadd.f32 %v2165, %v2261
        %v2278 = vadd.f32 %v2166, %v2262
        %v2279 = vadd.f32 %v2167, %v2263
        %v2280 = vadd.f32 %v2168, %v2264
        %v2281 = vadd.f32 %v2169, %v2265
        %v2282 = vadd.f32 %v2170, %v2266
        %v2283 = vadd.f32 %v2171, %v2267
        %v2284 = vadd.f32 %v2172, %v2268
        %v2285 = vadd.f32 %v2173, %v2269
        %v2286 = vadd.f32 %v2174, %v2270
        %2288 = vset.pattern.permute.xlu0 0
        %2289 = vperm.xlu0 %2288, %v1639
        %v2290 = vpop.permute.xlu0 %2289
        %2293 = vset.pattern.permute.xlu0 0
        %2294 = vperm.xlu0 %2293, %v1648
        %v2295 = vpop.permute.xlu0 %2294
        %2298 = vset.pattern.permute.xlu0 0
        %2299 = vperm.xlu0 %2298, %v1657
        %v2300 = vpop.permute.xlu0 %2299
        %2303 = vset.pattern.permute.xlu0 0
        %2304 = vperm.xlu0 %2303, %v1666
        %v2305 = vpop.permute.xlu0 %2304
        %2308 = vset.pattern.permute.xlu0 0
        %2309 = vperm.xlu0 %2308, %v1675
        %v2310 = vpop.permute.xlu0 %2309
        %2313 = vset.pattern.permute.xlu0 0
        %2314 = vperm.xlu0 %2313, %v1684
        %v2315 = vpop.permute.xlu0 %2314
        %2318 = vset.pattern.permute.xlu0 0
        %2319 = vperm.xlu0 %2318, %v1693
        %v2320 = vpop.permute.xlu0 %2319
        %2323 = vset.pattern.permute.xlu0 0
        %2324 = vperm.xlu0 %2323, %v1702
        %v2325 = vpop.permute.xlu0 %2324
        %2328 = vset.pattern.permute.xlu0 0
        %2329 = vperm.xlu0 %2328, %v1711
        %v2330 = vpop.permute.xlu0 %2329
        %2333 = vset.pattern.permute.xlu0 0
        %2334 = vperm.xlu0 %2333, %v1720
        %v2335 = vpop.permute.xlu0 %2334
        %2338 = vset.pattern.permute.xlu0 0
        %2339 = vperm.xlu0 %2338, %v1729
        %v2340 = vpop.permute.xlu0 %2339
        %2343 = vset.pattern.permute.xlu0 0
        %2344 = vperm.xlu0 %2343, %v1738
        %v2345 = vpop.permute.xlu0 %2344
        %2348 = vset.pattern.permute.xlu0 0
        %2349 = vperm.xlu0 %2348, %v1747
        %v2350 = vpop.permute.xlu0 %2349
        %2353 = vset.pattern.permute.xlu0 0
        %2354 = vperm.xlu0 %2353, %v1756
        %v2355 = vpop.permute.xlu0 %2354
        %2358 = vset.pattern.permute.xlu0 0
        %2359 = vperm.xlu0 %2358, %v1765
        %v2360 = vpop.permute.xlu0 %2359
        %2363 = vset.pattern.permute.xlu0 0
        %2364 = vperm.xlu0 %2363, %v1774
        %v2365 = vpop.permute.xlu0 %2364
        %v2367 = vmul.f32 %v1639, %v2290
        %v2368 = vmul.f32 %v1648, %v2295
        %v2369 = vmul.f32 %v1657, %v2300
        %v2370 = vmul.f32 %v1666, %v2305
        %v2371 = vmul.f32 %v1675, %v2310
        %v2372 = vmul.f32 %v1684, %v2315
        %v2373 = vmul.f32 %v1693, %v2320
        %v2374 = vmul.f32 %v1702, %v2325
        %v2375 = vmul.f32 %v1711, %v2330
        %v2376 = vmul.f32 %v1720, %v2335
        %v2377 = vmul.f32 %v1729, %v2340
        %v2378 = vmul.f32 %v1738, %v2345
        %v2379 = vmul.f32 %v1747, %v2350
        %v2380 = vmul.f32 %v1756, %v2355
        %v2381 = vmul.f32 %v1765, %v2360
        %v2382 = vmul.f32 %v1774, %v2365
        %v2383 = vadd.f32 %v2271, %v2367
        %v2384 = vadd.f32 %v2272, %v2368
        %v2385 = vadd.f32 %v2273, %v2369
        %v2386 = vadd.f32 %v2274, %v2370
        %v2387 = vadd.f32 %v2275, %v2371
        %v2388 = vadd.f32 %v2276, %v2372
        %v2389 = vadd.f32 %v2277, %v2373
        %v2390 = vadd.f32 %v2278, %v2374
        %v2391 = vadd.f32 %v2279, %v2375
        %v2392 = vadd.f32 %v2280, %v2376
        %v2393 = vadd.f32 %v2281, %v2377
        %v2394 = vadd.f32 %v2282, %v2378
        %v2395 = vadd.f32 %v2283, %v2379
        %v2396 = vadd.f32 %v2284, %v2380
        %v2397 = vadd.f32 %v2285, %v2381
        %v2398 = vadd.f32 %v2286, %v2382
        %2400 = vset.pattern.permute.xlu0 0
        %2401 = vperm.xlu0 %2400, %v1943
        %v2402 = vpop.permute.xlu0 %2401
        %2405 = vset.pattern.permute.xlu0 0
        %2406 = vperm.xlu0 %2405, %v1952
        %v2407 = vpop.permute.xlu0 %2406
        %2410 = vset.pattern.permute.xlu0 0
        %2411 = vperm.xlu0 %2410, %v1961
        %v2412 = vpop.permute.xlu0 %2411
        %2415 = vset.pattern.permute.xlu0 0
        %2416 = vperm.xlu0 %2415, %v1970
        %v2417 = vpop.permute.xlu0 %2416
        %2420 = vset.pattern.permute.xlu0 0
        %2421 = vperm.xlu0 %2420, %v1979
        %v2422 = vpop.permute.xlu0 %2421
        %2425 = vset.pattern.permute.xlu0 0
        %2426 = vperm.xlu0 %2425, %v1988
        %v2427 = vpop.permute.xlu0 %2426
        %2430 = vset.pattern.permute.xlu0 0
        %2431 = vperm.xlu0 %2430, %v1997
        %v2432 = vpop.permute.xlu0 %2431
        %2435 = vset.pattern.permute.xlu0 0
        %2436 = vperm.xlu0 %2435, %v2006
        %v2437 = vpop.permute.xlu0 %2436
        %2440 = vset.pattern.permute.xlu0 0
        %2441 = vperm.xlu0 %2440, %v2015
        %v2442 = vpop.permute.xlu0 %2441
        %2445 = vset.pattern.permute.xlu0 0
        %2446 = vperm.xlu0 %2445, %v2024
        %v2447 = vpop.permute.xlu0 %2446
        %2450 = vset.pattern.permute.xlu0 0
        %2451 = vperm.xlu0 %2450, %v2033
        %v2452 = vpop.permute.xlu0 %2451
        %2455 = vset.pattern.permute.xlu0 0
        %2456 = vperm.xlu0 %2455, %v2042
        %v2457 = vpop.permute.xlu0 %2456
        %2460 = vset.pattern.permute.xlu0 0
        %2461 = vperm.xlu0 %2460, %v2051
        %v2462 = vpop.permute.xlu0 %2461
        %2465 = vset.pattern.permute.xlu0 0
        %2466 = vperm.xlu0 %2465, %v2060
        %v2467 = vpop.permute.xlu0 %2466
        %2470 = vset.pattern.permute.xlu0 0
        %2471 = vperm.xlu0 %2470, %v2069
        %v2472 = vpop.permute.xlu0 %2471
        %2475 = vset.pattern.permute.xlu0 0
        %2476 = vperm.xlu0 %2475, %v2078
        %v2477 = vpop.permute.xlu0 %2476
        %v2479 = vmul.f32 %v1943, %v2402
        %v2480 = vmul.f32 %v1952, %v2407
        %v2481 = vmul.f32 %v1961, %v2412
        %v2482 = vmul.f32 %v1970, %v2417
        %v2483 = vmul.f32 %v1979, %v2422
        %v2484 = vmul.f32 %v1988, %v2427
        %v2485 = vmul.f32 %v1997, %v2432
        %v2486 = vmul.f32 %v2006, %v2437
        %v2487 = vmul.f32 %v2015, %v2442
        %v2488 = vmul.f32 %v2024, %v2447
        %v2489 = vmul.f32 %v2033, %v2452
        %v2490 = vmul.f32 %v2042, %v2457
        %v2491 = vmul.f32 %v2051, %v2462
        %v2492 = vmul.f32 %v2060, %v2467
        %v2493 = vmul.f32 %v2069, %v2472
        %v2494 = vmul.f32 %v2078, %v2477
        %v2495 = vadd.f32 %v2383, %v2479
        %v2496 = vadd.f32 %v2384, %v2480
        %v2497 = vadd.f32 %v2385, %v2481
        %v2498 = vadd.f32 %v2386, %v2482
        %v2499 = vadd.f32 %v2387, %v2483
        %v2500 = vadd.f32 %v2388, %v2484
        %v2501 = vadd.f32 %v2389, %v2485
        %v2502 = vadd.f32 %v2390, %v2486
        %v2503 = vadd.f32 %v2391, %v2487
        %v2504 = vadd.f32 %v2392, %v2488
        %v2505 = vadd.f32 %v2393, %v2489
        %v2506 = vadd.f32 %v2394, %v2490
        %v2507 = vadd.f32 %v2395, %v2491
        %v2508 = vadd.f32 %v2396, %v2492
        %v2509 = vadd.f32 %v2397, %v2493
        %v2510 = vadd.f32 %v2398, %v2494
        %2511 = vset.pattern.permute.xlu0 1
        %2512 = vperm.xlu0 %2511, %v1031
        %v2513 = vpop.permute.xlu0 %2512
        %2515 = vset.pattern.permute.xlu0 1
        %2516 = vperm.xlu0 %2515, %v1040
        %v2517 = vpop.permute.xlu0 %2516
        %2519 = vset.pattern.permute.xlu0 1
        %2520 = vperm.xlu0 %2519, %v1049
        %v2521 = vpop.permute.xlu0 %2520
        %2523 = vset.pattern.permute.xlu0 1
        %2524 = vperm.xlu0 %2523, %v1058
        %v2525 = vpop.permute.xlu0 %2524
        %2527 = vset.pattern.permute.xlu0 1
        %2528 = vperm.xlu0 %2527, %v1067
        %v2529 = vpop.permute.xlu0 %2528
        %2531 = vset.pattern.permute.xlu0 1
        %2532 = vperm.xlu0 %2531, %v1076
        %v2533 = vpop.permute.xlu0 %2532
        %2535 = vset.pattern.permute.xlu0 1
        %2536 = vperm.xlu0 %2535, %v1085
        %v2537 = vpop.permute.xlu0 %2536
        %2539 = vset.pattern.permute.xlu0 1
        %2540 = vperm.xlu0 %2539, %v1094
        %v2541 = vpop.permute.xlu0 %2540
        %2543 = vset.pattern.permute.xlu0 1
        %2544 = vperm.xlu0 %2543, %v1103
        %v2545 = vpop.permute.xlu0 %2544
        %2547 = vset.pattern.permute.xlu0 1
        %2548 = vperm.xlu0 %2547, %v1112
        %v2549 = vpop.permute.xlu0 %2548
        %2551 = vset.pattern.permute.xlu0 1
        %2552 = vperm.xlu0 %2551, %v1121
        %v2553 = vpop.permute.xlu0 %2552
        %2555 = vset.pattern.permute.xlu0 1
        %2556 = vperm.xlu0 %2555, %v1130
        %v2557 = vpop.permute.xlu0 %2556
        %2559 = vset.pattern.permute.xlu0 1
        %2560 = vperm.xlu0 %2559, %v1139
        %v2561 = vpop.permute.xlu0 %2560
        %2563 = vset.pattern.permute.xlu0 1
        %2564 = vperm.xlu0 %2563, %v1148
        %v2565 = vpop.permute.xlu0 %2564
        %2567 = vset.pattern.permute.xlu0 1
        %2568 = vperm.xlu0 %2567, %v1157
        %v2569 = vpop.permute.xlu0 %2568
        %2571 = vset.pattern.permute.xlu0 1
        %2572 = vperm.xlu0 %2571, %v1166
        %v2573 = vpop.permute.xlu0 %2572
        %v2575 = vmul.f32 %v1031, %v2513
        %v2576 = vmul.f32 %v1040, %v2517
        %v2577 = vmul.f32 %v1049, %v2521
        %v2578 = vmul.f32 %v1058, %v2525
        %v2579 = vmul.f32 %v1067, %v2529
        %v2580 = vmul.f32 %v1076, %v2533
        %v2581 = vmul.f32 %v1085, %v2537
        %v2582 = vmul.f32 %v1094, %v2541
        %v2583 = vmul.f32 %v1103, %v2545
        %v2584 = vmul.f32 %v1112, %v2549
        %v2585 = vmul.f32 %v1121, %v2553
        %v2586 = vmul.f32 %v1130, %v2557
        %v2587 = vmul.f32 %v1139, %v2561
        %v2588 = vmul.f32 %v1148, %v2565
        %v2589 = vmul.f32 %v1157, %v2569
        %v2590 = vmul.f32 %v1166, %v2573
        %2591 = vset.pattern.permute.xlu0 1
        %2592 = vperm.xlu0 %2591, %v1335
        %v2593 = vpop.permute.xlu0 %2592
        %2595 = vset.pattern.permute.xlu0 1
        %2596 = vperm.xlu0 %2595, %v1344
        %v2597 = vpop.permute.xlu0 %2596
        %2599 = vset.pattern.permute.xlu0 1
        %2600 = vperm.xlu0 %2599, %v1353
        %v2601 = vpop.permute.xlu0 %2600
        %2603 = vset.pattern.permute.xlu0 1
        %2604 = vperm.xlu0 %2603, %v1362
        %v2605 = vpop.permute.xlu0 %2604
        %2607 = vset.pattern.permute.xlu0 1
        %2608 = vperm.xlu0 %2607, %v1371
        %v2609 = vpop.permute.xlu0 %2608
        %2611 = vset.pattern.permute.xlu0 1
        %2612 = vperm.xlu0 %2611, %v1380
        %v2613 = vpop.permute.xlu0 %2612
        %2615 = vset.pattern.permute.xlu0 1
        %2616 = vperm.xlu0 %2615, %v1389
        %v2617 = vpop.permute.xlu0 %2616
        %2619 = vset.pattern.permute.xlu0 1
        %2620 = vperm.xlu0 %2619, %v1398
        %v2621 = vpop.permute.xlu0 %2620
        %2623 = vset.pattern.permute.xlu0 1
        %2624 = vperm.xlu0 %2623, %v1407
        %v2625 = vpop.permute.xlu0 %2624
        %2627 = vset.pattern.permute.xlu0 1
        %2628 = vperm.xlu0 %2627, %v1416
        %v2629 = vpop.permute.xlu0 %2628
        %2631 = vset.pattern.permute.xlu0 1
        %2632 = vperm.xlu0 %2631, %v1425
        %v2633 = vpop.permute.xlu0 %2632
        %2635 = vset.pattern.permute.xlu0 1
        %2636 = vperm.xlu0 %2635, %v1434
        %v2637 = vpop.permute.xlu0 %2636
        %2639 = vset.pattern.permute.xlu0 1
        %2640 = vperm.xlu0 %2639, %v1443
        %v2641 = vpop.permute.xlu0 %2640
        %2643 = vset.pattern.permute.xlu0 1
        %2644 = vperm.xlu0 %2643, %v1452
        %v2645 = vpop.permute.xlu0 %2644
        %2647 = vset.pattern.permute.xlu0 1
        %2648 = vperm.xlu0 %2647, %v1461
        %v2649 = vpop.permute.xlu0 %2648
        %2651 = vset.pattern.permute.xlu0 1
        %2652 = vperm.xlu0 %2651, %v1470
        %v2653 = vpop.permute.xlu0 %2652
        %v2655 = vmul.f32 %v1335, %v2593
        %v2656 = vmul.f32 %v1344, %v2597
        %v2657 = vmul.f32 %v1353, %v2601
        %v2658 = vmul.f32 %v1362, %v2605
        %v2659 = vmul.f32 %v1371, %v2609
        %v2660 = vmul.f32 %v1380, %v2613
        %v2661 = vmul.f32 %v1389, %v2617
        %v2662 = vmul.f32 %v1398, %v2621
        %v2663 = vmul.f32 %v1407, %v2625
        %v2664 = vmul.f32 %v1416, %v2629
        %v2665 = vmul.f32 %v1425, %v2633
        %v2666 = vmul.f32 %v1434, %v2637
        %v2667 = vmul.f32 %v1443, %v2641
        %v2668 = vmul.f32 %v1452, %v2645
        %v2669 = vmul.f32 %v1461, %v2649
        %v2670 = vmul.f32 %v1470, %v2653
        %v2671 = vadd.f32 %v2575, %v2655
        %v2672 = vadd.f32 %v2576, %v2656
        %v2673 = vadd.f32 %v2577, %v2657
        %v2674 = vadd.f32 %v2578, %v2658
        %v2675 = vadd.f32 %v2579, %v2659
        %v2676 = vadd.f32 %v2580, %v2660
        %v2677 = vadd.f32 %v2581, %v2661
        %v2678 = vadd.f32 %v2582, %v2662
        %v2679 = vadd.f32 %v2583, %v2663
        %v2680 = vadd.f32 %v2584, %v2664
        %v2681 = vadd.f32 %v2585, %v2665
        %v2682 = vadd.f32 %v2586, %v2666
        %v2683 = vadd.f32 %v2587, %v2667
        %v2684 = vadd.f32 %v2588, %v2668
        %v2685 = vadd.f32 %v2589, %v2669
        %v2686 = vadd.f32 %v2590, %v2670
        %2687 = vset.pattern.permute.xlu0 1
        %2688 = vperm.xlu0 %2687, %v1639
        %v2689 = vpop.permute.xlu0 %2688
        %2691 = vset.pattern.permute.xlu0 1
        %2692 = vperm.xlu0 %2691, %v1648
        %v2693 = vpop.permute.xlu0 %2692
        %2695 = vset.pattern.permute.xlu0 1
        %2696 = vperm.xlu0 %2695, %v1657
        %v2697 = vpop.permute.xlu0 %2696
        %2699 = vset.pattern.permute.xlu0 1
        %2700 = vperm.xlu0 %2699, %v1666
        %v2701 = vpop.permute.xlu0 %2700
        %2703 = vset.pattern.permute.xlu0 1
        %2704 = vperm.xlu0 %2703, %v1675
        %v2705 = vpop.permute.xlu0 %2704
        %2707 = vset.pattern.permute.xlu0 1
        %2708 = vperm.xlu0 %2707, %v1684
        %v2709 = vpop.permute.xlu0 %2708
        %2711 = vset.pattern.permute.xlu0 1
        %2712 = vperm.xlu0 %2711, %v1693
        %v2713 = vpop.permute.xlu0 %2712
        %2715 = vset.pattern.permute.xlu0 1
        %2716 = vperm.xlu0 %2715, %v1702
        %v2717 = vpop.permute.xlu0 %2716
        %2719 = vset.pattern.permute.xlu0 1
        %2720 = vperm.xlu0 %2719, %v1711
        %v2721 = vpop.permute.xlu0 %2720
        %2723 = vset.pattern.permute.xlu0 1
        %2724 = vperm.xlu0 %2723, %v1720
        %v2725 = vpop.permute.xlu0 %2724
        %2727 = vset.pattern.permute.xlu0 1
        %2728 = vperm.xlu0 %2727, %v1729
        %v2729 = vpop.permute.xlu0 %2728
        %2731 = vset.pattern.permute.xlu0 1
        %2732 = vperm.xlu0 %2731, %v1738
        %v2733 = vpop.permute.xlu0 %2732
        %2735 = vset.pattern.permute.xlu0 1
        %2736 = vperm.xlu0 %2735, %v1747
        %v2737 = vpop.permute.xlu0 %2736
        %2739 = vset.pattern.permute.xlu0 1
        %2740 = vperm.xlu0 %2739, %v1756
        %v2741 = vpop.permute.xlu0 %2740
        %2743 = vset.pattern.permute.xlu0 1
        %2744 = vperm.xlu0 %2743, %v1765
        %v2745 = vpop.permute.xlu0 %2744
        %2747 = vset.pattern.permute.xlu0 1
        %2748 = vperm.xlu0 %2747, %v1774
        %v2749 = vpop.permute.xlu0 %2748
        %v2751 = vmul.f32 %v1639, %v2689
        %v2752 = vmul.f32 %v1648, %v2693
        %v2753 = vmul.f32 %v1657, %v2697
        %v2754 = vmul.f32 %v1666, %v2701
        %v2755 = vmul.f32 %v1675, %v2705
        %v2756 = vmul.f32 %v1684, %v2709
        %v2757 = vmul.f32 %v1693, %v2713
        %v2758 = vmul.f32 %v1702, %v2717
        %v2759 = vmul.f32 %v1711, %v2721
        %v2760 = vmul.f32 %v1720, %v2725
        %v2761 = vmul.f32 %v1729, %v2729
        %v2762 = vmul.f32 %v1738, %v2733
        %v2763 = vmul.f32 %v1747, %v2737
        %v2764 = vmul.f32 %v1756, %v2741
        %v2765 = vmul.f32 %v1765, %v2745
        %v2766 = vmul.f32 %v1774, %v2749
        %v2767 = vadd.f32 %v2671, %v2751
        %v2768 = vadd.f32 %v2672, %v2752
        %v2769 = vadd.f32 %v2673, %v2753
        %v2770 = vadd.f32 %v2674, %v2754
        %v2771 = vadd.f32 %v2675, %v2755
        %v2772 = vadd.f32 %v2676, %v2756
        %v2773 = vadd.f32 %v2677, %v2757
        %v2774 = vadd.f32 %v2678, %v2758
        %v2775 = vadd.f32 %v2679, %v2759
        %v2776 = vadd.f32 %v2680, %v2760
        %v2777 = vadd.f32 %v2681, %v2761
        %v2778 = vadd.f32 %v2682, %v2762
        %v2779 = vadd.f32 %v2683, %v2763
        %v2780 = vadd.f32 %v2684, %v2764
        %v2781 = vadd.f32 %v2685, %v2765
        %v2782 = vadd.f32 %v2686, %v2766
        %2783 = vset.pattern.permute.xlu0 1
        %2784 = vperm.xlu0 %2783, %v1943
        %v2785 = vpop.permute.xlu0 %2784
        %2787 = vset.pattern.permute.xlu0 1
        %2788 = vperm.xlu0 %2787, %v1952
        %v2789 = vpop.permute.xlu0 %2788
        %2791 = vset.pattern.permute.xlu0 1
        %2792 = vperm.xlu0 %2791, %v1961
        %v2793 = vpop.permute.xlu0 %2792
        %2795 = vset.pattern.permute.xlu0 1
        %2796 = vperm.xlu0 %2795, %v1970
        %v2797 = vpop.permute.xlu0 %2796
        %2799 = vset.pattern.permute.xlu0 1
        %2800 = vperm.xlu0 %2799, %v1979
        %v2801 = vpop.permute.xlu0 %2800
        %2803 = vset.pattern.permute.xlu0 1
        %2804 = vperm.xlu0 %2803, %v1988
        %v2805 = vpop.permute.xlu0 %2804
        %2807 = vset.pattern.permute.xlu0 1
        %2808 = vperm.xlu0 %2807, %v1997
        %v2809 = vpop.permute.xlu0 %2808
        %2811 = vset.pattern.permute.xlu0 1
        %2812 = vperm.xlu0 %2811, %v2006
        %v2813 = vpop.permute.xlu0 %2812
        %2815 = vset.pattern.permute.xlu0 1
        %2816 = vperm.xlu0 %2815, %v2015
        %v2817 = vpop.permute.xlu0 %2816
        %2819 = vset.pattern.permute.xlu0 1
        %2820 = vperm.xlu0 %2819, %v2024
        %v2821 = vpop.permute.xlu0 %2820
        %2823 = vset.pattern.permute.xlu0 1
        %2824 = vperm.xlu0 %2823, %v2033
        %v2825 = vpop.permute.xlu0 %2824
        %2827 = vset.pattern.permute.xlu0 1
        %2828 = vperm.xlu0 %2827, %v2042
        %v2829 = vpop.permute.xlu0 %2828
        %2831 = vset.pattern.permute.xlu0 1
        %2832 = vperm.xlu0 %2831, %v2051
        %v2833 = vpop.permute.xlu0 %2832
        %2835 = vset.pattern.permute.xlu0 1
        %2836 = vperm.xlu0 %2835, %v2060
        %v2837 = vpop.permute.xlu0 %2836
        %2839 = vset.pattern.permute.xlu0 1
        %2840 = vperm.xlu0 %2839, %v2069
        %v2841 = vpop.permute.xlu0 %2840
        %2843 = vset.pattern.permute.xlu0 1
        %2844 = vperm.xlu0 %2843, %v2078
        %v2845 = vpop.permute.xlu0 %2844
        %v2847 = vmul.f32 %v1943, %v2785
        %v2848 = vmul.f32 %v1952, %v2789
        %v2849 = vmul.f32 %v1961, %v2793
        %v2850 = vmul.f32 %v1970, %v2797
        %v2851 = vmul.f32 %v1979, %v2801
        %v2852 = vmul.f32 %v1988, %v2805
        %v2853 = vmul.f32 %v1997, %v2809
        %v2854 = vmul.f32 %v2006, %v2813
        %v2855 = vmul.f32 %v2015, %v2817
        %v2856 = vmul.f32 %v2024, %v2821
        %v2857 = vmul.f32 %v2033, %v2825
        %v2858 = vmul.f32 %v2042, %v2829
        %v2859 = vmul.f32 %v2051, %v2833
        %v2860 = vmul.f32 %v2060, %v2837
        %v2861 = vmul.f32 %v2069, %v2841
        %v2862 = vmul.f32 %v2078, %v2845
        %v2863 = vadd.f32 %v2767, %v2847
        %v2864 = vadd.f32 %v2768, %v2848
        %v2865 = vadd.f32 %v2769, %v2849
        %v2866 = vadd.f32 %v2770, %v2850
        %v2867 = vadd.f32 %v2771, %v2851
        %v2868 = vadd.f32 %v2772, %v2852
        %v2869 = vadd.f32 %v2773, %v2853
        %v2870 = vadd.f32 %v2774, %v2854
        %v2871 = vadd.f32 %v2775, %v2855
        %v2872 = vadd.f32 %v2776, %v2856
        %v2873 = vadd.f32 %v2777, %v2857
        %v2874 = vadd.f32 %v2778, %v2858
        %v2875 = vadd.f32 %v2779, %v2859
        %v2876 = vadd.f32 %v2780, %v2860
        %v2877 = vadd.f32 %v2781, %v2861
        %v2878 = vadd.f32 %v2782, %v2862
        %2879 = vset.pattern.permute.xlu0 2
        %2880 = vperm.xlu0 %2879, %v1031
        %v2881 = vpop.permute.xlu0 %2880
        %2883 = vset.pattern.permute.xlu0 2
        %2884 = vperm.xlu0 %2883, %v1040
        %v2885 = vpop.permute.xlu0 %2884
        %2887 = vset.pattern.permute.xlu0 2
        %2888 = vperm.xlu0 %2887, %v1049
        %v2889 = vpop.permute.xlu0 %2888
        %2891 = vset.pattern.permute.xlu0 2
        %2892 = vperm.xlu0 %2891, %v1058
        %v2893 = vpop.permute.xlu0 %2892
        %2895 = vset.pattern.permute.xlu0 2
        %2896 = vperm.xlu0 %2895, %v1067
        %v2897 = vpop.permute.xlu0 %2896
        %2899 = vset.pattern.permute.xlu0 2
        %2900 = vperm.xlu0 %2899, %v1076
        %v2901 = vpop.permute.xlu0 %2900
        %2903 = vset.pattern.permute.xlu0 2
        %2904 = vperm.xlu0 %2903, %v1085
        %v2905 = vpop.permute.xlu0 %2904
        %2907 = vset.pattern.permute.xlu0 2
        %2908 = vperm.xlu0 %2907, %v1094
        %v2909 = vpop.permute.xlu0 %2908
        %2911 = vset.pattern.permute.xlu0 2
        %2912 = vperm.xlu0 %2911, %v1103
        %v2913 = vpop.permute.xlu0 %2912
        %2915 = vset.pattern.permute.xlu0 2
        %2916 = vperm.xlu0 %2915, %v1112
        %v2917 = vpop.permute.xlu0 %2916
        %2919 = vset.pattern.permute.xlu0 2
        %2920 = vperm.xlu0 %2919, %v1121
        %v2921 = vpop.permute.xlu0 %2920
        %2923 = vset.pattern.permute.xlu0 2
        %2924 = vperm.xlu0 %2923, %v1130
        %v2925 = vpop.permute.xlu0 %2924
        %2927 = vset.pattern.permute.xlu0 2
        %2928 = vperm.xlu0 %2927, %v1139
        %v2929 = vpop.permute.xlu0 %2928
        %2931 = vset.pattern.permute.xlu0 2
        %2932 = vperm.xlu0 %2931, %v1148
        %v2933 = vpop.permute.xlu0 %2932
        %2935 = vset.pattern.permute.xlu0 2
        %2936 = vperm.xlu0 %2935, %v1157
        %v2937 = vpop.permute.xlu0 %2936
        %2939 = vset.pattern.permute.xlu0 2
        %2940 = vperm.xlu0 %2939, %v1166
        %v2941 = vpop.permute.xlu0 %2940
        %v2943 = vmul.f32 %v1031, %v2881
        %v2944 = vmul.f32 %v1040, %v2885
        %v2945 = vmul.f32 %v1049, %v2889
        %v2946 = vmul.f32 %v1058, %v2893
        %v2947 = vmul.f32 %v1067, %v2897
        %v2948 = vmul.f32 %v1076, %v2901
        %v2949 = vmul.f32 %v1085, %v2905
        %v2950 = vmul.f32 %v1094, %v2909
        %v2951 = vmul.f32 %v1103, %v2913
        %v2952 = vmul.f32 %v1112, %v2917
        %v2953 = vmul.f32 %v1121, %v2921
        %v2954 = vmul.f32 %v1130, %v2925
        %v2955 = vmul.f32 %v1139, %v2929
        %v2956 = vmul.f32 %v1148, %v2933
        %v2957 = vmul.f32 %v1157, %v2937
        %v2958 = vmul.f32 %v1166, %v2941
        %2959 = vset.pattern.permute.xlu0 2
        %2960 = vperm.xlu0 %2959, %v1335
        %v2961 = vpop.permute.xlu0 %2960
        %2963 = vset.pattern.permute.xlu0 2
        %2964 = vperm.xlu0 %2963, %v1344
        %v2965 = vpop.permute.xlu0 %2964
        %2967 = vset.pattern.permute.xlu0 2
        %2968 = vperm.xlu0 %2967, %v1353
        %v2969 = vpop.permute.xlu0 %2968
        %2971 = vset.pattern.permute.xlu0 2
        %2972 = vperm.xlu0 %2971, %v1362
        %v2973 = vpop.permute.xlu0 %2972
        %2975 = vset.pattern.permute.xlu0 2
        %2976 = vperm.xlu0 %2975, %v1371
        %v2977 = vpop.permute.xlu0 %2976
        %2979 = vset.pattern.permute.xlu0 2
        %2980 = vperm.xlu0 %2979, %v1380
        %v2981 = vpop.permute.xlu0 %2980
        %2983 = vset.pattern.permute.xlu0 2
        %2984 = vperm.xlu0 %2983, %v1389
        %v2985 = vpop.permute.xlu0 %2984
        %2987 = vset.pattern.permute.xlu0 2
        %2988 = vperm.xlu0 %2987, %v1398
        %v2989 = vpop.permute.xlu0 %2988
        %2991 = vset.pattern.permute.xlu0 2
        %2992 = vperm.xlu0 %2991, %v1407
        %v2993 = vpop.permute.xlu0 %2992
        %2995 = vset.pattern.permute.xlu0 2
        %2996 = vperm.xlu0 %2995, %v1416
        %v2997 = vpop.permute.xlu0 %2996
        %2999 = vset.pattern.permute.xlu0 2
        %3000 = vperm.xlu0 %2999, %v1425
        %v3001 = vpop.permute.xlu0 %3000
        %3003 = vset.pattern.permute.xlu0 2
        %3004 = vperm.xlu0 %3003, %v1434
        %v3005 = vpop.permute.xlu0 %3004
        %3007 = vset.pattern.permute.xlu0 2
        %3008 = vperm.xlu0 %3007, %v1443
        %v3009 = vpop.permute.xlu0 %3008
        %3011 = vset.pattern.permute.xlu0 2
        %3012 = vperm.xlu0 %3011, %v1452
        %v3013 = vpop.permute.xlu0 %3012
        %3015 = vset.pattern.permute.xlu0 2
        %3016 = vperm.xlu0 %3015, %v1461
        %v3017 = vpop.permute.xlu0 %3016
        %3019 = vset.pattern.permute.xlu0 2
        %3020 = vperm.xlu0 %3019, %v1470
        %v3021 = vpop.permute.xlu0 %3020
        %v3023 = vmul.f32 %v1335, %v2961
        %v3024 = vmul.f32 %v1344, %v2965
        %v3025 = vmul.f32 %v1353, %v2969
        %v3026 = vmul.f32 %v1362, %v2973
        %v3027 = vmul.f32 %v1371, %v2977
        %v3028 = vmul.f32 %v1380, %v2981
        %v3029 = vmul.f32 %v1389, %v2985
        %v3030 = vmul.f32 %v1398, %v2989
        %v3031 = vmul.f32 %v1407, %v2993
        %v3032 = vmul.f32 %v1416, %v2997
        %v3033 = vmul.f32 %v1425, %v3001
        %v3034 = vmul.f32 %v1434, %v3005
        %v3035 = vmul.f32 %v1443, %v3009
        %v3036 = vmul.f32 %v1452, %v3013
        %v3037 = vmul.f32 %v1461, %v3017
        %v3038 = vmul.f32 %v1470, %v3021
        %v3039 = vadd.f32 %v2943, %v3023
        %v3040 = vadd.f32 %v2944, %v3024
        %v3041 = vadd.f32 %v2945, %v3025
        %v3042 = vadd.f32 %v2946, %v3026
        %v3043 = vadd.f32 %v2947, %v3027
        %v3044 = vadd.f32 %v2948, %v3028
        %v3045 = vadd.f32 %v2949, %v3029
        %v3046 = vadd.f32 %v2950, %v3030
        %v3047 = vadd.f32 %v2951, %v3031
        %v3048 = vadd.f32 %v2952, %v3032
        %v3049 = vadd.f32 %v2953, %v3033
        %v3050 = vadd.f32 %v2954, %v3034
        %v3051 = vadd.f32 %v2955, %v3035
        %v3052 = vadd.f32 %v2956, %v3036
        %v3053 = vadd.f32 %v2957, %v3037
        %v3054 = vadd.f32 %v2958, %v3038
        %3055 = vset.pattern.permute.xlu0 2
        %3056 = vperm.xlu0 %3055, %v1639
        %v3057 = vpop.permute.xlu0 %3056
        %3059 = vset.pattern.permute.xlu0 2
        %3060 = vperm.xlu0 %3059, %v1648
        %v3061 = vpop.permute.xlu0 %3060
        %3063 = vset.pattern.permute.xlu0 2
        %3064 = vperm.xlu0 %3063, %v1657
        %v3065 = vpop.permute.xlu0 %3064
        %3067 = vset.pattern.permute.xlu0 2
        %3068 = vperm.xlu0 %3067, %v1666
        %v3069 = vpop.permute.xlu0 %3068
        %3071 = vset.pattern.permute.xlu0 2
        %3072 = vperm.xlu0 %3071, %v1675
        %v3073 = vpop.permute.xlu0 %3072
        %3075 = vset.pattern.permute.xlu0 2
        %3076 = vperm.xlu0 %3075, %v1684
        %v3077 = vpop.permute.xlu0 %3076
        %3079 = vset.pattern.permute.xlu0 2
        %3080 = vperm.xlu0 %3079, %v1693
        %v3081 = vpop.permute.xlu0 %3080
        %3083 = vset.pattern.permute.xlu0 2
        %3084 = vperm.xlu0 %3083, %v1702
        %v3085 = vpop.permute.xlu0 %3084
        %3087 = vset.pattern.permute.xlu0 2
        %3088 = vperm.xlu0 %3087, %v1711
        %v3089 = vpop.permute.xlu0 %3088
        %3091 = vset.pattern.permute.xlu0 2
        %3092 = vperm.xlu0 %3091, %v1720
        %v3093 = vpop.permute.xlu0 %3092
        %3095 = vset.pattern.permute.xlu0 2
        %3096 = vperm.xlu0 %3095, %v1729
        %v3097 = vpop.permute.xlu0 %3096
        %3099 = vset.pattern.permute.xlu0 2
        %3100 = vperm.xlu0 %3099, %v1738
        %v3101 = vpop.permute.xlu0 %3100
        %3103 = vset.pattern.permute.xlu0 2
        %3104 = vperm.xlu0 %3103, %v1747
        %v3105 = vpop.permute.xlu0 %3104
        %3107 = vset.pattern.permute.xlu0 2
        %3108 = vperm.xlu0 %3107, %v1756
        %v3109 = vpop.permute.xlu0 %3108
        %3111 = vset.pattern.permute.xlu0 2
        %3112 = vperm.xlu0 %3111, %v1765
        %v3113 = vpop.permute.xlu0 %3112
        %3115 = vset.pattern.permute.xlu0 2
        %3116 = vperm.xlu0 %3115, %v1774
        %v3117 = vpop.permute.xlu0 %3116
        %v3119 = vmul.f32 %v1639, %v3057
        %v3120 = vmul.f32 %v1648, %v3061
        %v3121 = vmul.f32 %v1657, %v3065
        %v3122 = vmul.f32 %v1666, %v3069
        %v3123 = vmul.f32 %v1675, %v3073
        %v3124 = vmul.f32 %v1684, %v3077
        %v3125 = vmul.f32 %v1693, %v3081
        %v3126 = vmul.f32 %v1702, %v3085
        %v3127 = vmul.f32 %v1711, %v3089
        %v3128 = vmul.f32 %v1720, %v3093
        %v3129 = vmul.f32 %v1729, %v3097
        %v3130 = vmul.f32 %v1738, %v3101
        %v3131 = vmul.f32 %v1747, %v3105
        %v3132 = vmul.f32 %v1756, %v3109
        %v3133 = vmul.f32 %v1765, %v3113
        %v3134 = vmul.f32 %v1774, %v3117
        %v3135 = vadd.f32 %v3039, %v3119
        %v3136 = vadd.f32 %v3040, %v3120
        %v3137 = vadd.f32 %v3041, %v3121
        %v3138 = vadd.f32 %v3042, %v3122
        %v3139 = vadd.f32 %v3043, %v3123
        %v3140 = vadd.f32 %v3044, %v3124
        %v3141 = vadd.f32 %v3045, %v3125
        %v3142 = vadd.f32 %v3046, %v3126
        %v3143 = vadd.f32 %v3047, %v3127
        %v3144 = vadd.f32 %v3048, %v3128
        %v3145 = vadd.f32 %v3049, %v3129
        %v3146 = vadd.f32 %v3050, %v3130
        %v3147 = vadd.f32 %v3051, %v3131
        %v3148 = vadd.f32 %v3052, %v3132
        %v3149 = vadd.f32 %v3053, %v3133
        %v3150 = vadd.f32 %v3054, %v3134
        %3151 = vset.pattern.permute.xlu0 2
        %3152 = vperm.xlu0 %3151, %v1943
        %v3153 = vpop.permute.xlu0 %3152
        %3155 = vset.pattern.permute.xlu0 2
        %3156 = vperm.xlu0 %3155, %v1952
        %v3157 = vpop.permute.xlu0 %3156
        %3159 = vset.pattern.permute.xlu0 2
        %3160 = vperm.xlu0 %3159, %v1961
        %v3161 = vpop.permute.xlu0 %3160
        %3163 = vset.pattern.permute.xlu0 2
        %3164 = vperm.xlu0 %3163, %v1970
        %v3165 = vpop.permute.xlu0 %3164
        %3167 = vset.pattern.permute.xlu0 2
        %3168 = vperm.xlu0 %3167, %v1979
        %v3169 = vpop.permute.xlu0 %3168
        %3171 = vset.pattern.permute.xlu0 2
        %3172 = vperm.xlu0 %3171, %v1988
        %v3173 = vpop.permute.xlu0 %3172
        %3175 = vset.pattern.permute.xlu0 2
        %3176 = vperm.xlu0 %3175, %v1997
        %v3177 = vpop.permute.xlu0 %3176
        %3179 = vset.pattern.permute.xlu0 2
        %3180 = vperm.xlu0 %3179, %v2006
        %v3181 = vpop.permute.xlu0 %3180
        %3183 = vset.pattern.permute.xlu0 2
        %3184 = vperm.xlu0 %3183, %v2015
        %v3185 = vpop.permute.xlu0 %3184
        %3187 = vset.pattern.permute.xlu0 2
        %3188 = vperm.xlu0 %3187, %v2024
        %v3189 = vpop.permute.xlu0 %3188
        %3191 = vset.pattern.permute.xlu0 2
        %3192 = vperm.xlu0 %3191, %v2033
        %v3193 = vpop.permute.xlu0 %3192
        %3195 = vset.pattern.permute.xlu0 2
        %3196 = vperm.xlu0 %3195, %v2042
        %v3197 = vpop.permute.xlu0 %3196
        %3199 = vset.pattern.permute.xlu0 2
        %3200 = vperm.xlu0 %3199, %v2051
        %v3201 = vpop.permute.xlu0 %3200
        %3203 = vset.pattern.permute.xlu0 2
        %3204 = vperm.xlu0 %3203, %v2060
        %v3205 = vpop.permute.xlu0 %3204
        %3207 = vset.pattern.permute.xlu0 2
        %3208 = vperm.xlu0 %3207, %v2069
        %v3209 = vpop.permute.xlu0 %3208
        %3211 = vset.pattern.permute.xlu0 2
        %3212 = vperm.xlu0 %3211, %v2078
        %v3213 = vpop.permute.xlu0 %3212
        %v3215 = vmul.f32 %v1943, %v3153
        %v3216 = vmul.f32 %v1952, %v3157
        %v3217 = vmul.f32 %v1961, %v3161
        %v3218 = vmul.f32 %v1970, %v3165
        %v3219 = vmul.f32 %v1979, %v3169
        %v3220 = vmul.f32 %v1988, %v3173
        %v3221 = vmul.f32 %v1997, %v3177
        %v3222 = vmul.f32 %v2006, %v3181
        %v3223 = vmul.f32 %v2015, %v3185
        %v3224 = vmul.f32 %v2024, %v3189
        %v3225 = vmul.f32 %v2033, %v3193
        %v3226 = vmul.f32 %v2042, %v3197
        %v3227 = vmul.f32 %v2051, %v3201
        %v3228 = vmul.f32 %v2060, %v3205
        %v3229 = vmul.f32 %v2069, %v3209
        %v3230 = vmul.f32 %v2078, %v3213
        %v3231 = vadd.f32 %v3135, %v3215
        %v3232 = vadd.f32 %v3136, %v3216
        %v3233 = vadd.f32 %v3137, %v3217
        %v3234 = vadd.f32 %v3138, %v3218
        %v3235 = vadd.f32 %v3139, %v3219
        %v3236 = vadd.f32 %v3140, %v3220
        %v3237 = vadd.f32 %v3141, %v3221
        %v3238 = vadd.f32 %v3142, %v3222
        %v3239 = vadd.f32 %v3143, %v3223
        %v3240 = vadd.f32 %v3144, %v3224
        %v3241 = vadd.f32 %v3145, %v3225
        %v3242 = vadd.f32 %v3146, %v3226
        %v3243 = vadd.f32 %v3147, %v3227
        %v3244 = vadd.f32 %v3148, %v3228
        %v3245 = vadd.f32 %v3149, %v3229
        %v3246 = vadd.f32 %v3150, %v3230
        %3247 = vset.pattern.permute.xlu0 3
        %3248 = vperm.xlu0 %3247, %v1031
        %v3249 = vpop.permute.xlu0 %3248
        %3251 = vset.pattern.permute.xlu0 3
        %3252 = vperm.xlu0 %3251, %v1040
        %v3253 = vpop.permute.xlu0 %3252
        %3255 = vset.pattern.permute.xlu0 3
        %3256 = vperm.xlu0 %3255, %v1049
        %v3257 = vpop.permute.xlu0 %3256
        %3259 = vset.pattern.permute.xlu0 3
        %3260 = vperm.xlu0 %3259, %v1058
        %v3261 = vpop.permute.xlu0 %3260
        %3263 = vset.pattern.permute.xlu0 3
        %3264 = vperm.xlu0 %3263, %v1067
        %v3265 = vpop.permute.xlu0 %3264
        %3267 = vset.pattern.permute.xlu0 3
        %3268 = vperm.xlu0 %3267, %v1076
        %v3269 = vpop.permute.xlu0 %3268
        %3271 = vset.pattern.permute.xlu0 3
        %3272 = vperm.xlu0 %3271, %v1085
        %v3273 = vpop.permute.xlu0 %3272
        %3275 = vset.pattern.permute.xlu0 3
        %3276 = vperm.xlu0 %3275, %v1094
        %v3277 = vpop.permute.xlu0 %3276
        %3279 = vset.pattern.permute.xlu0 3
        %3280 = vperm.xlu0 %3279, %v1103
        %v3281 = vpop.permute.xlu0 %3280
        %3283 = vset.pattern.permute.xlu0 3
        %3284 = vperm.xlu0 %3283, %v1112
        %v3285 = vpop.permute.xlu0 %3284
        %3287 = vset.pattern.permute.xlu0 3
        %3288 = vperm.xlu0 %3287, %v1121
        %v3289 = vpop.permute.xlu0 %3288
        %3291 = vset.pattern.permute.xlu0 3
        %3292 = vperm.xlu0 %3291, %v1130
        %v3293 = vpop.permute.xlu0 %3292
        %3295 = vset.pattern.permute.xlu0 3
        %3296 = vperm.xlu0 %3295, %v1139
        %v3297 = vpop.permute.xlu0 %3296
        %3299 = vset.pattern.permute.xlu0 3
        %3300 = vperm.xlu0 %3299, %v1148
        %v3301 = vpop.permute.xlu0 %3300
        %3303 = vset.pattern.permute.xlu0 3
        %3304 = vperm.xlu0 %3303, %v1157
        %v3305 = vpop.permute.xlu0 %3304
        %3307 = vset.pattern.permute.xlu0 3
        %3308 = vperm.xlu0 %3307, %v1166
        %v3309 = vpop.permute.xlu0 %3308
        %v3311 = vmul.f32 %v1031, %v3249
        %v3312 = vmul.f32 %v1040, %v3253
        %v3313 = vmul.f32 %v1049, %v3257
        %v3314 = vmul.f32 %v1058, %v3261
        %v3315 = vmul.f32 %v1067, %v3265
        %v3316 = vmul.f32 %v1076, %v3269
        %v3317 = vmul.f32 %v1085, %v3273
        %v3318 = vmul.f32 %v1094, %v3277
        %v3319 = vmul.f32 %v1103, %v3281
        %v3320 = vmul.f32 %v1112, %v3285
        %v3321 = vmul.f32 %v1121, %v3289
        %v3322 = vmul.f32 %v1130, %v3293
        %v3323 = vmul.f32 %v1139, %v3297
        %v3324 = vmul.f32 %v1148, %v3301
        %v3325 = vmul.f32 %v1157, %v3305
        %v3326 = vmul.f32 %v1166, %v3309
        %3327 = vset.pattern.permute.xlu0 3
        %3328 = vperm.xlu0 %3327, %v1335
        %v3329 = vpop.permute.xlu0 %3328
        %3331 = vset.pattern.permute.xlu0 3
        %3332 = vperm.xlu0 %3331, %v1344
        %v3333 = vpop.permute.xlu0 %3332
        %3335 = vset.pattern.permute.xlu0 3
        %3336 = vperm.xlu0 %3335, %v1353
        %v3337 = vpop.permute.xlu0 %3336
        %3339 = vset.pattern.permute.xlu0 3
        %3340 = vperm.xlu0 %3339, %v1362
        %v3341 = vpop.permute.xlu0 %3340
        %3343 = vset.pattern.permute.xlu0 3
        %3344 = vperm.xlu0 %3343, %v1371
        %v3345 = vpop.permute.xlu0 %3344
        %3347 = vset.pattern.permute.xlu0 3
        %3348 = vperm.xlu0 %3347, %v1380
        %v3349 = vpop.permute.xlu0 %3348
        %3351 = vset.pattern.permute.xlu0 3
        %3352 = vperm.xlu0 %3351, %v1389
        %v3353 = vpop.permute.xlu0 %3352
        %3355 = vset.pattern.permute.xlu0 3
        %3356 = vperm.xlu0 %3355, %v1398
        %v3357 = vpop.permute.xlu0 %3356
        %3359 = vset.pattern.permute.xlu0 3
        %3360 = vperm.xlu0 %3359, %v1407
        %v3361 = vpop.permute.xlu0 %3360
        %3363 = vset.pattern.permute.xlu0 3
        %3364 = vperm.xlu0 %3363, %v1416
        %v3365 = vpop.permute.xlu0 %3364
        %3367 = vset.pattern.permute.xlu0 3
        %3368 = vperm.xlu0 %3367, %v1425
        %v3369 = vpop.permute.xlu0 %3368
        %3371 = vset.pattern.permute.xlu0 3
        %3372 = vperm.xlu0 %3371, %v1434
        %v3373 = vpop.permute.xlu0 %3372
        %3375 = vset.pattern.permute.xlu0 3
        %3376 = vperm.xlu0 %3375, %v1443
        %v3377 = vpop.permute.xlu0 %3376
        %3379 = vset.pattern.permute.xlu0 3
        %3380 = vperm.xlu0 %3379, %v1452
        %v3381 = vpop.permute.xlu0 %3380
        %3383 = vset.pattern.permute.xlu0 3
        %3384 = vperm.xlu0 %3383, %v1461
        %v3385 = vpop.permute.xlu0 %3384
        %3387 = vset.pattern.permute.xlu0 3
        %3388 = vperm.xlu0 %3387, %v1470
        %v3389 = vpop.permute.xlu0 %3388
        %v3391 = vmul.f32 %v1335, %v3329
        %v3392 = vmul.f32 %v1344, %v3333
        %v3393 = vmul.f32 %v1353, %v3337
        %v3394 = vmul.f32 %v1362, %v3341
        %v3395 = vmul.f32 %v1371, %v3345
        %v3396 = vmul.f32 %v1380, %v3349
        %v3397 = vmul.f32 %v1389, %v3353
        %v3398 = vmul.f32 %v1398, %v3357
        %v3399 = vmul.f32 %v1407, %v3361
        %v3400 = vmul.f32 %v1416, %v3365
        %v3401 = vmul.f32 %v1425, %v3369
        %v3402 = vmul.f32 %v1434, %v3373
        %v3403 = vmul.f32 %v1443, %v3377
        %v3404 = vmul.f32 %v1452, %v3381
        %v3405 = vmul.f32 %v1461, %v3385
        %v3406 = vmul.f32 %v1470, %v3389
        %v3407 = vadd.f32 %v3311, %v3391
        %v3408 = vadd.f32 %v3312, %v3392
        %v3409 = vadd.f32 %v3313, %v3393
        %v3410 = vadd.f32 %v3314, %v3394
        %v3411 = vadd.f32 %v3315, %v3395
        %v3412 = vadd.f32 %v3316, %v3396
        %v3413 = vadd.f32 %v3317, %v3397
        %v3414 = vadd.f32 %v3318, %v3398
        %v3415 = vadd.f32 %v3319, %v3399
        %v3416 = vadd.f32 %v3320, %v3400
        %v3417 = vadd.f32 %v3321, %v3401
        %v3418 = vadd.f32 %v3322, %v3402
        %v3419 = vadd.f32 %v3323, %v3403
        %v3420 = vadd.f32 %v3324, %v3404
        %v3421 = vadd.f32 %v3325, %v3405
        %v3422 = vadd.f32 %v3326, %v3406
        %3423 = vset.pattern.permute.xlu0 3
        %3424 = vperm.xlu0 %3423, %v1639
        %v3425 = vpop.permute.xlu0 %3424
        %3427 = vset.pattern.permute.xlu0 3
        %3428 = vperm.xlu0 %3427, %v1648
        %v3429 = vpop.permute.xlu0 %3428
        %3431 = vset.pattern.permute.xlu0 3
        %3432 = vperm.xlu0 %3431, %v1657
        %v3433 = vpop.permute.xlu0 %3432
        %3435 = vset.pattern.permute.xlu0 3
        %3436 = vperm.xlu0 %3435, %v1666
        %v3437 = vpop.permute.xlu0 %3436
        %3439 = vset.pattern.permute.xlu0 3
        %3440 = vperm.xlu0 %3439, %v1675
        %v3441 = vpop.permute.xlu0 %3440
        %3443 = vset.pattern.permute.xlu0 3
        %3444 = vperm.xlu0 %3443, %v1684
        %v3445 = vpop.permute.xlu0 %3444
        %3447 = vset.pattern.permute.xlu0 3
        %3448 = vperm.xlu0 %3447, %v1693
        %v3449 = vpop.permute.xlu0 %3448
        %3451 = vset.pattern.permute.xlu0 3
        %3452 = vperm.xlu0 %3451, %v1702
        %v3453 = vpop.permute.xlu0 %3452
        %3455 = vset.pattern.permute.xlu0 3
        %3456 = vperm.xlu0 %3455, %v1711
        %v3457 = vpop.permute.xlu0 %3456
        %3459 = vset.pattern.permute.xlu0 3
        %3460 = vperm.xlu0 %3459, %v1720
        %v3461 = vpop.permute.xlu0 %3460
        %3463 = vset.pattern.permute.xlu0 3
        %3464 = vperm.xlu0 %3463, %v1729
        %v3465 = vpop.permute.xlu0 %3464
        %3467 = vset.pattern.permute.xlu0 3
        %3468 = vperm.xlu0 %3467, %v1738
        %v3469 = vpop.permute.xlu0 %3468
        %3471 = vset.pattern.permute.xlu0 3
        %3472 = vperm.xlu0 %3471, %v1747
        %v3473 = vpop.permute.xlu0 %3472
        %3475 = vset.pattern.permute.xlu0 3
        %3476 = vperm.xlu0 %3475, %v1756
        %v3477 = vpop.permute.xlu0 %3476
        %3479 = vset.pattern.permute.xlu0 3
        %3480 = vperm.xlu0 %3479, %v1765
        %v3481 = vpop.permute.xlu0 %3480
        %3483 = vset.pattern.permute.xlu0 3
        %3484 = vperm.xlu0 %3483, %v1774
        %v3485 = vpop.permute.xlu0 %3484
        %v3487 = vmul.f32 %v1639, %v3425
        %v3488 = vmul.f32 %v1648, %v3429
        %v3489 = vmul.f32 %v1657, %v3433
        %v3490 = vmul.f32 %v1666, %v3437
        %v3491 = vmul.f32 %v1675, %v3441
        %v3492 = vmul.f32 %v1684, %v3445
        %v3493 = vmul.f32 %v1693, %v3449
        %v3494 = vmul.f32 %v1702, %v3453
        %v3495 = vmul.f32 %v1711, %v3457
        %v3496 = vmul.f32 %v1720, %v3461
        %v3497 = vmul.f32 %v1729, %v3465
        %v3498 = vmul.f32 %v1738, %v3469
        %v3499 = vmul.f32 %v1747, %v3473
        %v3500 = vmul.f32 %v1756, %v3477
        %v3501 = vmul.f32 %v1765, %v3481
        %v3502 = vmul.f32 %v1774, %v3485
        %v3503 = vadd.f32 %v3407, %v3487
        %v3504 = vadd.f32 %v3408, %v3488
        %v3505 = vadd.f32 %v3409, %v3489
        %v3506 = vadd.f32 %v3410, %v3490
        %v3507 = vadd.f32 %v3411, %v3491
        %v3508 = vadd.f32 %v3412, %v3492
        %v3509 = vadd.f32 %v3413, %v3493
        %v3510 = vadd.f32 %v3414, %v3494
        %v3511 = vadd.f32 %v3415, %v3495
        %v3512 = vadd.f32 %v3416, %v3496
        %v3513 = vadd.f32 %v3417, %v3497
        %v3514 = vadd.f32 %v3418, %v3498
        %v3515 = vadd.f32 %v3419, %v3499
        %v3516 = vadd.f32 %v3420, %v3500
        %v3517 = vadd.f32 %v3421, %v3501
        %v3518 = vadd.f32 %v3422, %v3502
        %3519 = vset.pattern.permute.xlu0 3
        %3520 = vperm.xlu0 %3519, %v1943
        %v3521 = vpop.permute.xlu0 %3520
        %3523 = vset.pattern.permute.xlu0 3
        %3524 = vperm.xlu0 %3523, %v1952
        %v3525 = vpop.permute.xlu0 %3524
        %3527 = vset.pattern.permute.xlu0 3
        %3528 = vperm.xlu0 %3527, %v1961
        %v3529 = vpop.permute.xlu0 %3528
        %3531 = vset.pattern.permute.xlu0 3
        %3532 = vperm.xlu0 %3531, %v1970
        %v3533 = vpop.permute.xlu0 %3532
        %3535 = vset.pattern.permute.xlu0 3
        %3536 = vperm.xlu0 %3535, %v1979
        %v3537 = vpop.permute.xlu0 %3536
        %3539 = vset.pattern.permute.xlu0 3
        %3540 = vperm.xlu0 %3539, %v1988
        %v3541 = vpop.permute.xlu0 %3540
        %3543 = vset.pattern.permute.xlu0 3
        %3544 = vperm.xlu0 %3543, %v1997
        %v3545 = vpop.permute.xlu0 %3544
        %3547 = vset.pattern.permute.xlu0 3
        %3548 = vperm.xlu0 %3547, %v2006
        %v3549 = vpop.permute.xlu0 %3548
        %3551 = vset.pattern.permute.xlu0 3
        %3552 = vperm.xlu0 %3551, %v2015
        %v3553 = vpop.permute.xlu0 %3552
        %3555 = vset.pattern.permute.xlu0 3
        %3556 = vperm.xlu0 %3555, %v2024
        %v3557 = vpop.permute.xlu0 %3556
        %3559 = vset.pattern.permute.xlu0 3
        %3560 = vperm.xlu0 %3559, %v2033
        %v3561 = vpop.permute.xlu0 %3560
        %3563 = vset.pattern.permute.xlu0 3
        %3564 = vperm.xlu0 %3563, %v2042
        %v3565 = vpop.permute.xlu0 %3564
        %3567 = vset.pattern.permute.xlu0 3
        %3568 = vperm.xlu0 %3567, %v2051
        %v3569 = vpop.permute.xlu0 %3568
        %3571 = vset.pattern.permute.xlu0 3
        %3572 = vperm.xlu0 %3571, %v2060
        %v3573 = vpop.permute.xlu0 %3572
        %3575 = vset.pattern.permute.xlu0 3
        %3576 = vperm.xlu0 %3575, %v2069
        %v3577 = vpop.permute.xlu0 %3576
        %3579 = vset.pattern.permute.xlu0 3
        %3580 = vperm.xlu0 %3579, %v2078
        %v3581 = vpop.permute.xlu0 %3580
        %v3583 = vmul.f32 %v1943, %v3521
        %v3584 = vmul.f32 %v1952, %v3525
        %v3585 = vmul.f32 %v1961, %v3529
        %v3586 = vmul.f32 %v1970, %v3533
        %v3587 = vmul.f32 %v1979, %v3537
        %v3588 = vmul.f32 %v1988, %v3541
        %v3589 = vmul.f32 %v1997, %v3545
        %v3590 = vmul.f32 %v2006, %v3549
        %v3591 = vmul.f32 %v2015, %v3553
        %v3592 = vmul.f32 %v2024, %v3557
        %v3593 = vmul.f32 %v2033, %v3561
        %v3594 = vmul.f32 %v2042, %v3565
        %v3595 = vmul.f32 %v2051, %v3569
        %v3596 = vmul.f32 %v2060, %v3573
        %v3597 = vmul.f32 %v2069, %v3577
        %v3598 = vmul.f32 %v2078, %v3581
        %v3599 = vadd.f32 %v3503, %v3583
        %v3600 = vadd.f32 %v3504, %v3584
        %v3601 = vadd.f32 %v3505, %v3585
        %v3602 = vadd.f32 %v3506, %v3586
        %v3603 = vadd.f32 %v3507, %v3587
        %v3604 = vadd.f32 %v3508, %v3588
        %v3605 = vadd.f32 %v3509, %v3589
        %v3606 = vadd.f32 %v3510, %v3590
        %v3607 = vadd.f32 %v3511, %v3591
        %v3608 = vadd.f32 %v3512, %v3592
        %v3609 = vadd.f32 %v3513, %v3593
        %v3610 = vadd.f32 %v3514, %v3594
        %v3611 = vadd.f32 %v3515, %v3595
        %v3612 = vadd.f32 %v3516, %v3596
        %v3613 = vadd.f32 %v3517, %v3597
        %v3614 = vadd.f32 %v3518, %v3598
        %vm3631 = vcmask 1041409
        %v3632 = vsel %vm3631, %v2496, %v2495
        %vm3633 = vcmask 1042434
        %v3634 = vsel %vm3633, %v2497, %v3632
        %vm3635 = vcmask 1043459
        %v3636 = vsel %vm3635, %v2498, %v3634
        %vm3637 = vcmask 1044484
        %v3638 = vsel %vm3637, %v2499, %v3636
        %vm3639 = vcmask 1045509
        %v3640 = vsel %vm3639, %v2500, %v3638
        %vm3641 = vcmask 1046534
        %v3642 = vsel %vm3641, %v2501, %v3640
        %vm3643 = vcmask 1047559
        %v3644 = vsel %vm3643, %v2502, %v3642
        %v3645 = vsel %vm3631, %v2504, %v2503
        %v3646 = vsel %vm3633, %v2505, %v3645
        %v3647 = vsel %vm3635, %v2506, %v3646
        %v3648 = vsel %vm3637, %v2507, %v3647
        %v3649 = vsel %vm3639, %v2508, %v3648
        %v3650 = vsel %vm3641, %v2509, %v3649
        %v3651 = vsel %vm3643, %v2510, %v3650
        %v3670 = vsel %vm3631, %v2864, %v2863
        %v3671 = vsel %vm3633, %v2865, %v3670
        %v3672 = vsel %vm3635, %v2866, %v3671
        %v3673 = vsel %vm3637, %v2867, %v3672
        %v3674 = vsel %vm3639, %v2868, %v3673
        %v3675 = vsel %vm3641, %v2869, %v3674
        %v3676 = vsel %vm3643, %v2870, %v3675
        %v3677 = vsel %vm3631, %v2872, %v2871
        %v3678 = vsel %vm3633, %v2873, %v3677
        %v3679 = vsel %vm3635, %v2874, %v3678
        %v3680 = vsel %vm3637, %v2875, %v3679
        %v3681 = vsel %vm3639, %v2876, %v3680
        %v3682 = vsel %vm3641, %v2877, %v3681
        %v3683 = vsel %vm3643, %v2878, %v3682
        %3684 = vrot.lane.b32.xlu0 %v3676, 16
        %v3685 = vpop.permute.xlu0 %3684
        %3686 = vrot.lane.b32.xlu0 %v3683, 16
        %v3687 = vpop.permute.xlu0 %3686
        %v3706 = vsel %vm3631, %v3232, %v3231
        %v3707 = vsel %vm3633, %v3233, %v3706
        %v3708 = vsel %vm3635, %v3234, %v3707
        %v3709 = vsel %vm3637, %v3235, %v3708
        %v3710 = vsel %vm3639, %v3236, %v3709
        %v3711 = vsel %vm3641, %v3237, %v3710
        %v3712 = vsel %vm3643, %v3238, %v3711
        %v3713 = vsel %vm3631, %v3240, %v3239
        %v3714 = vsel %vm3633, %v3241, %v3713
        %v3715 = vsel %vm3635, %v3242, %v3714
        %v3716 = vsel %vm3637, %v3243, %v3715
        %v3717 = vsel %vm3639, %v3244, %v3716
        %v3718 = vsel %vm3641, %v3245, %v3717
        %v3719 = vsel %vm3643, %v3246, %v3718
        %3720 = vrot.lane.b32.xlu0 %v3712, 32
        %v3721 = vpop.permute.xlu0 %3720
        %3722 = vrot.lane.b32.xlu0 %v3719, 32
        %v3723 = vpop.permute.xlu0 %3722
        %v3742 = vsel %vm3631, %v3600, %v3599
        %v3743 = vsel %vm3633, %v3601, %v3742
        %v3744 = vsel %vm3635, %v3602, %v3743
        %v3745 = vsel %vm3637, %v3603, %v3744
        %v3746 = vsel %vm3639, %v3604, %v3745
        %v3747 = vsel %vm3641, %v3605, %v3746
        %v3748 = vsel %vm3643, %v3606, %v3747
        %v3749 = vsel %vm3631, %v3608, %v3607
        %v3750 = vsel %vm3633, %v3609, %v3749
        %v3751 = vsel %vm3635, %v3610, %v3750
        %v3752 = vsel %vm3637, %v3611, %v3751
        %v3753 = vsel %vm3639, %v3612, %v3752
        %v3754 = vsel %vm3641, %v3613, %v3753
        %v3755 = vsel %vm3643, %v3614, %v3754
        %3756 = vrot.lane.b32.xlu0 %v3748, 48
        %v3757 = vpop.permute.xlu0 %3756
        %3758 = vrot.lane.b32.xlu0 %v3755, 48
        %v3759 = vpop.permute.xlu0 %3758
        %v3762 = vsel %vm1022, %v3644, %v3685
        %v3763 = vsel %vm1022, %v3651, %v3687
        %vm3764 = vcmask 261120
        %v3765 = vsel %vm3764, %v3762, %v3721
        %v3766 = vsel %vm3764, %v3763, %v3723
        %vm3767 = vcmask 392192
        %v3768 = vsel %vm3767, %v3765, %v3757
        %v3769 = vsel %vm3767, %v3766, %v3759
        %v3770 = vld [vmem:[%s285] sm:$0xff]
        %v3771 = vld [vmem:[%s285 + $0x8] sm:$0xff]
        %v3772 = vld [vmem:[%s285 + $0x10] sm:$0xff]
        %v3773 = vld [vmem:[%s285 + $0x18] sm:$0xff]
        %v3774 = vld [vmem:[%s285 + $0x20] sm:$0xff]
        %v3775 = vld [vmem:[%s285 + $0x28] sm:$0xff]
        %v3776 = vld [vmem:[%s285 + $0x30] sm:$0xff]
        %v3777 = vld [vmem:[%s285 + $0x38] sm:$0xff]
        %v3778 = vld [vmem:[%s285 + $0x40] sm:$0xff]
        %v3779 = vld [vmem:[%s285 + $0x48] sm:$0xff]
        %v3780 = vld [vmem:[%s285 + $0x50] sm:$0xf]
        %v3781 = vlaneseq
        %v3782 = vshrl.u32 %v3781, 7
        %v3783 = vsub.s32 0, %v3782
        %v3784 = vrot.slane %v3778, %v3783
        %vm3785 = vcmask 523264
        %v3787 = vsel %vm3785, %v3768, 0
        %v3790 = vsel %vm3785, %v3769, 0
        %3792 = vmatprep.subr.mxu0 0.0
        %3793 = vmatpush1.msra.mxu0 0.0
        %3794 = vmatprep.subr.mxu0 0.0
        %3795 = vmatpush1.msra.mxu0 0.0
        %3796 = vmatprep.subr.mxu0 0.0
        %3797 = vmatpush1.msra.mxu0 0.0
        %3798 = vmatprep.subr.mxu0 0.0
        %3799 = vmatpush1.msra.mxu0 0.0
        %3800 = vmatprep.subr.mxu0 0.0
        %3801 = vmatpush1.msra.mxu0 0.0
        %3802 = vmatprep.subr.mxu0 0.0
        %3803 = vmatpush1.msra.mxu0 0.0
        %3804 = vmatprep.subr.mxu0 0.0
        %3805 = vmatpush1.msra.mxu0 0.0
        %3806 = vmatprep.subr.mxu0 0.0
        %3807 = vmatpush1.msra.mxu0 0.0
        %3808 = vmatprep.subr.mxu0 0.0
        %3809 = vmatpush1.msra.mxu0 %v3777
        %3810 = vmatprep.subr.mxu0 0.0
        %3811 = vmatpush1.msra.mxu0 %v3776
        %3812 = vmatprep.subr.mxu0 0.0
        %3813 = vmatpush1.msra.mxu0 %v3775
        %3814 = vmatprep.subr.mxu0 0.0
        %3815 = vmatpush1.msra.mxu0 %v3774
        %3816 = vmatprep.subr.mxu0 0.0
        %3817 = vmatpush1.msra.mxu0 %v3773
        %3818 = vmatprep.subr.mxu0 0.0
        %3819 = vmatpush1.msra.mxu0 %v3772
        %3820 = vmatprep.subr.mxu0 0.0
        %3821 = vmatpush1.msra.mxu0 %v3771
        %3822 = vmatprep.subr.mxu0 0.0
        %3823 = vmatpush1.msra.mxu0 %v3770
        %3824 = vmatprep.subr.mxu0 0.0
        %3825 = vmatpush2.msra.mxu0 0.0
        %3826 = vmatprep.subr.mxu0 0.0
        %3827 = vmatpush2.msra.mxu0 0.0
        %3828 = vmatprep.subr.mxu0 0.0
        %3829 = vmatpush2.msra.mxu0 0.0
        %3830 = vmatprep.subr.mxu0 0.0
        %3831 = vmatpush2.msra.mxu0 0.0
        %3832 = vmatprep.subr.mxu0 0.0
        %3833 = vmatpush2.msra.mxu0 0.0
        %3834 = vmatprep.subr.mxu0 0.0
        %3835 = vmatpush2.msra.mxu0 0.0
        %3836 = vmatprep.subr.mxu0 0.0
        %3837 = vmatpush2.msra.mxu0 0.0
        %3838 = vmatprep.subr.mxu0 0.0
        %3839 = vmatpush2.msra.mxu0 0.0
        %3840 = vmatprep.subr.mxu0 0.0
        %3841 = vmatpush2.msra.mxu0 0.0
        %3842 = vmatprep.subr.mxu0 0.0
        %3843 = vmatpush2.msra.mxu0 0.0
        %3844 = vmatprep.subr.mxu0 0.0
        %3845 = vmatpush2.msra.mxu0 0.0
        %3846 = vmatprep.subr.mxu0 0.0
        %3847 = vmatpush2.msra.mxu0 0.0
        %3848 = vmatprep.subr.mxu0 0.0
        %3849 = vmatpush2.msra.mxu0 0.0
        %3850 = vmatprep.subr.mxu0 0.0
        %3851 = vmatpush2.msra.mxu0 0.0
        %3852 = vmatprep.subr.mxu0 0.0
        %3853 = vmatpush2.msra.mxu0 0.0
        %3854 = vmatprep.subr.mxu0 0.0
        %3855 = vmatpush2.msra.mxu0 0.0
        %3856 = vmatprep.mubr.f32.mxu0 0.0
        %3857 = vmatmul.mubr.f32.gmra.mxu0 %v3787
        %v3858 = vpop.f32.mrf.mxu0
        %v3859 = vadd.f32 %v3784, %v3858
        %v3860 = vpop.f32.mrf.mxu0
        %3861 = vmatprep.mubr.f32.mxu0 0.0
        %3862 = vmatmul.mubr.f32.gmra.mxu0 %v3790
        %v3863 = vpop.f32.mrf.mxu0
        %v3864 = vadd.f32 %v3784, %v3863
        %v3865 = vpop.f32.mrf.mxu0
        %3866 = vdwg.mxu0
        %v3867 = vtanh.pop %v3859
        %v3868 = vtanh.pop %v3864
        %v3869 = vlaneseq
        %v3870 = vshrl.u32 %v3869, 7
        %v3871 = vsub.s32 1, %v3870
        %v3872 = vrot.slane %v3780, %v3871
        %vm3876 = vcmask 1046528
        %v3877 = vrot.slane %v3778, 1
        %v3878 = vrot.slane %v3779, 1
        %v3879 = vsel %vm3876, %v3877, %v3878
        %v3880 = vrot.slane %v3780, 1
        %v3881 = vsel %vm3876, %v3878, %v3880
        %v3885 = vsel %vm1022, %v3867, 0
        %v3888 = vsel %vm1022, %v3868, 0
        %3890 = vmatprep.subr.mxu0 0.0
        %3891 = vmatpush1.msra.mxu0 0.0
        %3892 = vmatprep.subr.mxu0 0.0
        %3893 = vmatpush1.msra.mxu0 0.0
        %3894 = vmatprep.subr.mxu0 0.0
        %3895 = vmatpush1.msra.mxu0 0.0
        %3896 = vmatprep.subr.mxu0 0.0
        %3897 = vmatpush1.msra.mxu0 0.0
        %3898 = vmatprep.subr.mxu0 0.0
        %3899 = vmatpush1.msra.mxu0 0.0
        %3900 = vmatprep.subr.mxu0 0.0
        %3901 = vmatpush1.msra.mxu0 0.0
        %3902 = vmatprep.subr.mxu0 0.0
        %3903 = vmatpush1.msra.mxu0 0.0
        %3904 = vmatprep.subr.mxu0 0.0
        %3905 = vmatpush1.msra.mxu0 0.0
        %3906 = vmatprep.subr.mxu0 0.0
        %3907 = vmatpush1.msra.mxu0 0.0
        %3908 = vmatprep.subr.mxu0 0.0
        %3909 = vmatpush1.msra.mxu0 0.0
        %3910 = vmatprep.subr.mxu0 0.0
        %3911 = vmatpush1.msra.mxu0 0.0
        %3912 = vmatprep.subr.mxu0 0.0
        %3913 = vmatpush1.msra.mxu0 0.0
        %3914 = vmatprep.subr.mxu0 0.0
        %3915 = vmatpush1.msra.mxu0 0.0
        %3916 = vmatprep.subr.mxu0 0.0
        %3917 = vmatpush1.msra.mxu0 0.0
        %3918 = vmatprep.subr.mxu0 0.0
        %3919 = vmatpush1.msra.mxu0 %v3881
        %3920 = vmatprep.subr.mxu0 0.0
        %3921 = vmatpush1.msra.mxu0 %v3879
        %3922 = vmatprep.subr.mxu0 0.0
        %3923 = vmatpush2.msra.mxu0 0.0
        %3924 = vmatprep.subr.mxu0 0.0
        %3925 = vmatpush2.msra.mxu0 0.0
        %3926 = vmatprep.subr.mxu0 0.0
        %3927 = vmatpush2.msra.mxu0 0.0
        %3928 = vmatprep.subr.mxu0 0.0
        %3929 = vmatpush2.msra.mxu0 0.0
        %3930 = vmatprep.subr.mxu0 0.0
        %3931 = vmatpush2.msra.mxu0 0.0
        %3932 = vmatprep.subr.mxu0 0.0
        %3933 = vmatpush2.msra.mxu0 0.0
        %3934 = vmatprep.subr.mxu0 0.0
        %3935 = vmatpush2.msra.mxu0 0.0
        %3936 = vmatprep.subr.mxu0 0.0
        %3937 = vmatpush2.msra.mxu0 0.0
        %3938 = vmatprep.subr.mxu0 0.0
        %3939 = vmatpush2.msra.mxu0 0.0
        %3940 = vmatprep.subr.mxu0 0.0
        %3941 = vmatpush2.msra.mxu0 0.0
        %3942 = vmatprep.subr.mxu0 0.0
        %3943 = vmatpush2.msra.mxu0 0.0
        %3944 = vmatprep.subr.mxu0 0.0
        %3945 = vmatpush2.msra.mxu0 0.0
        %3946 = vmatprep.subr.mxu0 0.0
        %3947 = vmatpush2.msra.mxu0 0.0
        %3948 = vmatprep.subr.mxu0 0.0
        %3949 = vmatpush2.msra.mxu0 0.0
        %3950 = vmatprep.subr.mxu0 0.0
        %3951 = vmatpush2.msra.mxu0 0.0
        %3952 = vmatprep.subr.mxu0 0.0
        %3953 = vmatpush2.msra.mxu0 0.0
        %3954 = vmatprep.mubr.f32.mxu0 0.0
        %3955 = vmatmul.mubr.f32.gmra.mxu0 %v3885
        %v3956 = vpop.f32.mrf.mxu0
        %v3957 = vadd.f32 %v3872, %v3956
        %v3958 = vpop.f32.mrf.mxu0
        %3959 = vmatprep.mubr.f32.mxu0 0.0
        %3960 = vmatmul.mubr.f32.gmra.mxu0 %v3888
        %v3961 = vpop.f32.mrf.mxu0
        %v3962 = vadd.f32 %v3872, %v3961
        %v3963 = vpop.f32.mrf.mxu0
        %3964 = vdwg.mxu0
        %v3965 = vtanh.pop %v3957
        %v3966 = vtanh.pop %v3962
        %3967 = vset.pattern.permute.xlu0 0
        %3968 = vperm.xlu0 %3967, %v3780
        %v3969 = vpop.permute.xlu0 %3968
        %v3970 = vrot.slane %v3780, 2
        %v3971 = vrot.slane %v3969, 3
        %v3973 = vsel %vm1022, %v3970, 0
        %v3976 = vsel %vm1022, %v3965, 0
        %v3979 = vsel %vm1022, %v3966, 0
        %3981 = vmatprep.subr.mxu0 0.0
        %3982 = vmatpush1.xpose.msra.mxu0 0.0
        %3983 = vmatprep.subr.mxu0 0.0
        %3984 = vmatpush1.xpose.msra.mxu0 0.0
        %3985 = vmatprep.subr.mxu0 0.0
        %3986 = vmatpush1.xpose.msra.mxu0 0.0
        %3987 = vmatprep.subr.mxu0 0.0
        %3988 = vmatpush1.xpose.msra.mxu0 0.0
        %3989 = vmatprep.subr.mxu0 0.0
        %3990 = vmatpush1.xpose.msra.mxu0 0.0
        %3991 = vmatprep.subr.mxu0 0.0
        %3992 = vmatpush1.xpose.msra.mxu0 0.0
        %3993 = vmatprep.subr.mxu0 0.0
        %3994 = vmatpush1.xpose.msra.mxu0 0.0
        %3995 = vmatprep.subr.mxu0 0.0
        %3996 = vmatpush1.xpose.msra.mxu0 0.0
        %3997 = vmatprep.subr.mxu0 0.0
        %3998 = vmatpush1.xpose.msra.mxu0 0.0
        %3999 = vmatprep.subr.mxu0 0.0
        %4000 = vmatpush1.xpose.msra.mxu0 0.0
        %4001 = vmatprep.subr.mxu0 0.0
        %4002 = vmatpush1.xpose.msra.mxu0 0.0
        %4003 = vmatprep.subr.mxu0 0.0
        %4004 = vmatpush1.xpose.msra.mxu0 0.0
        %4005 = vmatprep.subr.mxu0 0.0
        %4006 = vmatpush1.xpose.msra.mxu0 0.0
        %4007 = vmatprep.subr.mxu0 0.0
        %4008 = vmatpush1.xpose.msra.mxu0 0.0
        %4009 = vmatprep.subr.mxu0 0.0
        %4010 = vmatpush1.xpose.msra.mxu0 %v3979
        %4011 = vmatprep.subr.mxu0 0.0
        %4012 = vmatpush1.xpose.msra.mxu0 %v3976
        %4013 = vmatprep.subr.mxu0 0.0
        %4014 = vmatpush2.xpose.msra.mxu0 0.0
        %4015 = vmatprep.subr.mxu0 0.0
        %4016 = vmatpush2.xpose.msra.mxu0 0.0
        %4017 = vmatprep.subr.mxu0 0.0
        %4018 = vmatpush2.xpose.msra.mxu0 0.0
        %4019 = vmatprep.subr.mxu0 0.0
        %4020 = vmatpush2.xpose.msra.mxu0 0.0
        %4021 = vmatprep.subr.mxu0 0.0
        %4022 = vmatpush2.xpose.msra.mxu0 0.0
        %4023 = vmatprep.subr.mxu0 0.0
        %4024 = vmatpush2.xpose.msra.mxu0 0.0
        %4025 = vmatprep.subr.mxu0 0.0
        %4026 = vmatpush2.xpose.msra.mxu0 0.0
        %4027 = vmatprep.subr.mxu0 0.0
        %4028 = vmatpush2.xpose.msra.mxu0 0.0
        %4029 = vmatprep.subr.mxu0 0.0
        %4030 = vmatpush2.xpose.msra.mxu0 0.0
        %4031 = vmatprep.subr.mxu0 0.0
        %4032 = vmatpush2.xpose.msra.mxu0 0.0
        %4033 = vmatprep.subr.mxu0 0.0
        %4034 = vmatpush2.xpose.msra.mxu0 0.0
        %4035 = vmatprep.subr.mxu0 0.0
        %4036 = vmatpush2.xpose.msra.mxu0 0.0
        %4037 = vmatprep.subr.mxu0 0.0
        %4038 = vmatpush2.xpose.msra.mxu0 0.0
        %4039 = vmatprep.subr.mxu0 0.0
        %4040 = vmatpush2.xpose.msra.mxu0 0.0
        %4041 = vmatprep.subr.mxu0 0.0
        %4042 = vmatpush2.xpose.msra.mxu0 0.0
        %4043 = vmatprep.subr.mxu0 0.0
        %4044 = vmatpush2.xpose.msra.mxu0 0.0
        %4045 = vmatprep.mubr.f32.mxu0 0.0
        %4046 = vmatmul.mubr.f32.gmra.mxu0 %v3973
        %v4047 = vpop.f32.mrf.mxu0
        %v4048 = vadd.f32 %v3971, %v4047
        %v4049 = vpop.f32.mrf.mxu0
        %4050 = vdwg.mxu0
        %vm4051 = vcmask 122880
        %4052 = vst.msk [vmem:[%s271] sm:$0x1] %vm4051, %v4048
        %s4053 = sand.u32 %s169, 1
        %s4054 = scalar_lea.sflag [#allocation3], %s4053
        %s4055 = sand.u32 %s169, 1
        %s4056 = scalar_lea.vmem [#allocation2], %s4055
        // Predicated region
        $region45: #{tpu_custom_call.1} parent=43 // pred_check
          %p4057 = pneg %p179
        $region46: #{tpu_custom_call.1} parent=43 // pred_check_branch
          %4059 = sbr.rel (%p4057) target = $region48
        $region47: #{tpu_custom_call.1} parent=43 // pred_region
          %s4061 = ssub.s32 16, 16
          %4062 = vsyncadd %s4054, %s4061
          %s4063 = smul.addr %s20, 16
          %s4064 = scalar_lea.hbm %s6, %s4063
          %s4066 = sshll.u32 %s4056, 4
          %s4067 = int_to_ptr.vmem [resolvable:$true] %s4066
          %4069 = dma.vmem_to_hbm [thread:$0]  %s4067, 16, %s4064, %s4054
        $region48: #{tpu_custom_call.1} parent=43 // pred_fallthru
          _
      $region44: #{tpu_custom_call.1} parent=5 // pred_fallthru
        _
      %p4070 = scmp.le.s32.totalorder 2, %s15
      // Predicated region
      $region49: #{tpu_custom_call.1} parent=5 // pred_check
        %p4071 = pneg %p4070
      $region50: #{tpu_custom_call.1} parent=5 // pred_check_branch
        %4073 = sbr.rel (%p4071) target = $region52
      $region51: #{tpu_custom_call.1} parent=5 // pred_region
        %s4074 = ssub.s32 %s15, 2
        // Predicated region
        $region53: #{tpu_custom_call.1} parent=51 // pred_check
          %p4075 = pneg %p185
        $region54: #{tpu_custom_call.1} parent=51 // pred_check_branch
          %4077 = sbr.rel (%p4075) target = $region56
        $region55: #{tpu_custom_call.1} parent=51 // pred_region
          %s4078 = sand.u32 %s170, 1
          %s4079 = scalar_lea.sflag [#allocation3], %s4078
          %s4080 = sand.u32 %s170, 1
          %s4081 = scalar_lea.vmem [#allocation2], %s4080
          %4082 = dma.done %s4079, 16
        $region56: #{tpu_custom_call.1} parent=51 // pred_fallthru
          _
      $region52: #{tpu_custom_call.1} parent=5 // pred_fallthru
        _
    $region6: #{tpu_custom_call.1} parent=1 // loop_footer
      %s19 = sadd.s32 1, %s15
    $region7: #{tpu_custom_call.1} parent=1 // loop_footer_branch
      %14 = sbr.rel target = $region3
    $region8: #{tpu_custom_call.1} parent=1 // loop_exit
      _
    %4083 = vsyncpa [#allocation3], 1
    %s4084 = scalar_lea.sflag [#allocation3], 1
    %4085 = vsyncpa %s4084, 1

</llo_original>
